<compile_context>
chip_gen: v5e
topology: v5e:2x2
jax: 0.10.0
libtpu: 0.0.40
codegen_flags: <defaults>
</compile_context>

<pallas_src>
import functools
import math

import jax
import jax.numpy as jnp
from jax.experimental import pallas as pl
from jax.experimental.pallas import tpu as pltpu


def _mish(h):
    # mish(x) = x * tanh(softplus(x)); logaddexp(h, 0) is an overflow-safe softplus.
    return h * jnp.tanh(jnp.logaddexp(h, 0.0))


def _diffusion_kernel(time_ref, condx_ref, consts_ref,
                      tw1s_ref, tw1c_ref, tw2_ref,
                      w0t_ref, w0cx_ref,
                      w1_ref, w2_ref, w3_ref, w4_ref,
                      out_ref, *, offsets, widths):
    bf = jnp.bfloat16
    f32 = jnp.float32

    def const(name):
        # Static, 128-lane-aligned slice of the packed f32 constant array.
        o = offsets[name]
        return consts_ref[:, o:o + widths[name]]           # (1, w) f32

    # --- SinusoidalPosEmb(dim): freq table precomputed in the wrapper ---
    emb = time_ref[...] * const("freqs")                    # (TM, half) f32
    s = jnp.sin(emb).astype(bf)
    c = jnp.cos(emb).astype(bf)

    # --- time_mlp: Linear(dim, 4*dim) -> Mish -> Linear(4*dim, dim) ---
    # concat([sin, cos]) @ tw1  ==  sin @ tw1[:half] + cos @ tw1[half:]
    h = (jnp.dot(s, tw1s_ref[...], preferred_element_type=f32)
         + jnp.dot(c, tw1c_ref[...], preferred_element_type=f32)
         + const("tb1"))
    h = _mish(h)                                            # f32 elementwise
    t_emb = (jnp.dot(h.astype(bf), tw2_ref[...], preferred_element_type=f32)
             + const("tb2"))

    # --- trunk layer 0: cat([t, cond, x]) @ w0  ==  t@w0[:dim] + (cond||x)@w0[dim:] ---
    h = (jnp.dot(t_emb.astype(bf), w0t_ref[...], preferred_element_type=f32)
         + jnp.dot(condx_ref[...].astype(bf), w0cx_ref[...], preferred_element_type=f32)
         + const("b0"))
    h = jnp.maximum(h, 0.0)

    # --- remaining EMLPNew trunk layers (hidden_units=[1024, 512, 512, 256]) ---
    h = jnp.maximum(
        jnp.dot(h.astype(bf), w1_ref[...], preferred_element_type=f32) + const("b1"), 0.0)
    h = jnp.maximum(
        jnp.dot(h.astype(bf), w2_ref[...], preferred_element_type=f32) + const("b2"), 0.0)
    h = jnp.maximum(
        jnp.dot(h.astype(bf), w3_ref[...], preferred_element_type=f32) + const("b3"), 0.0)
    out = jnp.dot(h.astype(bf), w4_ref[...], preferred_element_type=f32) + const("b4")

    out_ref[...] = out.astype(out_ref.dtype)


def init_params(key, dim, in_dim, out_dim, horizon=1):
    """Deterministic synthetic parameters (shapes match the module's __init__)."""
    d_in = dim + in_dim + out_dim * horizon
    hidden = [1024, 512, 512, 256]
    layer_sizes = (
        [(dim, 4 * dim), (4 * dim, dim)]                                  # time_mlp
        + list(zip([d_in] + hidden, hidden + [out_dim * horizon]))        # EMLP trunk
    )
    params = []
    keys = jax.random.split(key, len(layer_sizes))
    for k, (fan_in, fan_out) in zip(keys, layer_sizes):
        kw, kb = jax.random.split(k)
        w = jax.random.normal(kw, (fan_in, fan_out), jnp.float32) / math.sqrt(fan_in)
        b = jax.random.normal(kb, (1, fan_out), jnp.float32) * 0.01
        params.append((w, b))
    return params


def _round_up(n, m):
    return ((n + m - 1) // m) * m


def equivariant_diffusion_net(x, time, cond, params):
    """
    x    : [batch, out_dim * horizon]   (action)
    time : [batch]                      (diffusion timestep)
    cond : [batch, in_dim]              (state)
    returns: [batch, out_dim * horizon]
    """
    (tw1, tb1), (tw2, tb2), (w0, b0), (w1, b1), (w2, b2), (w3, b3), (w4, b4) = params

    B = x.shape[0]
    in_dim = cond.shape[1]
    dim = tw1.shape[0]
    half = dim // 2
    assert half >= 2, "SinusoidalPosEmb needs dim >= 4 (half_dim - 1 in denominator)"
    out_total = w4.shape[1]

    # --- batch tiling: big batches get TM=256 tiles on a parallel grid axis,
    #     small batches use a single 8-sublane-aligned tile (grid of 1). ---
    TM = 256 if B > 256 else max(8, _round_up(B, 8))
    B_pad = _round_up(B, TM)
    grid = (B_pad // TM,)

    def pad_b(a):
        return jnp.pad(a, ((0, B_pad - B), (0, 0)))

    time2d = pad_b(time.reshape(B, 1).astype(jnp.float32))
    condx = pad_b(jnp.concatenate(
        [cond.astype(jnp.float32), x.astype(jnp.float32)], axis=-1))
    cx = condx.shape[1]                                   # in_dim + out_total

    # --- packed f32 constants: sinusoidal freq table + every bias, each slot
    #     padded to a 128-lane boundary so in-kernel slices are vreg-aligned. ---
    scale = -math.log(10000.0) / (half - 1)
    freqs = jnp.exp(jnp.arange(half, dtype=jnp.float32) * scale)

    out_pad = _round_up(out_total, 128)                   # lane-dense output store
    b4p = jnp.pad(b4.reshape(-1), (0, out_pad - out_total))

    const_items = [
        ("freqs", freqs),
        ("tb1", tb1.reshape(-1)),
        ("tb2", tb2.reshape(-1)),
        ("b0", b0.reshape(-1)),
        ("b1", b1.reshape(-1)),
        ("b2", b2.reshape(-1)),
        ("b3", b3.reshape(-1)),
        ("b4", b4p),
    ]
    offsets, widths, chunks = {}, {}, []
    off = 0
    for name, arr in const_items:
        w = arr.shape[0]
        offsets[name] = off
        widths[name] = w
        wpad = _round_up(w, 128)
        chunks.append(jnp.pad(arr.astype(jnp.float32), (0, wpad - w)))
        off += wpad
    consts = jnp.concatenate(chunks).reshape(1, off)

    # --- bf16 weights; split tw1 for sin/cos halves, split w0 rows into
    #     (t_emb) and (cond||x) parts, zero-pad the final layer to 128 lanes. ---
    bf = jnp.bfloat16
    tw1s = tw1[:half].astype(bf)                          # (half, 4*dim)
    tw1c = tw1[half:].astype(bf)                          # (half, 4*dim)
    tw2b = tw2.astype(bf)                                 # (4*dim, dim)
    w0t = w0[:dim].astype(bf)                             # (dim, 1024)
    w0cx = w0[dim:].astype(bf)                            # (in_dim+out_total, 1024)
    w1b, w2b, w3b = (w.astype(bf) for w in (w1, w2, w3))
    w4p = jnp.pad(w4, ((0, 0), (0, out_pad - out_total))).astype(bf)

    weights = [tw1s, tw1c, tw2b, w0t, w0cx, w1b, w2b, w3b, w4p]

    # Activations tile over the batch grid; weights/consts use a constant
    # index_map so they are DMA'd once and stay VMEM-resident across tiles.
    def act_spec(ncols):
        return pl.BlockSpec((TM, ncols), lambda i: (i, 0))

    def resident_spec(arr):
        return pl.BlockSpec(arr.shape, lambda i: (0, 0))

    in_specs = ([act_spec(1), act_spec(cx), resident_spec(consts)]
                + [resident_spec(w) for w in weights])
    out_spec = pl.BlockSpec((TM, out_pad), lambda i: (i, 0))

    inputs = [time2d, condx, consts] + weights

    # Advisory cost estimate for XLA's scheduler.
    flops = 2 * B_pad * sum(int(w.shape[0]) * int(w.shape[1]) for w in weights)
    transcendentals = B_pad * (2 * half + 2 * 4 * dim)    # sin/cos + mish exp/tanh
    bytes_accessed = (sum(int(w.size) * w.dtype.itemsize for w in weights)
                      + int(consts.size) * 4
                      + (int(time2d.size) + int(condx.size)) * 4
                      + B_pad * out_pad * 4)

    kernel = functools.partial(_diffusion_kernel, offsets=offsets, widths=widths)

    out = pl.pallas_call(
        kernel,
        out_shape=jax.ShapeDtypeStruct((B_pad, out_pad), jnp.float32),
        grid_spec=pltpu.PrefetchScalarGridSpec(
            num_scalar_prefetch=0,
            grid=grid,
            in_specs=in_specs,
            out_specs=out_spec,
        ),
        compiler_params=pltpu.CompilerParams(
            dimension_semantics=("parallel",),
            vmem_limit_bytes=16 << 20,
        ),
        cost_estimate=pl.CostEstimate(
            flops=flops,
            transcendentals=transcendentals,
            bytes_accessed=bytes_accessed,
        ),
    )(*inputs)

    return out[:B, :out_total]


if __name__ == "__main__":
    # Small shapes consistent with the module:
    # dim (time embedding) = 32, in_dim (state) = 8, out_dim (action) = 4, horizon = 1
    B, dim, in_dim, out_dim, horizon = 2, 32, 8, 4, 1

    key = jax.random.PRNGKey(0)
    k_t, k_c, k_x, k_p = jax.random.split(key, 4)
    time = jax.random.uniform(k_t, (B,), dtype=jnp.float32) * 100.0
    cond = jax.random.normal(k_c, (B, in_dim), dtype=jnp.float32)
    x = jax.random.normal(k_x, (B, out_dim * horizon), dtype=jnp.float32)

    params = init_params(k_p, dim, in_dim, out_dim, horizon)

    out = equivariant_diffusion_net(x, time, cond, params)
    out = jax.block_until_ready(out)

    assert out.shape == (B, out_dim * horizon), out.shape
    assert bool(jnp.all(jnp.isfinite(out)))
    print("KERNEL_OK")
</pallas_src>

<mosaic_0001>
module attributes {stable_mosaic.version = 11 : i64} {
  func.func @_diffusion_kernel(%arg0: i32, %arg1: memref<8x1xf32, #tpu.memory_space<vmem>>, %arg2: memref<8x12xf32, #tpu.memory_space<vmem>>, %arg3: memref<1x2816xf32, #tpu.memory_space<vmem>>, %arg4: memref<16x128xbf16, #tpu.memory_space<vmem>>, %arg5: memref<16x128xbf16, #tpu.memory_space<vmem>>, %arg6: memref<128x32xbf16, #tpu.memory_space<vmem>>, %arg7: memref<32x1024xbf16, #tpu.memory_space<vmem>>, %arg8: memref<12x1024xbf16, #tpu.memory_space<vmem>>, %arg9: memref<1024x512xbf16, #tpu.memory_space<vmem>>, %arg10: memref<512x512xbf16, #tpu.memory_space<vmem>>, %arg11: memref<512x256xbf16, #tpu.memory_space<vmem>>, %arg12: memref<256x128xbf16, #tpu.memory_space<vmem>>, %arg13: memref<8x128xf32, #tpu.memory_space<vmem>>) attributes {dimension_semantics = [#tpu.dimension_semantics<parallel>], iteration_bounds = array<i64: 1>, scalar_prefetch = 0 : i64, scratch_operands = 0 : i64, tpu.core_type = #tpu.core_type<tc>, window_params = [{transform_indices = @transform_0, window_bounds = array<i64: 8, 1>}, {transform_indices = @transform_1, window_bounds = array<i64: 8, 12>}, {pipeline_mode = #tpu.pipeline_mode<synchronous>, transform_indices = @transform_2, window_bounds = array<i64: 1, 2816>}, {pipeline_mode = #tpu.pipeline_mode<synchronous>, transform_indices = @transform_3, window_bounds = array<i64: 16, 128>}, {pipeline_mode = #tpu.pipeline_mode<synchronous>, transform_indices = @transform_4, window_bounds = array<i64: 16, 128>}, {pipeline_mode = #tpu.pipeline_mode<synchronous>, transform_indices = @transform_5, window_bounds = array<i64: 128, 32>}, {pipeline_mode = #tpu.pipeline_mode<synchronous>, transform_indices = @transform_6, window_bounds = array<i64: 32, 1024>}, {pipeline_mode = #tpu.pipeline_mode<synchronous>, transform_indices = @transform_7, window_bounds = array<i64: 12, 1024>}, {pipeline_mode = #tpu.pipeline_mode<synchronous>, transform_indices = @transform_8, window_bounds = array<i64: 1024, 512>}, {pipeline_mode = #tpu.pipeline_mode<synchronous>, transform_indices = @transform_9, window_bounds = array<i64: 512, 512>}, {pipeline_mode = #tpu.pipeline_mode<synchronous>, transform_indices = @transform_10, window_bounds = array<i64: 512, 256>}, {pipeline_mode = #tpu.pipeline_mode<synchronous>, transform_indices = @transform_11, window_bounds = array<i64: 256, 128>}, {transform_indices = @transform_12, window_bounds = array<i64: 8, 128>}]} {
    %c0 = arith.constant 0 : index
    %c0_0 = arith.constant 0 : index
    %0 = vector.load %arg1[%c0, %c0_0] : memref<8x1xf32, #tpu.memory_space<vmem>>, vector<8x1xf32>
    %c0_1 = arith.constant 0 : index
    %c0_2 = arith.constant 0 : index
    %1 = vector.load %arg3[%c0_1, %c0_2] : memref<1x2816xf32, #tpu.memory_space<vmem>>, vector<1x16xf32>
    %2 = vector.broadcast %0 : vector<8x1xf32> to vector<8x16xf32>
    %3 = vector.broadcast %1 : vector<1x16xf32> to vector<8x16xf32>
    %4 = arith.mulf %2, %3 : vector<8x16xf32>
    %5 = math.sin %4 : vector<8x16xf32>
    %6 = arith.truncf %5 : vector<8x16xf32> to vector<8x16xbf16>
    %7 = math.cos %4 : vector<8x16xf32>
    %8 = arith.truncf %7 : vector<8x16xf32> to vector<8x16xbf16>
    %c0_3 = arith.constant 0 : index
    %c0_4 = arith.constant 0 : index
    %9 = vector.load %arg4[%c0_3, %c0_4] : memref<16x128xbf16, #tpu.memory_space<vmem>>, vector<16x128xbf16>
    %cst = arith.constant dense<0.000000e+00> : vector<8x128xf32>
    %10 = tpu.matmul %6, %9, %cst {dimension_numbers = #tpu.dot_dimension_numbers<[1], [0], [0], [1], [0, 0, 1, 1], [], []>} : vector<8x16xbf16>, vector<16x128xbf16>, vector<8x128xf32> -> vector<8x128xf32>
    %c0_5 = arith.constant 0 : index
    %c0_6 = arith.constant 0 : index
    %11 = vector.load %arg5[%c0_5, %c0_6] : memref<16x128xbf16, #tpu.memory_space<vmem>>, vector<16x128xbf16>
    %cst_7 = arith.constant dense<0.000000e+00> : vector<8x128xf32>
    %12 = tpu.matmul %8, %11, %cst_7 {dimension_numbers = #tpu.dot_dimension_numbers<[1], [0], [0], [1], [0, 0, 1, 1], [], []>} : vector<8x16xbf16>, vector<16x128xbf16>, vector<8x128xf32> -> vector<8x128xf32>
    %13 = arith.addf %10, %12 : vector<8x128xf32>
    %c0_8 = arith.constant 0 : index
    %c128 = arith.constant 128 : index
    %14 = vector.load %arg3[%c0_8, %c128] : memref<1x2816xf32, #tpu.memory_space<vmem>>, vector<1x128xf32>
    %15 = vector.broadcast %14 : vector<1x128xf32> to vector<8x128xf32>
    %16 = arith.addf %13, %15 : vector<8x128xf32>
    %cst_9 = arith.constant 0.000000e+00 : f32
    %17 = vector.broadcast %cst_9 : f32 to vector<8x128xf32>
    %18 = arith.maximumf %16, %17 : vector<8x128xf32>
    %19 = vector.broadcast %cst_9 : f32 to vector<8x128xf32>
    %20 = arith.subf %16, %19 : vector<8x128xf32>
    %21 = arith.cmpf one, %20, %20 : vector<8x128xf32>
    %22 = vector.broadcast %cst_9 : f32 to vector<8x128xf32>
    %23 = arith.addf %16, %22 : vector<8x128xf32>
    %24 = math.absf %20 : vector<8x128xf32>
    %cst_10 = arith.constant 0.000000e+00 : f32
    %25 = vector.broadcast %cst_10 : f32 to vector<8x128xf32>
    %26 = arith.subf %25, %24 : vector<8x128xf32>
    %27 = math.exp %26 : vector<8x128xf32>
    %28 = math.log1p %27 : vector<8x128xf32>
    %29 = arith.addf %18, %28 : vector<8x128xf32>
    %30 = arith.select %21, %23, %29 : vector<8x128xi1>, vector<8x128xf32>
    %31 = math.tanh %30 : vector<8x128xf32>
    %32 = arith.mulf %16, %31 : vector<8x128xf32>
    %33 = arith.truncf %32 : vector<8x128xf32> to vector<8x128xbf16>
    %c0_11 = arith.constant 0 : index
    %c0_12 = arith.constant 0 : index
    %34 = vector.load %arg6[%c0_11, %c0_12] : memref<128x32xbf16, #tpu.memory_space<vmem>>, vector<128x32xbf16>
    %cst_13 = arith.constant dense<0.000000e+00> : vector<8x32xf32>
    %35 = tpu.matmul %33, %34, %cst_13 {dimension_numbers = #tpu.dot_dimension_numbers<[1], [0], [0], [1], [0, 0, 1, 1], [], []>} : vector<8x128xbf16>, vector<128x32xbf16>, vector<8x32xf32> -> vector<8x32xf32>
    %c0_14 = arith.constant 0 : index
    %c256 = arith.constant 256 : index
    %36 = vector.load %arg3[%c0_14, %c256] : memref<1x2816xf32, #tpu.memory_space<vmem>>, vector<1x32xf32>
    %37 = vector.broadcast %36 : vector<1x32xf32> to vector<8x32xf32>
    %38 = arith.addf %35, %37 : vector<8x32xf32>
    %39 = arith.truncf %38 : vector<8x32xf32> to vector<8x32xbf16>
    %c0_15 = arith.constant 0 : index
    %c0_16 = arith.constant 0 : index
    %40 = vector.load %arg7[%c0_15, %c0_16] : memref<32x1024xbf16, #tpu.memory_space<vmem>>, vector<32x1024xbf16>
    %cst_17 = arith.constant dense<0.000000e+00> : vector<8x1024xf32>
    %41 = tpu.matmul %39, %40, %cst_17 {dimension_numbers = #tpu.dot_dimension_numbers<[1], [0], [0], [1], [0, 0, 1, 1], [], []>} : vector<8x32xbf16>, vector<32x1024xbf16>, vector<8x1024xf32> -> vector<8x1024xf32>
    %c0_18 = arith.constant 0 : index
    %c0_19 = arith.constant 0 : index
    %42 = vector.load %arg2[%c0_18, %c0_19] : memref<8x12xf32, #tpu.memory_space<vmem>>, vector<8x12xf32>
    %43 = arith.truncf %42 : vector<8x12xf32> to vector<8x12xbf16>
    %c0_20 = arith.constant 0 : index
    %c0_21 = arith.constant 0 : index
    %44 = vector.load %arg8[%c0_20, %c0_21] : memref<12x1024xbf16, #tpu.memory_space<vmem>>, vector<12x1024xbf16>
    %cst_22 = arith.constant dense<0.000000e+00> : vector<8x1024xf32>
    %45 = tpu.matmul %43, %44, %cst_22 {dimension_numbers = #tpu.dot_dimension_numbers<[1], [0], [0], [1], [0, 0, 1, 1], [], []>} : vector<8x12xbf16>, vector<12x1024xbf16>, vector<8x1024xf32> -> vector<8x1024xf32>
    %46 = arith.addf %41, %45 : vector<8x1024xf32>
    %c0_23 = arith.constant 0 : index
    %c384 = arith.constant 384 : index
    %47 = vector.load %arg3[%c0_23, %c384] : memref<1x2816xf32, #tpu.memory_space<vmem>>, vector<1x1024xf32>
    %48 = vector.broadcast %47 : vector<1x1024xf32> to vector<8x1024xf32>
    %49 = arith.addf %46, %48 : vector<8x1024xf32>
    %cst_24 = arith.constant 0.000000e+00 : f32
    %50 = vector.broadcast %cst_24 : f32 to vector<8x1024xf32>
    %51 = arith.maximumf %49, %50 : vector<8x1024xf32>
    %52 = arith.truncf %51 : vector<8x1024xf32> to vector<8x1024xbf16>
    %c0_25 = arith.constant 0 : index
    %c0_26 = arith.constant 0 : index
    %53 = vector.load %arg9[%c0_25, %c0_26] : memref<1024x512xbf16, #tpu.memory_space<vmem>>, vector<1024x512xbf16>
    %cst_27 = arith.constant dense<0.000000e+00> : vector<8x512xf32>
    %54 = tpu.matmul %52, %53, %cst_27 {dimension_numbers = #tpu.dot_dimension_numbers<[1], [0], [0], [1], [0, 0, 1, 1], [], []>} : vector<8x1024xbf16>, vector<1024x512xbf16>, vector<8x512xf32> -> vector<8x512xf32>
    %c0_28 = arith.constant 0 : index
    %c1408 = arith.constant 1408 : index
    %55 = vector.load %arg3[%c0_28, %c1408] : memref<1x2816xf32, #tpu.memory_space<vmem>>, vector<1x512xf32>
    %56 = vector.broadcast %55 : vector<1x512xf32> to vector<8x512xf32>
    %57 = arith.addf %54, %56 : vector<8x512xf32>
    %cst_29 = arith.constant 0.000000e+00 : f32
    %58 = vector.broadcast %cst_29 : f32 to vector<8x512xf32>
    %59 = arith.maximumf %57, %58 : vector<8x512xf32>
    %60 = arith.truncf %59 : vector<8x512xf32> to vector<8x512xbf16>
    %c0_30 = arith.constant 0 : index
    %c0_31 = arith.constant 0 : index
    %61 = vector.load %arg10[%c0_30, %c0_31] : memref<512x512xbf16, #tpu.memory_space<vmem>>, vector<512x512xbf16>
    %cst_32 = arith.constant dense<0.000000e+00> : vector<8x512xf32>
    %62 = tpu.matmul %60, %61, %cst_32 {dimension_numbers = #tpu.dot_dimension_numbers<[1], [0], [0], [1], [0, 0, 1, 1], [], []>} : vector<8x512xbf16>, vector<512x512xbf16>, vector<8x512xf32> -> vector<8x512xf32>
    %c0_33 = arith.constant 0 : index
    %c1920 = arith.constant 1920 : index
    %63 = vector.load %arg3[%c0_33, %c1920] : memref<1x2816xf32, #tpu.memory_space<vmem>>, vector<1x512xf32>
    %64 = vector.broadcast %63 : vector<1x512xf32> to vector<8x512xf32>
    %65 = arith.addf %62, %64 : vector<8x512xf32>
    %cst_34 = arith.constant 0.000000e+00 : f32
    %66 = vector.broadcast %cst_34 : f32 to vector<8x512xf32>
    %67 = arith.maximumf %65, %66 : vector<8x512xf32>
    %68 = arith.truncf %67 : vector<8x512xf32> to vector<8x512xbf16>
    %c0_35 = arith.constant 0 : index
    %c0_36 = arith.constant 0 : index
    %69 = vector.load %arg11[%c0_35, %c0_36] : memref<512x256xbf16, #tpu.memory_space<vmem>>, vector<512x256xbf16>
    %cst_37 = arith.constant dense<0.000000e+00> : vector<8x256xf32>
    %70 = tpu.matmul %68, %69, %cst_37 {dimension_numbers = #tpu.dot_dimension_numbers<[1], [0], [0], [1], [0, 0, 1, 1], [], []>} : vector<8x512xbf16>, vector<512x256xbf16>, vector<8x256xf32> -> vector<8x256xf32>
    %c0_38 = arith.constant 0 : index
    %c2432 = arith.constant 2432 : index
    %71 = vector.load %arg3[%c0_38, %c2432] : memref<1x2816xf32, #tpu.memory_space<vmem>>, vector<1x256xf32>
    %72 = vector.broadcast %71 : vector<1x256xf32> to vector<8x256xf32>
    %73 = arith.addf %70, %72 : vector<8x256xf32>
    %cst_39 = arith.constant 0.000000e+00 : f32
    %74 = vector.broadcast %cst_39 : f32 to vector<8x256xf32>
    %75 = arith.maximumf %73, %74 : vector<8x256xf32>
    %76 = arith.truncf %75 : vector<8x256xf32> to vector<8x256xbf16>
    %c0_40 = arith.constant 0 : index
    %c0_41 = arith.constant 0 : index
    %77 = vector.load %arg12[%c0_40, %c0_41] : memref<256x128xbf16, #tpu.memory_space<vmem>>, vector<256x128xbf16>
    %cst_42 = arith.constant dense<0.000000e+00> : vector<8x128xf32>
    %78 = tpu.matmul %76, %77, %cst_42 {dimension_numbers = #tpu.dot_dimension_numbers<[1], [0], [0], [1], [0, 0, 1, 1], [], []>} : vector<8x256xbf16>, vector<256x128xbf16>, vector<8x128xf32> -> vector<8x128xf32>
    %c0_43 = arith.constant 0 : index
    %c2688 = arith.constant 2688 : index
    %79 = vector.load %arg3[%c0_43, %c2688] : memref<1x2816xf32, #tpu.memory_space<vmem>>, vector<1x128xf32>
    %80 = vector.broadcast %79 : vector<1x128xf32> to vector<8x128xf32>
    %81 = arith.addf %78, %80 : vector<8x128xf32>
    %c0_44 = arith.constant 0 : index
    %c0_45 = arith.constant 0 : index
    %82 = vector.load %arg13[%c0_44, %c0_45] : memref<8x128xf32, #tpu.memory_space<vmem>>, vector<8x128xf32>
    tpu.vector_store %arg13[%c0_44, %c0_45], %81 {strides = array<i32>} : memref<8x128xf32, #tpu.memory_space<vmem>>, vector<8x128xf32>,
    return
  }
  func.func @transform_0(%arg0: i32) -> (i32, i32) {
    %c0_i32 = arith.constant 0 : i32
    %c0_i32_0 = arith.constant 0 : i32
    return %arg0, %c0_i32 : i32, i32
  }
  func.func @transform_1(%arg0: i32) -> (i32, i32) {
    %c0_i32 = arith.constant 0 : i32
    %c0_i32_0 = arith.constant 0 : i32
    return %arg0, %c0_i32 : i32, i32
  }
  func.func @transform_2(%arg0: i32) -> (i32, i32) {
    %c0_i32 = arith.constant 0 : i32
    %c0_i32_0 = arith.constant 0 : i32
    %c0_i32_1 = arith.constant 0 : i32
    return %c0_i32, %c0_i32_0 : i32, i32
  }
  func.func @transform_3(%arg0: i32) -> (i32, i32) {
    %c0_i32 = arith.constant 0 : i32
    %c0_i32_0 = arith.constant 0 : i32
    %c0_i32_1 = arith.constant 0 : i32
    return %c0_i32, %c0_i32_0 : i32, i32
  }
  func.func @transform_4(%arg0: i32) -> (i32, i32) {
    %c0_i32 = arith.constant 0 : i32
    %c0_i32_0 = arith.constant 0 : i32
    %c0_i32_1 = arith.constant 0 : i32
    return %c0_i32, %c0_i32_0 : i32, i32
  }
  func.func @transform_5(%arg0: i32) -> (i32, i32) {
    %c0_i32 = arith.constant 0 : i32
    %c0_i32_0 = arith.constant 0 : i32
    %c0_i32_1 = arith.constant 0 : i32
    return %c0_i32, %c0_i32_0 : i32, i32
  }
  func.func @transform_6(%arg0: i32) -> (i32, i32) {
    %c0_i32 = arith.constant 0 : i32
    %c0_i32_0 = arith.constant 0 : i32
    %c0_i32_1 = arith.constant 0 : i32
    return %c0_i32, %c0_i32_0 : i32, i32
  }
  func.func @transform_7(%arg0: i32) -> (i32, i32) {
    %c0_i32 = arith.constant 0 : i32
    %c0_i32_0 = arith.constant 0 : i32
    %c0_i32_1 = arith.constant 0 : i32
    return %c0_i32, %c0_i32_0 : i32, i32
  }
  func.func @transform_8(%arg0: i32) -> (i32, i32) {
    %c0_i32 = arith.constant 0 : i32
    %c0_i32_0 = arith.constant 0 : i32
    %c0_i32_1 = arith.constant 0 : i32
    return %c0_i32, %c0_i32_0 : i32, i32
  }
  func.func @transform_9(%arg0: i32) -> (i32, i32) {
    %c0_i32 = arith.constant 0 : i32
    %c0_i32_0 = arith.constant 0 : i32
    %c0_i32_1 = arith.constant 0 : i32
    return %c0_i32, %c0_i32_0 : i32, i32
  }
  func.func @transform_10(%arg0: i32) -> (i32, i32) {
    %c0_i32 = arith.constant 0 : i32
    %c0_i32_0 = arith.constant 0 : i32
    %c0_i32_1 = arith.constant 0 : i32
    return %c0_i32, %c0_i32_0 : i32, i32
  }
  func.func @transform_11(%arg0: i32) -> (i32, i32) {
    %c0_i32 = arith.constant 0 : i32
    %c0_i32_0 = arith.constant 0 : i32
    %c0_i32_1 = arith.constant 0 : i32
    return %c0_i32, %c0_i32_0 : i32, i32
  }
  func.func @transform_12(%arg0: i32) -> (i32, i32) {
    %c0_i32 = arith.constant 0 : i32
    %c0_i32_0 = arith.constant 0 : i32
    return %arg0, %c0_i32 : i32, i32
  }
}

</mosaic_0001>

<llo_original>
// kernel: tpu_custom_call.1
$region0: #{tpu_custom_call.1}
  #allocation0 [shape = 'u32[]', space=smem, size = 0x4, offset = 0x4, fixed_abs, tag = 'smem constant byte address 0x4 - core index']
  #allocation1 [shape = 'u32[72,128]{1,0:T(1,128)}', space=vmem, size = 0x9000, scoped, tag = 'internal scratch']
  %s0 = inlined_call_operand.vmem [shape: f32[8,1], index: 0, kind: input, shape index: {}]
  %s1 = inlined_call_operand.vmem [shape: f32[8,12], index: 1, kind: input, shape index: {}]
  %s2 = inlined_call_operand.vmem [shape: f32[1,2816], index: 2, kind: input, shape index: {}]
  %s3 = inlined_call_operand.hbm [shape: bf16[16,128], index: 3, kind: input, shape index: {}]
  %s4 = inlined_call_operand.hbm [shape: bf16[16,128], index: 4, kind: input, shape index: {}]
  %s5 = inlined_call_operand.vmem [shape: bf16[128,32], index: 5, kind: input, shape index: {}]
  %s6 = inlined_call_operand.hbm [shape: bf16[32,1024], index: 6, kind: input, shape index: {}]
  %s7 = inlined_call_operand.vmem [shape: bf16[12,1024], index: 7, kind: input, shape index: {}]
  %s8 = inlined_call_operand.hbm [shape: bf16[1024,512], index: 8, kind: input, shape index: {}]
  %s9 = inlined_call_operand.hbm [shape: bf16[512,512], index: 9, kind: input, shape index: {}]
  %s10 = inlined_call_operand.hbm [shape: bf16[512,256], index: 10, kind: input, shape index: {}]
  %s11 = inlined_call_operand.hbm [shape: bf16[256,128], index: 11, kind: input, shape index: {}]
  %s12 = inlined_call_operand.hbm [shape: f32[8,128], index: 12, kind: output, shape index: {}]
  %s13 = sld [smem:[#allocation0]]
  $region86: #{tpu_custom_call.1} parent=0
    _
  %s15 = ssub.s32 1, %s13
  %s16 = scalar_select 0, %s15, %s13
  $region1: #{tpu_custom_call.1} parent=0
    #allocation2 [shape = 'u8[4096]{0}', space=vmem, size = 0x1000, scoped, tag = 'input window, operand 3, single buffered']
    #allocation3 [shape = 's32[1]{0}', space=sflag, size = 0x4, scoped, tag = 'scoped memory for tpu_custom_call.1']
    #allocation4 [shape = 's32[1]{0}', space=sflag, size = 0x4, scoped, tag = 'scoped memory for tpu_custom_call.1']
    #allocation5 [shape = 'u8[4096]{0}', space=vmem, size = 0x1000, scoped, tag = 'input window, operand 4, single buffered']
    #allocation6 [shape = 's32[1]{0}', space=sflag, size = 0x4, scoped, tag = 'scoped memory for tpu_custom_call.1']
    #allocation7 [shape = 'u8[65536]{0}', space=vmem, size = 0x10000, scoped, tag = 'input window, operand 6, single buffered']
    #allocation8 [shape = 'u8[1048576]{0}', space=vmem, size = 0x100000, scoped, tag = 'input window, operand 8, single buffered']
    #allocation9 [shape = 's32[1]{0}', space=sflag, size = 0x4, scoped, tag = 'scoped memory for tpu_custom_call.1']
    #allocation10 [shape = 'u8[524288]{0}', space=vmem, size = 0x80000, scoped, tag = 'input window, operand 9, single buffered']
    #allocation11 [shape = 'u8[262144]{0}', space=vmem, size = 0x40000, scoped, tag = 'input window, operand 10, single buffered']
    #allocation12 [shape = 's32[1]{0}', space=sflag, size = 0x4, scoped, tag = 'scoped memory for tpu_custom_call.1']
    #allocation13 [shape = 'u8[65536]{0}', space=vmem, size = 0x10000, scoped, tag = 'input window, operand 11, single buffered']
    #allocation14 [shape = 'u8[4096]{0}', space=vmem, size = 0x1000, scoped, tag = 'output window, operand 0, single buffered']
    %17 = vsyncpa [#allocation3], 0
    %18 = vsyncpa [#allocation6], 0
    %19 = vsyncpa [#allocation9], 0
    %20 = vsyncpa [#allocation12], 0
    %21 = vsyncpa [#allocation4], 0
    // Predicated region
    $region2: #{tpu_custom_call.1} parent=1 // pred_check
      _
    $region3: #{tpu_custom_call.1} parent=1 // pred_check_branch
      %23 = sbr.rel (0) target = $region5
    $region4: #{tpu_custom_call.1} parent=1 // pred_region
      _
    $region5: #{tpu_custom_call.1} parent=1 // pred_fallthru
      _
    // Predicated region
    $region6: #{tpu_custom_call.1} parent=1 // pred_check
      _
    $region7: #{tpu_custom_call.1} parent=1 // pred_check_branch
      %25 = sbr.rel (0) target = $region9
    $region8: #{tpu_custom_call.1} parent=1 // pred_region
      _
    $region9: #{tpu_custom_call.1} parent=1 // pred_fallthru
      _
    // Predicated region
    $region10: #{tpu_custom_call.1} parent=1 // pred_check
      _
    $region11: #{tpu_custom_call.1} parent=1 // pred_check_branch
      %27 = sbr.rel (0) target = $region13
    $region12: #{tpu_custom_call.1} parent=1 // pred_region
      _
    $region13: #{tpu_custom_call.1} parent=1 // pred_fallthru
      _
    // Predicated region
    $region14: #{tpu_custom_call.1} parent=1 // pred_check
      _
    $region15: #{tpu_custom_call.1} parent=1 // pred_check_branch
      %29 = sbr.rel (0) target = $region17
    $region16: #{tpu_custom_call.1} parent=1 // pred_region
      %31 = vsyncadd [#allocation3], 0
      %s32 = sshll.u32 %s3, 4
      %s33 = int_to_ptr.hbm [resolvable:$true] %s32
      %s34 = sshll.u32 [#allocation2], 4
      %s35 = int_to_ptr.vmem [resolvable:$true] %s34
      %40 = dma.hbm_to_vmem [thread:$0]  %s33, 128, %s35, [#allocation3], 64, 64, 4
    $region17: #{tpu_custom_call.1} parent=1 // pred_fallthru
      _
    // Predicated region
    $region18: #{tpu_custom_call.1} parent=1 // pred_check
      _
    $region19: #{tpu_custom_call.1} parent=1 // pred_check_branch
      %42 = sbr.rel (0) target = $region21
    $region20: #{tpu_custom_call.1} parent=1 // pred_region
      %44 = vsyncadd [#allocation6], 0
      %s45 = sshll.u32 %s4, 4
      %s46 = int_to_ptr.hbm [resolvable:$true] %s45
      %s47 = sshll.u32 [#allocation5], 4
      %s48 = int_to_ptr.vmem [resolvable:$true] %s47
      %53 = dma.hbm_to_vmem [thread:$0]  %s46, 128, %s48, [#allocation6], 64, 64, 4
    $region21: #{tpu_custom_call.1} parent=1 // pred_fallthru
      _
    // Predicated region
    $region22: #{tpu_custom_call.1} parent=1 // pred_check
      _
    $region23: #{tpu_custom_call.1} parent=1 // pred_check_branch
      %55 = sbr.rel (0) target = $region25
    $region24: #{tpu_custom_call.1} parent=1 // pred_region
      _
    $region25: #{tpu_custom_call.1} parent=1 // pred_fallthru
      _
    // Predicated region
    $region26: #{tpu_custom_call.1} parent=1 // pred_check
      _
    $region27: #{tpu_custom_call.1} parent=1 // pred_check_branch
      %57 = sbr.rel (0) target = $region29
    $region28: #{tpu_custom_call.1} parent=1 // pred_region
      %59 = vsyncadd [#allocation6], 0
      %s60 = sshll.u32 %s6, 4
      %s61 = int_to_ptr.hbm [resolvable:$true] %s60
      %s62 = sshll.u32 [#allocation7], 4
      %s63 = int_to_ptr.vmem [resolvable:$true] %s62
      %68 = dma.hbm_to_vmem [thread:$0]  %s61, 2048, %s63, [#allocation6], 512, 512, 32
    $region29: #{tpu_custom_call.1} parent=1 // pred_fallthru
      _
    // Predicated region
    $region30: #{tpu_custom_call.1} parent=1 // pred_check
      _
    $region31: #{tpu_custom_call.1} parent=1 // pred_check_branch
      %70 = sbr.rel (0) target = $region33
    $region32: #{tpu_custom_call.1} parent=1 // pred_region
      _
    $region33: #{tpu_custom_call.1} parent=1 // pred_fallthru
      _
    // Predicated region
    $region34: #{tpu_custom_call.1} parent=1 // pred_check
      _
    $region35: #{tpu_custom_call.1} parent=1 // pred_check_branch
      %72 = sbr.rel (0) target = $region37
    $region36: #{tpu_custom_call.1} parent=1 // pred_region
      %74 = vsyncadd [#allocation9], 0
      %s75 = sshll.u32 %s8, 4
      %s76 = int_to_ptr.hbm [resolvable:$true] %s75
      %s77 = sshll.u32 [#allocation8], 4
      %s78 = int_to_ptr.vmem [resolvable:$true] %s77
      %83 = dma.hbm_to_vmem [thread:$0]  %s76, 32768, %s78, [#allocation9], 256, 256, 16
    $region37: #{tpu_custom_call.1} parent=1 // pred_fallthru
      _
    // Predicated region
    $region38: #{tpu_custom_call.1} parent=1 // pred_check
      _
    $region39: #{tpu_custom_call.1} parent=1 // pred_check_branch
      %85 = sbr.rel (0) target = $region41
    $region40: #{tpu_custom_call.1} parent=1 // pred_region
      %87 = vsyncadd [#allocation9], 0
      %s88 = sshll.u32 %s9, 4
      %s89 = int_to_ptr.hbm [resolvable:$true] %s88
      %s90 = sshll.u32 [#allocation10], 4
      %s91 = int_to_ptr.vmem [resolvable:$true] %s90
      %96 = dma.hbm_to_vmem [thread:$0]  %s89, 16384, %s91, [#allocation9], 256, 256, 16
    $region41: #{tpu_custom_call.1} parent=1 // pred_fallthru
      _
    // Predicated region
    $region42: #{tpu_custom_call.1} parent=1 // pred_check
      _
    $region43: #{tpu_custom_call.1} parent=1 // pred_check_branch
      %98 = sbr.rel (0) target = $region45
    $region44: #{tpu_custom_call.1} parent=1 // pred_region
      %100 = vsyncadd [#allocation12], 0
      %s101 = sshll.u32 %s10, 4
      %s102 = int_to_ptr.hbm [resolvable:$true] %s101
      %s103 = sshll.u32 [#allocation11], 4
      %s104 = int_to_ptr.vmem [resolvable:$true] %s103
      %109 = dma.hbm_to_vmem [thread:$0]  %s102, 8192, %s104, [#allocation12], 128, 128, 8
    $region45: #{tpu_custom_call.1} parent=1 // pred_fallthru
      _
    // Predicated region
    $region46: #{tpu_custom_call.1} parent=1 // pred_check
      _
    $region47: #{tpu_custom_call.1} parent=1 // pred_check_branch
      %111 = sbr.rel (0) target = $region49
    $region48: #{tpu_custom_call.1} parent=1 // pred_region
      %113 = vsyncadd [#allocation12], 0
      %s114 = sshll.u32 %s11, 4
      %s115 = int_to_ptr.hbm [resolvable:$true] %s114
      %s116 = sshll.u32 [#allocation13], 4
      %s117 = int_to_ptr.vmem [resolvable:$true] %s116
      %122 = dma.hbm_to_vmem [thread:$0]  %s115, 2048, %s117, [#allocation12], 64, 64, 4
    $region49: #{tpu_custom_call.1} parent=1 // pred_fallthru
      _
    // Predicated region
    $region50: #{tpu_custom_call.1} parent=1 // pred_check
      _
    $region51: #{tpu_custom_call.1} parent=1 // pred_check_branch
      %124 = sbr.rel (0) target = $region53
    $region52: #{tpu_custom_call.1} parent=1 // pred_region
      %126 = dma.done [#allocation3], 128
    $region53: #{tpu_custom_call.1} parent=1 // pred_fallthru
      _
    // Predicated region
    $region54: #{tpu_custom_call.1} parent=1 // pred_check
      _
    $region55: #{tpu_custom_call.1} parent=1 // pred_check_branch
      %128 = sbr.rel (0) target = $region57
    $region56: #{tpu_custom_call.1} parent=1 // pred_region
      %130 = dma.done [#allocation6], 128
    $region57: #{tpu_custom_call.1} parent=1 // pred_fallthru
      _
    // Predicated region
    $region58: #{tpu_custom_call.1} parent=1 // pred_check
      _
    $region59: #{tpu_custom_call.1} parent=1 // pred_check_branch
      %132 = sbr.rel (0) target = $region61
    $region60: #{tpu_custom_call.1} parent=1 // pred_region
      %134 = dma.done [#allocation6], 2048
    $region61: #{tpu_custom_call.1} parent=1 // pred_fallthru
      _
    // Predicated region
    $region62: #{tpu_custom_call.1} parent=1 // pred_check
      _
    $region63: #{tpu_custom_call.1} parent=1 // pred_check_branch
      %136 = sbr.rel (0) target = $region65
    $region64: #{tpu_custom_call.1} parent=1 // pred_region
      %138 = dma.done [#allocation9], 32768
    $region65: #{tpu_custom_call.1} parent=1 // pred_fallthru
      _
    // Predicated region
    $region66: #{tpu_custom_call.1} parent=1 // pred_check
      _
    $region67: #{tpu_custom_call.1} parent=1 // pred_check_branch
      %140 = sbr.rel (0) target = $region69
    $region68: #{tpu_custom_call.1} parent=1 // pred_region
      %142 = dma.done [#allocation9], 16384
    $region69: #{tpu_custom_call.1} parent=1 // pred_fallthru
      _
    // Predicated region
    $region70: #{tpu_custom_call.1} parent=1 // pred_check
      _
    $region71: #{tpu_custom_call.1} parent=1 // pred_check_branch
      %144 = sbr.rel (0) target = $region73
    $region72: #{tpu_custom_call.1} parent=1 // pred_region
      %146 = dma.done [#allocation12], 8192
    $region73: #{tpu_custom_call.1} parent=1 // pred_fallthru
      _
    // Predicated region
    $region74: #{tpu_custom_call.1} parent=1 // pred_check
      _
    $region75: #{tpu_custom_call.1} parent=1 // pred_check_branch
      %148 = sbr.rel (0) target = $region77
    $region76: #{tpu_custom_call.1} parent=1 // pred_region
      %150 = dma.done [#allocation12], 2048
    $region77: #{tpu_custom_call.1} parent=1 // pred_fallthru
      _
    %v152 = vld [vmem:[%s0] sm:$0xff]
    %v153 = vld [vmem:[%s2] sm:$0x1]
    %155 = vset.pattern.permute.xlu0 0
    %156 = vperm.xlu0 %155, %v152
    %v157 = vpop.permute.xlu0 %156
    %v160 = vperm.slane %v153, 0
    %v162 = vmul.f32 %v157, %v160
    %v163 = vand.u32 2147483647, %v162
    %vm164 = vcmp.le.f32.partialorder %v163, 0.7853982
    %vm165 = vcmp.lt.s32.totalorder %v162, 0
    %v166 = vand.u32 %v162, 2139095040
    %v167 = vshrl.u32 %v166, 23
    %v168 = vsub.s32 %v167, 127
    %v169 = vand.u32 2147483647, %v162
    %v170 = vand.u32 %v169, 8388607
    %v171 = vor.u32 %v170, 8388608
    %v172 = vsub.s32 0, %v171
    %v173 = vadd.s32 %v168, 1
    %vm174 = vcmp.gt.s32.totalorder %v173, 0
    %v175 = vsel %vm174, %v173, 0
    %v176 = vshrl.u32 %v175, 5
    %v177 = vand.u32 %v175, 31
    %v178 = vsub.s32 32, %v177
    %v179 = vshrl.u32 683565275, %v178
    %v180 = vshll.u32 683565275, %v177
    %v181 = vshrl.u32 2475754826, %v178
    %v182 = vor.u32 %v180, %v181
    %v183 = vshll.u32 2475754826, %v177
    %v184 = vshrl.u32 2131351028, %v178
    %v185 = vor.u32 %v183, %v184
    %v186 = vshll.u32 2131351028, %v177
    %v187 = vshrl.u32 2102212464, %v178
    %v188 = vor.u32 %v186, %v187
    %v189 = vshll.u32 2102212464, %v177
    %v190 = vshrl.u32 920167782, %v178
    %v191 = vor.u32 %v189, %v190
    %v192 = vshll.u32 920167782, %v177
    %v193 = vshrl.u32 1326507024, %v178
    %v194 = vor.u32 %v192, %v193
    %vm195 = vcmp.lt.s32.totalorder %v176, 1
    %vm196 = vcmp.lt.s32.totalorder %v176, 2
    %vm197 = vcmp.lt.s32.totalorder %v176, 3
    %vm198 = vcmp.lt.s32.totalorder %v176, 4
    %v199 = vsel %vm195, %v179, %v182
    %v200 = vsel %vm198, %v188, 2102212464
    %v201 = vsel %vm197, %v185, %v200
    %v202 = vsel %vm196, %v199, %v201
    %v203 = vsel %vm195, %v182, %v185
    %v204 = vsel %vm198, %v191, 920167782
    %v205 = vsel %vm197, %v188, %v204
    %v206 = vsel %vm196, %v203, %v205
    %v207 = vsel %vm195, %v185, %v188
    %v208 = vsel %vm198, %v194, 1326507024
    %v209 = vsel %vm197, %v191, %v208
    %v210 = vsel %vm196, %v207, %v209
    %v211 = vshll.u32 %v171, 8
    %v212 = vand.u32 %v211, 65535
    %v213 = vshrl.u32 %v211, 16
    %v214 = vand.u32 %v210, 65535
    %v215 = vshrl.u32 %v210, 16
    %v216 = vmul.u32 %v212, %v214
    %v217 = vmul.u32 %v212, %v215
    %v218 = vmul.u32 %v213, %v214
    %v219 = vmul.u32 %v213, %v215
    %v220 = vshll.u32 %v217, 16
    %v221 = vshrl.u32 %v217, 16
    %v222 = vshll.u32 %v218, 16
    %v223 = vshrl.u32 %v218, 16
    %vm224 = vc.u32 %v216, %v220
    %v225 = vsel %vm224, 1, 0
    %v226 = vadd.s32 %v216, %v220
    %v227 = vadd.s32 %v219, %v225
    %vm228 = vc.u32 %v226, %v222
    %v229 = vsel %vm228, 1, 0
    %v230 = vadd.s32 %v226, %v222
    %v231 = vadd.s32 %v227, %v229
    %v232 = vadd.s32 %v231, %v221
    %v233 = vadd.s32 %v232, %v223
    %v234 = vand.u32 %v211, 65535
    %v235 = vshrl.u32 %v211, 16
    %v236 = vand.u32 %v206, 65535
    %v237 = vshrl.u32 %v206, 16
    %v238 = vmul.u32 %v234, %v236
    %v239 = vmul.u32 %v234, %v237
    %v240 = vmul.u32 %v235, %v236
    %v241 = vmul.u32 %v235, %v237
    %v242 = vshll.u32 %v239, 16
    %v243 = vshrl.u32 %v239, 16
    %v244 = vshll.u32 %v240, 16
    %v245 = vshrl.u32 %v240, 16
    %vm246 = vc.u32 %v238, %v242
    %v247 = vsel %vm246, 1, 0
    %v248 = vadd.s32 %v238, %v242
    %v249 = vadd.s32 %v241, %v247
    %vm250 = vc.u32 %v248, %v244
    %v251 = vsel %vm250, 1, 0
    %v252 = vadd.s32 %v248, %v244
    %v253 = vadd.s32 %v249, %v251
    %v254 = vadd.s32 %v253, %v243
    %v255 = vadd.s32 %v254, %v245
    %v256 = vmul.u32 %v211, %v202
    %v257 = vadd.s32 %v233, %v252
    %vm258 = vc.u32 %v233, %v252
    %v259 = vadd.s32 %v255, 1
    %v260 = vsel %vm258, %v259, %v255
    %v261 = vadd.s32 %v256, %v260
    %v262 = vadd.s32 %v261, 536870912
    %v263 = vshrl.u32 %v262, 30
    %v264 = vshll.u32 %v263, 30
    %v265 = vsub.s32 %v261, %v264
    %vm266 = vcmp.lt.s32.totalorder %v265, 0
    %v267 = vsub.s32 0, %v265
    %v268 = vsel %vm266, %v267, %v265
    %v269 = vclz %v268
    %v270 = vsub.s32 %v269, 2
    %vm271 = vcmp.gt.s32.totalorder 0, %v270
    %v272 = vsel %vm271, 0, %v270
    %v273 = vsub.s32 32, %v272
    %v274 = vshll.u32 %v265, %v272
    %v275 = vshrl.u32 %v257, %v273
    %v276 = vor.u32 %v274, %v275
    %v277 = vsub.s32 4294967266, %v272
    %v278 = vadd.s32 %v277, 127
    %v279 = vshll.u32 %v278, 23
    %v280 = vor.u32 4788187, %v279
    %v281 = vand.u32 2147483647, %v280
    %v283 = vcvt.s32.f32 %v276
    %v284 = vmul.f32 %v283, %v281
    %v285 = vxor.u32 %v284, 2147483648
    %v286 = vsel %vm165, %v285, %v284
    %v287 = vsub.s32 4, %v263
    %v288 = vsel %vm165, %v287, %v263
    %v289 = vsel %vm164, %v162, %v286
    %v290 = vsel %vm164, 0, %v288
    %v291 = vmul.f32 %v289, %v289
    %v292 = vmul.f32 %v291, -0.001358992
    %v293 = vadd.f32 %v292, 0.041655596
    %v294 = vmul.f32 %v291, %v293
    %v295 = vadd.f32 %v294, -0.4999988
    %v296 = vmul.f32 %v291, %v295
    %v297 = vadd.f32 1.0, %v296
    %v298 = vmul.f32 %v289, %v289
    %v299 = vmul.f32 %v298, -0.00019511016
    %v300 = vadd.f32 %v299, 0.008332121
    %v301 = vmul.f32 %v298, %v300
    %v302 = vadd.f32 %v301, -0.16666654
    %v303 = vmul.f32 %v298, %v302
    %v304 = vadd.f32 %v303, 1.0
    %v305 = vmul.f32 %v304, %v289
    %vm306 = vweird.f32 %v162
    %v307 = vadd.s32 %v290, 3
    %v308 = vand.u32 %v307, 3
    %vm309 = vcmp.lt.s32.totalorder %v308, 2
    %vm310 = vcmp.eq.s32.totalorder %v308, 0
    %v311 = vxor.u32 %v305, 2147483648
    %v312 = vsel %vm310, %v297, %v311
    %vm313 = vcmp.eq.s32.totalorder %v308, 2
    %v314 = vxor.u32 %v297, 2147483648
    %v315 = vsel %vm313, %v314, %v305
    %v316 = vsel %vm309, %v312, %v315
    %v317 = vsel %vm306, nan, %v316
    %v318 = vpack.c.bf16 %v317, %v317
    %v319 = vand.u32 2147483647, %v162
    %vm320 = vcmp.le.f32.partialorder %v319, 0.7853982
    %vm321 = vcmp.lt.s32.totalorder %v162, 0
    %v322 = vand.u32 %v162, 2139095040
    %v323 = vshrl.u32 %v322, 23
    %v324 = vsub.s32 %v323, 127
    %v325 = vand.u32 2147483647, %v162
    %v326 = vand.u32 %v325, 8388607
    %v327 = vor.u32 %v326, 8388608
    %v328 = vsub.s32 0, %v327
    %v329 = vadd.s32 %v324, 1
    %vm330 = vcmp.gt.s32.totalorder %v329, 0
    %v331 = vsel %vm330, %v329, 0
    %v332 = vshrl.u32 %v331, 5
    %v333 = vand.u32 %v331, 31
    %v334 = vsub.s32 32, %v333
    %v335 = vshrl.u32 683565275, %v334
    %v336 = vshll.u32 683565275, %v333
    %v337 = vshrl.u32 2475754826, %v334
    %v338 = vor.u32 %v336, %v337
    %v339 = vshll.u32 2475754826, %v333
    %v340 = vshrl.u32 2131351028, %v334
    %v341 = vor.u32 %v339, %v340
    %v342 = vshll.u32 2131351028, %v333
    %v343 = vshrl.u32 2102212464, %v334
    %v344 = vor.u32 %v342, %v343
    %v345 = vshll.u32 2102212464, %v333
    %v346 = vshrl.u32 920167782, %v334
    %v347 = vor.u32 %v345, %v346
    %v348 = vshll.u32 920167782, %v333
    %v349 = vshrl.u32 1326507024, %v334
    %v350 = vor.u32 %v348, %v349
    %vm351 = vcmp.lt.s32.totalorder %v332, 1
    %vm352 = vcmp.lt.s32.totalorder %v332, 2
    %vm353 = vcmp.lt.s32.totalorder %v332, 3
    %vm354 = vcmp.lt.s32.totalorder %v332, 4
    %v355 = vsel %vm351, %v335, %v338
    %v356 = vsel %vm354, %v344, 2102212464
    %v357 = vsel %vm353, %v341, %v356
    %v358 = vsel %vm352, %v355, %v357
    %v359 = vsel %vm351, %v338, %v341
    %v360 = vsel %vm354, %v347, 920167782
    %v361 = vsel %vm353, %v344, %v360
    %v362 = vsel %vm352, %v359, %v361
    %v363 = vsel %vm351, %v341, %v344
    %v364 = vsel %vm354, %v350, 1326507024
    %v365 = vsel %vm353, %v347, %v364
    %v366 = vsel %vm352, %v363, %v365
    %v367 = vshll.u32 %v327, 8
    %v368 = vand.u32 %v367, 65535
    %v369 = vshrl.u32 %v367, 16
    %v370 = vand.u32 %v366, 65535
    %v371 = vshrl.u32 %v366, 16
    %v372 = vmul.u32 %v368, %v370
    %v373 = vmul.u32 %v368, %v371
    %v374 = vmul.u32 %v369, %v370
    %v375 = vmul.u32 %v369, %v371
    %v376 = vshll.u32 %v373, 16
    %v377 = vshrl.u32 %v373, 16
    %v378 = vshll.u32 %v374, 16
    %v379 = vshrl.u32 %v374, 16
    %vm380 = vc.u32 %v372, %v376
    %v381 = vsel %vm380, 1, 0
    %v382 = vadd.s32 %v372, %v376
    %v383 = vadd.s32 %v375, %v381
    %vm384 = vc.u32 %v382, %v378
    %v385 = vsel %vm384, 1, 0
    %v386 = vadd.s32 %v382, %v378
    %v387 = vadd.s32 %v383, %v385
    %v388 = vadd.s32 %v387, %v377
    %v389 = vadd.s32 %v388, %v379
    %v390 = vand.u32 %v367, 65535
    %v391 = vshrl.u32 %v367, 16
    %v392 = vand.u32 %v362, 65535
    %v393 = vshrl.u32 %v362, 16
    %v394 = vmul.u32 %v390, %v392
    %v395 = vmul.u32 %v390, %v393
    %v396 = vmul.u32 %v391, %v392
    %v397 = vmul.u32 %v391, %v393
    %v398 = vshll.u32 %v395, 16
    %v399 = vshrl.u32 %v395, 16
    %v400 = vshll.u32 %v396, 16
    %v401 = vshrl.u32 %v396, 16
    %vm402 = vc.u32 %v394, %v398
    %v403 = vsel %vm402, 1, 0
    %v404 = vadd.s32 %v394, %v398
    %v405 = vadd.s32 %v397, %v403
    %vm406 = vc.u32 %v404, %v400
    %v407 = vsel %vm406, 1, 0
    %v408 = vadd.s32 %v404, %v400
    %v409 = vadd.s32 %v405, %v407
    %v410 = vadd.s32 %v409, %v399
    %v411 = vadd.s32 %v410, %v401
    %v412 = vmul.u32 %v367, %v358
    %v413 = vadd.s32 %v389, %v408
    %vm414 = vc.u32 %v389, %v408
    %v415 = vadd.s32 %v411, 1
    %v416 = vsel %vm414, %v415, %v411
    %v417 = vadd.s32 %v412, %v416
    %v418 = vadd.s32 %v417, 536870912
    %v419 = vshrl.u32 %v418, 30
    %v420 = vshll.u32 %v419, 30
    %v421 = vsub.s32 %v417, %v420
    %vm422 = vcmp.lt.s32.totalorder %v421, 0
    %v423 = vsub.s32 0, %v421
    %v424 = vsel %vm422, %v423, %v421
    %v425 = vclz %v424
    %v426 = vsub.s32 %v425, 2
    %vm427 = vcmp.gt.s32.totalorder 0, %v426
    %v428 = vsel %vm427, 0, %v426
    %v429 = vsub.s32 32, %v428
    %v430 = vshll.u32 %v421, %v428
    %v431 = vshrl.u32 %v413, %v429
    %v432 = vor.u32 %v430, %v431
    %v433 = vsub.s32 4294967266, %v428
    %v434 = vadd.s32 %v433, 127
    %v435 = vshll.u32 %v434, 23
    %v436 = vor.u32 4788187, %v435
    %v437 = vand.u32 2147483647, %v436
    %v439 = vcvt.s32.f32 %v432
    %v440 = vmul.f32 %v439, %v437
    %v441 = vxor.u32 %v440, 2147483648
    %v442 = vsel %vm321, %v441, %v440
    %v443 = vsub.s32 4, %v419
    %v444 = vsel %vm321, %v443, %v419
    %v445 = vsel %vm320, %v162, %v442
    %v446 = vsel %vm320, 0, %v444
    %v447 = vmul.f32 %v445, %v445
    %v448 = vmul.f32 %v447, -0.001358992
    %v449 = vadd.f32 %v448, 0.041655596
    %v450 = vmul.f32 %v447, %v449
    %v451 = vadd.f32 %v450, -0.4999988
    %v452 = vmul.f32 %v447, %v451
    %v453 = vadd.f32 1.0, %v452
    %v454 = vmul.f32 %v445, %v445
    %v455 = vmul.f32 %v454, -0.00019511016
    %v456 = vadd.f32 %v455, 0.008332121
    %v457 = vmul.f32 %v454, %v456
    %v458 = vadd.f32 %v457, -0.16666654
    %v459 = vmul.f32 %v454, %v458
    %v460 = vadd.f32 %v459, 1.0
    %v461 = vmul.f32 %v460, %v445
    %vm462 = vweird.f32 %v162
    %v463 = vand.u32 %v446, 3
    %vm464 = vcmp.lt.s32.totalorder %v463, 2
    %vm465 = vcmp.eq.s32.totalorder %v463, 0
    %v466 = vxor.u32 %v461, 2147483648
    %v467 = vsel %vm465, %v453, %v466
    %vm468 = vcmp.eq.s32.totalorder %v463, 2
    %v469 = vxor.u32 %v453, 2147483648
    %v470 = vsel %vm468, %v469, %v461
    %v471 = vsel %vm464, %v467, %v470
    %v472 = vsel %vm462, nan, %v471
    %v473 = vpack.c.bf16 %v472, %v472
    %v474 = vld [vmem:[#allocation2] sm:$0xf]
    %v475 = vld [vmem:[#allocation2 + $0x4] sm:$0xf]
    %v476 = vld [vmem:[#allocation5] sm:$0xf]
    %v477 = vld [vmem:[#allocation5 + $0x4] sm:$0xf]
    %v480 = vunpack.c.l.b16 %v476
    %v481 = vunpack.c.l.b16 %v477
    %v482 = vpack.c.b16 %v481, %v480
    %vm484 = vcmask 130048
    %v486 = vsel %vm484, %v473, 0
    %488 = vmatpush.bf16.msra.mxu0 0
    %489 = vmatpush.bf16.msra.mxu0 0
    %490 = vmatpush.bf16.msra.mxu0 0
    %491 = vmatpush.bf16.msra.mxu0 0
    %492 = vmatpush.bf16.msra.mxu0 0
    %493 = vmatpush.bf16.msra.mxu0 0
    %494 = vmatpush.bf16.msra.mxu0 0
    %495 = vmatpush.bf16.msra.mxu0 %v482
    %496 = vmatmul.bf16.gmra.mxu0 %v486
    %v497 = vpop.f32.mrf.mxu0
    %v498 = vadd.f32 0.0, %v497
    %v499 = vpop.f32.mrf.mxu0
    %500 = vdwg.mxu0
    %v503 = vunpack.c.l.b16 %v474
    %v504 = vunpack.c.l.b16 %v475
    %v505 = vpack.c.b16 %v504, %v503
    %v508 = vsel %vm484, %v318, 0
    %510 = vmatpush.bf16.msra.mxu0 0
    %511 = vmatpush.bf16.msra.mxu0 0
    %512 = vmatpush.bf16.msra.mxu0 0
    %513 = vmatpush.bf16.msra.mxu0 0
    %514 = vmatpush.bf16.msra.mxu0 0
    %515 = vmatpush.bf16.msra.mxu0 0
    %516 = vmatpush.bf16.msra.mxu0 0
    %517 = vmatpush.bf16.msra.mxu0 %v505
    %518 = vmatmul.bf16.gmra.mxu0 %v508
    %v519 = vpop.f32.mrf.mxu0
    %v520 = vadd.f32 %v498, %v519
    %v521 = vpop.f32.mrf.mxu0
    %522 = vdwg.mxu0
    %v523 = vld [vmem:[%s2 + $0x1] sm:$0x1]
    %v525 = vperm.slane %v523, 0
    %v527 = vadd.f32 %v520, %v525
    %v528 = vmax.f32 %v527, 0.0
    %vm529 = vcmp.ne.f32.partialorder %v527, %v527
    %v530 = vadd.f32 %v527, 0.0
    %v531 = vand.u32 2147483647, %v527
    %v532 = vsub.f32 0.0, %v531
    %v533 = vmul.f32 %v532, 1.442695
    %v534 = vpow.pop %v533
    %v535 = vadd.f32 %v534, 1.0
    %v536 = vlog2.pop %v535
    %v537 = vmul.f32 %v536, 0.6931472
    %v538 = vmul.f32 -0.5, %v534
    %v539 = vadd.f32 %v538, 1.0
    %v540 = vmul.f32 %v539, %v534
    %v541 = vand.u32 2147483647, %v534
    %vm542 = vcmp.lt.f32.partialorder %v541, 0.0004427343
    %v543 = vsel %vm542, %v540, %v537
    %v544 = vadd.f32 %v528, %v543
    %v545 = vsel %vm529, %v530, %v544
    %v546 = vtanh.pop %v545
    %v547 = vmul.f32 %v527, %v546
    %v548 = vpack.c.bf16 %v547, %v547
    %v549 = vld [vmem:[%s5] sm:$0xf]
    %v550 = vld [vmem:[%s5 + $0x4] sm:$0xf]
    %v551 = vld [vmem:[%s5 + $0x8] sm:$0xf]
    %v552 = vld [vmem:[%s5 + $0xc] sm:$0xf]
    %v553 = vld [vmem:[%s5 + $0x10] sm:$0xf]
    %v554 = vld [vmem:[%s5 + $0x14] sm:$0xf]
    %v555 = vld [vmem:[%s5 + $0x18] sm:$0xf]
    %v556 = vld [vmem:[%s5 + $0x1c] sm:$0xf]
    %v557 = vld [vmem:[%s5 + $0x20] sm:$0xf]
    %v558 = vld [vmem:[%s5 + $0x24] sm:$0xf]
    %v559 = vld [vmem:[%s5 + $0x28] sm:$0xf]
    %v560 = vld [vmem:[%s5 + $0x2c] sm:$0xf]
    %v561 = vld [vmem:[%s5 + $0x30] sm:$0xf]
    %v562 = vld [vmem:[%s5 + $0x34] sm:$0xf]
    %v563 = vld [vmem:[%s5 + $0x38] sm:$0xf]
    %v564 = vld [vmem:[%s5 + $0x3c] sm:$0xf]
    %v565 = vld [vmem:[%s2 + $0x2] sm:$0x1]
    %v567 = vperm.slane %v565, 0
    %v585 = vunpack.c.l.b16 %v549
    %v586 = vunpack.c.l.b16 %v550
    %v587 = vunpack.c.l.b16 %v551
    %v588 = vunpack.c.l.b16 %v552
    %v589 = vunpack.c.l.b16 %v553
    %v590 = vunpack.c.l.b16 %v554
    %v591 = vunpack.c.l.b16 %v555
    %v592 = vunpack.c.l.b16 %v556
    %v593 = vunpack.c.l.b16 %v557
    %v594 = vunpack.c.l.b16 %v558
    %v595 = vunpack.c.l.b16 %v559
    %v596 = vunpack.c.l.b16 %v560
    %v597 = vunpack.c.l.b16 %v561
    %v598 = vunpack.c.l.b16 %v562
    %v599 = vunpack.c.l.b16 %v563
    %v600 = vunpack.c.l.b16 %v564
    %v601 = vpack.c.b16 %v586, %v585
    %v602 = vpack.c.b16 %v588, %v587
    %v603 = vpack.c.b16 %v590, %v589
    %v604 = vpack.c.b16 %v592, %v591
    %v605 = vpack.c.b16 %v594, %v593
    %v606 = vpack.c.b16 %v596, %v595
    %v607 = vpack.c.b16 %v598, %v597
    %v608 = vpack.c.b16 %v600, %v599
    %617 = vmatpush.bf16.msra.mxu0 %v608
    %618 = vmatpush.bf16.msra.mxu0 %v607
    %619 = vmatpush.bf16.msra.mxu0 %v606
    %620 = vmatpush.bf16.msra.mxu0 %v605
    %621 = vmatpush.bf16.msra.mxu0 %v604
    %622 = vmatpush.bf16.msra.mxu0 %v603
    %623 = vmatpush.bf16.msra.mxu0 %v602
    %624 = vmatpush.bf16.msra.mxu0 %v601
    %625 = vmatmul.bf16.gmra.mxu0 %v548
    %v626 = vpop.f32.mrf.mxu0
    %v627 = vadd.f32 %v567, %v626
    %v628 = vpop.f32.mrf.mxu0
    %629 = vdwg.mxu0
    %v630 = vpack.c.bf16 %v627, %v627
    %v631 = vld [vmem:[#allocation7] sm:$0xff]
    %v632 = vld [vmem:[#allocation7 + $0x8] sm:$0xff]
    %v633 = vld [vmem:[#allocation7 + $0x10] sm:$0xff]
    %v634 = vld [vmem:[#allocation7 + $0x18] sm:$0xff]
    %v635 = vld [vmem:[#allocation7 + $0x20] sm:$0xff]
    %v636 = vld [vmem:[#allocation7 + $0x28] sm:$0xff]
    %v637 = vld [vmem:[#allocation7 + $0x30] sm:$0xff]
    %v638 = vld [vmem:[#allocation7 + $0x38] sm:$0xff]
    %v639 = vld [vmem:[#allocation7 + $0x40] sm:$0xff]
    %v640 = vld [vmem:[#allocation7 + $0x48] sm:$0xff]
    %v641 = vld [vmem:[#allocation7 + $0x50] sm:$0xff]
    %v642 = vld [vmem:[#allocation7 + $0x58] sm:$0xff]
    %v643 = vld [vmem:[#allocation7 + $0x60] sm:$0xff]
    %v644 = vld [vmem:[#allocation7 + $0x68] sm:$0xff]
    %v645 = vld [vmem:[#allocation7 + $0x70] sm:$0xff]
    %v646 = vld [vmem:[#allocation7 + $0x78] sm:$0xff]
    %v647 = vld [vmem:[%s1] sm:$0xff]
    %v648 = vpack.c.bf16 %v647, %v647
    %v649 = vld [vmem:[%s7] sm:$0xff]
    %v650 = vld [vmem:[%s7 + $0x8] sm:$0xff]
    %v651 = vld [vmem:[%s7 + $0x10] sm:$0xff]
    %v652 = vld [vmem:[%s7 + $0x18] sm:$0xff]
    %v653 = vld [vmem:[%s7 + $0x20] sm:$0x33]
    %v654 = vld [vmem:[%s7 + $0x28] sm:$0x33]
    %v655 = vld [vmem:[%s7 + $0x30] sm:$0x33]
    %v656 = vld [vmem:[%s7 + $0x38] sm:$0x33]
    %v665 = vunpack.c.l.b16 %v649
    %v666 = vunpack.c.h.b16 %v649
    %v667 = vunpack.c.l.b16 %v650
    %v668 = vunpack.c.h.b16 %v650
    %v669 = vunpack.c.l.b16 %v651
    %v670 = vunpack.c.h.b16 %v651
    %v671 = vunpack.c.l.b16 %v652
    %v672 = vunpack.c.h.b16 %v652
    %v673 = vunpack.c.l.b16 %v653
    %v674 = vunpack.c.h.b16 %v653
    %v675 = vunpack.c.l.b16 %v654
    %v676 = vunpack.c.h.b16 %v654
    %v677 = vunpack.c.l.b16 %v655
    %v678 = vunpack.c.h.b16 %v655
    %v679 = vunpack.c.l.b16 %v656
    %v680 = vunpack.c.h.b16 %v656
    %v681 = vpack.c.b16 %v673, %v665
    %v682 = vpack.c.b16 %v674, %v666
    %v683 = vpack.c.b16 %v675, %v667
    %v684 = vpack.c.b16 %v676, %v668
    %v685 = vpack.c.b16 %v677, %v669
    %v686 = vpack.c.b16 %v678, %v670
    %v687 = vpack.c.b16 %v679, %v671
    %v688 = vpack.c.b16 %v680, %v672
    %vm689 = vcmask 97280
    %v691 = vsel %vm689, %v648, 0
    %vm693 = vcmask 1045504
    %v695 = vsel %vm693, %v681, 0
    %v698 = vsel %vm693, %v682, 0
    %v701 = vsel %vm693, %v683, 0
    %v704 = vsel %vm693, %v684, 0
    %v707 = vsel %vm693, %v685, 0
    %v710 = vsel %vm693, %v686, 0
    %v713 = vsel %vm693, %v687, 0
    %v716 = vsel %vm693, %v688, 0
    %718 = vmatpush.bf16.msra.mxu0 0
    %719 = vmatpush.bf16.msra.mxu0 0
    %720 = vmatpush.bf16.msra.mxu0 0
    %721 = vmatpush.bf16.msra.mxu0 0
    %722 = vmatpush.bf16.msra.mxu0 0
    %723 = vmatpush.bf16.msra.mxu0 0
    %724 = vmatpush.bf16.msra.mxu0 0
    %725 = vmatpush.bf16.msra.mxu0 %v695
    %726 = vmatmul.bf16.gmra.mxu0 %v691
    %v727 = vpop.f32.mrf.mxu0
    %v728 = vadd.f32 0.0, %v727
    %v729 = vpop.f32.mrf.mxu0
    %730 = vdwg.mxu0
    %731 = vmatpush.bf16.msra.mxu0 0
    %732 = vmatpush.bf16.msra.mxu0 0
    %733 = vmatpush.bf16.msra.mxu0 0
    %734 = vmatpush.bf16.msra.mxu0 0
    %735 = vmatpush.bf16.msra.mxu0 0
    %736 = vmatpush.bf16.msra.mxu0 0
    %737 = vmatpush.bf16.msra.mxu0 0
    %738 = vmatpush.bf16.msra.mxu0 %v698
    %739 = vmatmul.bf16.gmra.mxu0 %v691
    %v740 = vpop.f32.mrf.mxu0
    %v741 = vadd.f32 0.0, %v740
    %v742 = vpop.f32.mrf.mxu0
    %743 = vdwg.mxu0
    %744 = vmatpush.bf16.msra.mxu0 0
    %745 = vmatpush.bf16.msra.mxu0 0
    %746 = vmatpush.bf16.msra.mxu0 0
    %747 = vmatpush.bf16.msra.mxu0 0
    %748 = vmatpush.bf16.msra.mxu0 0
    %749 = vmatpush.bf16.msra.mxu0 0
    %750 = vmatpush.bf16.msra.mxu0 0
    %751 = vmatpush.bf16.msra.mxu0 %v701
    %752 = vmatmul.bf16.gmra.mxu0 %v691
    %v753 = vpop.f32.mrf.mxu0
    %v754 = vadd.f32 0.0, %v753
    %v755 = vpop.f32.mrf.mxu0
    %756 = vdwg.mxu0
    %757 = vmatpush.bf16.msra.mxu0 0
    %758 = vmatpush.bf16.msra.mxu0 0
    %759 = vmatpush.bf16.msra.mxu0 0
    %760 = vmatpush.bf16.msra.mxu0 0
    %761 = vmatpush.bf16.msra.mxu0 0
    %762 = vmatpush.bf16.msra.mxu0 0
    %763 = vmatpush.bf16.msra.mxu0 0
    %764 = vmatpush.bf16.msra.mxu0 %v704
    %765 = vmatmul.bf16.gmra.mxu0 %v691
    %v766 = vpop.f32.mrf.mxu0
    %v767 = vadd.f32 0.0, %v766
    %v768 = vpop.f32.mrf.mxu0
    %769 = vdwg.mxu0
    %770 = vmatpush.bf16.msra.mxu0 0
    %771 = vmatpush.bf16.msra.mxu0 0
    %772 = vmatpush.bf16.msra.mxu0 0
    %773 = vmatpush.bf16.msra.mxu0 0
    %774 = vmatpush.bf16.msra.mxu0 0
    %775 = vmatpush.bf16.msra.mxu0 0
    %776 = vmatpush.bf16.msra.mxu0 0
    %777 = vmatpush.bf16.msra.mxu0 %v707
    %778 = vmatmul.bf16.gmra.mxu0 %v691
    %v779 = vpop.f32.mrf.mxu0
    %v780 = vadd.f32 0.0, %v779
    %v781 = vpop.f32.mrf.mxu0
    %782 = vdwg.mxu0
    %783 = vmatpush.bf16.msra.mxu0 0
    %784 = vmatpush.bf16.msra.mxu0 0
    %785 = vmatpush.bf16.msra.mxu0 0
    %786 = vmatpush.bf16.msra.mxu0 0
    %787 = vmatpush.bf16.msra.mxu0 0
    %788 = vmatpush.bf16.msra.mxu0 0
    %789 = vmatpush.bf16.msra.mxu0 0
    %790 = vmatpush.bf16.msra.mxu0 %v710
    %791 = vmatmul.bf16.gmra.mxu0 %v691
    %v792 = vpop.f32.mrf.mxu0
    %v793 = vadd.f32 0.0, %v792
    %v794 = vpop.f32.mrf.mxu0
    %795 = vdwg.mxu0
    %796 = vmatpush.bf16.msra.mxu0 0
    %797 = vmatpush.bf16.msra.mxu0 0
    %798 = vmatpush.bf16.msra.mxu0 0
    %799 = vmatpush.bf16.msra.mxu0 0
    %800 = vmatpush.bf16.msra.mxu0 0
    %801 = vmatpush.bf16.msra.mxu0 0
    %802 = vmatpush.bf16.msra.mxu0 0
    %803 = vmatpush.bf16.msra.mxu0 %v713
    %804 = vmatmul.bf16.gmra.mxu0 %v691
    %v805 = vpop.f32.mrf.mxu0
    %v806 = vadd.f32 0.0, %v805
    %v807 = vpop.f32.mrf.mxu0
    %808 = vdwg.mxu0
    %809 = vmatpush.bf16.msra.mxu0 0
    %810 = vmatpush.bf16.msra.mxu0 0
    %811 = vmatpush.bf16.msra.mxu0 0
    %812 = vmatpush.bf16.msra.mxu0 0
    %813 = vmatpush.bf16.msra.mxu0 0
    %814 = vmatpush.bf16.msra.mxu0 0
    %815 = vmatpush.bf16.msra.mxu0 0
    %816 = vmatpush.bf16.msra.mxu0 %v716
    %817 = vmatmul.bf16.gmra.mxu0 %v691
    %v818 = vpop.f32.mrf.mxu0
    %v819 = vadd.f32 0.0, %v818
    %v820 = vpop.f32.mrf.mxu0
    %821 = vdwg.mxu0
    %v838 = vunpack.c.l.b16 %v631
    %v839 = vunpack.c.h.b16 %v631
    %v840 = vunpack.c.l.b16 %v632
    %v841 = vunpack.c.h.b16 %v632
    %v842 = vunpack.c.l.b16 %v633
    %v843 = vunpack.c.h.b16 %v633
    %v844 = vunpack.c.l.b16 %v634
    %v845 = vunpack.c.h.b16 %v634
    %v846 = vunpack.c.l.b16 %v635
    %v847 = vunpack.c.h.b16 %v635
    %v848 = vunpack.c.l.b16 %v636
    %v849 = vunpack.c.h.b16 %v636
    %v850 = vunpack.c.l.b16 %v637
    %v851 = vunpack.c.h.b16 %v637
    %v852 = vunpack.c.l.b16 %v638
    %v853 = vunpack.c.h.b16 %v638
    %v854 = vunpack.c.l.b16 %v639
    %v855 = vunpack.c.h.b16 %v639
    %v856 = vunpack.c.l.b16 %v640
    %v857 = vunpack.c.h.b16 %v640
    %v858 = vunpack.c.l.b16 %v641
    %v859 = vunpack.c.h.b16 %v641
    %v860 = vunpack.c.l.b16 %v642
    %v861 = vunpack.c.h.b16 %v642
    %v862 = vunpack.c.l.b16 %v643
    %v863 = vunpack.c.h.b16 %v643
    %v864 = vunpack.c.l.b16 %v644
    %v865 = vunpack.c.h.b16 %v644
    %v866 = vunpack.c.l.b16 %v645
    %v867 = vunpack.c.h.b16 %v645
    %v868 = vunpack.c.l.b16 %v646
    %v869 = vunpack.c.h.b16 %v646
    %v870 = vpack.c.b16 %v846, %v838
    %v871 = vpack.c.b16 %v847, %v839
    %v872 = vpack.c.b16 %v848, %v840
    %v873 = vpack.c.b16 %v849, %v841
    %v874 = vpack.c.b16 %v850, %v842
    %v875 = vpack.c.b16 %v851, %v843
    %v876 = vpack.c.b16 %v852, %v844
    %v877 = vpack.c.b16 %v853, %v845
    %v878 = vpack.c.b16 %v862, %v854
    %v879 = vpack.c.b16 %v863, %v855
    %v880 = vpack.c.b16 %v864, %v856
    %v881 = vpack.c.b16 %v865, %v857
    %v882 = vpack.c.b16 %v866, %v858
    %v883 = vpack.c.b16 %v867, %v859
    %v884 = vpack.c.b16 %v868, %v860
    %v885 = vpack.c.b16 %v869, %v861
    %vm902 = vcmask 261120
    %v904 = vsel %vm902, %v630, 0
    %906 = vmatpush.bf16.msra.mxu0 0
    %907 = vmatpush.bf16.msra.mxu0 0
    %908 = vmatpush.bf16.msra.mxu0 0
    %909 = vmatpush.bf16.msra.mxu0 0
    %910 = vmatpush.bf16.msra.mxu0 0
    %911 = vmatpush.bf16.msra.mxu0 0
    %912 = vmatpush.bf16.msra.mxu0 %v878
    %913 = vmatpush.bf16.msra.mxu0 %v870
    %914 = vmatmul.bf16.gmra.mxu0 %v904
    %v915 = vpop.f32.mrf.mxu0
    %v916 = vadd.f32 %v728, %v915
    %v917 = vpop.f32.mrf.mxu0
    %918 = vdwg.mxu0
    %919 = vmatpush.bf16.msra.mxu0 0
    %920 = vmatpush.bf16.msra.mxu0 0
    %921 = vmatpush.bf16.msra.mxu0 0
    %922 = vmatpush.bf16.msra.mxu0 0
    %923 = vmatpush.bf16.msra.mxu0 0
    %924 = vmatpush.bf16.msra.mxu0 0
    %925 = vmatpush.bf16.msra.mxu0 %v879
    %926 = vmatpush.bf16.msra.mxu0 %v871
    %927 = vmatmul.bf16.gmra.mxu0 %v904
    %v928 = vpop.f32.mrf.mxu0
    %v929 = vadd.f32 %v741, %v928
    %v930 = vpop.f32.mrf.mxu0
    %931 = vdwg.mxu0
    %932 = vmatpush.bf16.msra.mxu0 0
    %933 = vmatpush.bf16.msra.mxu0 0
    %934 = vmatpush.bf16.msra.mxu0 0
    %935 = vmatpush.bf16.msra.mxu0 0
    %936 = vmatpush.bf16.msra.mxu0 0
    %937 = vmatpush.bf16.msra.mxu0 0
    %938 = vmatpush.bf16.msra.mxu0 %v880
    %939 = vmatpush.bf16.msra.mxu0 %v872
    %940 = vmatmul.bf16.gmra.mxu0 %v904
    %v941 = vpop.f32.mrf.mxu0
    %v942 = vadd.f32 %v754, %v941
    %v943 = vpop.f32.mrf.mxu0
    %944 = vdwg.mxu0
    %945 = vmatpush.bf16.msra.mxu0 0
    %946 = vmatpush.bf16.msra.mxu0 0
    %947 = vmatpush.bf16.msra.mxu0 0
    %948 = vmatpush.bf16.msra.mxu0 0
    %949 = vmatpush.bf16.msra.mxu0 0
    %950 = vmatpush.bf16.msra.mxu0 0
    %951 = vmatpush.bf16.msra.mxu0 %v881
    %952 = vmatpush.bf16.msra.mxu0 %v873
    %953 = vmatmul.bf16.gmra.mxu0 %v904
    %v954 = vpop.f32.mrf.mxu0
    %v955 = vadd.f32 %v767, %v954
    %v956 = vpop.f32.mrf.mxu0
    %957 = vdwg.mxu0
    %958 = vmatpush.bf16.msra.mxu0 0
    %959 = vmatpush.bf16.msra.mxu0 0
    %960 = vmatpush.bf16.msra.mxu0 0
    %961 = vmatpush.bf16.msra.mxu0 0
    %962 = vmatpush.bf16.msra.mxu0 0
    %963 = vmatpush.bf16.msra.mxu0 0
    %964 = vmatpush.bf16.msra.mxu0 %v882
    %965 = vmatpush.bf16.msra.mxu0 %v874
    %966 = vmatmul.bf16.gmra.mxu0 %v904
    %v967 = vpop.f32.mrf.mxu0
    %v968 = vadd.f32 %v780, %v967
    %v969 = vpop.f32.mrf.mxu0
    %970 = vdwg.mxu0
    %971 = vmatpush.bf16.msra.mxu0 0
    %972 = vmatpush.bf16.msra.mxu0 0
    %973 = vmatpush.bf16.msra.mxu0 0
    %974 = vmatpush.bf16.msra.mxu0 0
    %975 = vmatpush.bf16.msra.mxu0 0
    %976 = vmatpush.bf16.msra.mxu0 0
    %977 = vmatpush.bf16.msra.mxu0 %v883
    %978 = vmatpush.bf16.msra.mxu0 %v875
    %979 = vmatmul.bf16.gmra.mxu0 %v904
    %v980 = vpop.f32.mrf.mxu0
    %v981 = vadd.f32 %v793, %v980
    %v982 = vpop.f32.mrf.mxu0
    %983 = vdwg.mxu0
    %984 = vmatpush.bf16.msra.mxu0 0
    %985 = vmatpush.bf16.msra.mxu0 0
    %986 = vmatpush.bf16.msra.mxu0 0
    %987 = vmatpush.bf16.msra.mxu0 0
    %988 = vmatpush.bf16.msra.mxu0 0
    %989 = vmatpush.bf16.msra.mxu0 0
    %990 = vmatpush.bf16.msra.mxu0 %v884
    %991 = vmatpush.bf16.msra.mxu0 %v876
    %992 = vmatmul.bf16.gmra.mxu0 %v904
    %v993 = vpop.f32.mrf.mxu0
    %v994 = vadd.f32 %v806, %v993
    %v995 = vpop.f32.mrf.mxu0
    %996 = vdwg.mxu0
    %997 = vmatpush.bf16.msra.mxu0 0
    %998 = vmatpush.bf16.msra.mxu0 0
    %999 = vmatpush.bf16.msra.mxu0 0
    %1000 = vmatpush.bf16.msra.mxu0 0
    %1001 = vmatpush.bf16.msra.mxu0 0
    %1002 = vmatpush.bf16.msra.mxu0 0
    %1003 = vmatpush.bf16.msra.mxu0 %v885
    %1004 = vmatpush.bf16.msra.mxu0 %v877
    %1005 = vmatmul.bf16.gmra.mxu0 %v904
    %v1006 = vpop.f32.mrf.mxu0
    %v1007 = vadd.f32 %v819, %v1006
    %v1008 = vpop.f32.mrf.mxu0
    %1009 = vdwg.mxu0
    %v1010 = vld [vmem:[%s2 + $0x3] sm:$0xff]
    %v1012 = vperm.slane %v1010, 0
    %v1013 = vperm.slane %v1010, 1
    %v1014 = vperm.slane %v1010, 2
    %v1015 = vperm.slane %v1010, 3
    %v1016 = vperm.slane %v1010, 4
    %v1017 = vperm.slane %v1010, 5
    %v1018 = vperm.slane %v1010, 6
    %v1019 = vperm.slane %v1010, 7
    %v1028 = vadd.f32 %v916, %v1012
    %v1029 = vadd.f32 %v929, %v1013
    %v1030 = vadd.f32 %v942, %v1014
    %v1031 = vadd.f32 %v955, %v1015
    %v1032 = vadd.f32 %v968, %v1016
    %v1033 = vadd.f32 %v981, %v1017
    %v1034 = vadd.f32 %v994, %v1018
    %v1035 = vadd.f32 %v1007, %v1019
    %v1036 = vmax.f32 %v1028, 0.0
    %v1037 = vmax.f32 %v1029, 0.0
    %v1038 = vmax.f32 %v1030, 0.0
    %v1039 = vmax.f32 %v1031, 0.0
    %v1040 = vmax.f32 %v1032, 0.0
    %v1041 = vmax.f32 %v1033, 0.0
    %v1042 = vmax.f32 %v1034, 0.0
    %v1043 = vmax.f32 %v1035, 0.0
    %v1044 = vpack.c.bf16 %v1036, %v1036
    %v1045 = vpack.c.bf16 %v1037, %v1037
    %v1046 = vpack.c.bf16 %v1038, %v1038
    %v1047 = vpack.c.bf16 %v1039, %v1039
    %v1048 = vpack.c.bf16 %v1040, %v1040
    %v1049 = vpack.c.bf16 %v1041, %v1041
    %v1050 = vpack.c.bf16 %v1042, %v1042
    %v1051 = vpack.c.bf16 %v1043, %v1043
    %v1052 = vld [vmem:[#allocation8] sm:$0xff]
    %v1053 = vld [vmem:[#allocation8 + $0x8] sm:$0xff]
    %v1054 = vld [vmem:[#allocation8 + $0x10] sm:$0xff]
    %v1055 = vld [vmem:[#allocation8 + $0x18] sm:$0xff]
    %v1056 = vld [vmem:[#allocation8 + $0x20] sm:$0xff]
    %v1057 = vld [vmem:[#allocation8 + $0x28] sm:$0xff]
    %v1058 = vld [vmem:[#allocation8 + $0x30] sm:$0xff]
    %v1059 = vld [vmem:[#allocation8 + $0x38] sm:$0xff]
    %v1060 = vld [vmem:[#allocation8 + $0x40] sm:$0xff]
    %v1061 = vld [vmem:[#allocation8 + $0x48] sm:$0xff]
    %v1062 = vld [vmem:[#allocation8 + $0x50] sm:$0xff]
    %v1063 = vld [vmem:[#allocation8 + $0x58] sm:$0xff]
    %v1064 = vld [vmem:[#allocation8 + $0x60] sm:$0xff]
    %v1065 = vld [vmem:[#allocation8 + $0x68] sm:$0xff]
    %v1066 = vld [vmem:[#allocation8 + $0x70] sm:$0xff]
    %v1067 = vld [vmem:[#allocation8 + $0x78] sm:$0xff]
    %v1068 = vld [vmem:[#allocation8 + $0x80] sm:$0xff]
    %v1069 = vld [vmem:[#allocation8 + $0x88] sm:$0xff]
    %v1070 = vld [vmem:[#allocation8 + $0x90] sm:$0xff]
    %v1071 = vld [vmem:[#allocation8 + $0x98] sm:$0xff]
    %v1072 = vld [vmem:[#allocation8 + $0xa0] sm:$0xff]
    %v1073 = vld [vmem:[#allocation8 + $0xa8] sm:$0xff]
    %v1074 = vld [vmem:[#allocation8 + $0xb0] sm:$0xff]
    %v1075 = vld [vmem:[#allocation8 + $0xb8] sm:$0xff]
    %v1076 = vld [vmem:[#allocation8 + $0xc0] sm:$0xff]
    %v1077 = vld [vmem:[#allocation8 + $0xc8] sm:$0xff]
    %v1078 = vld [vmem:[#allocation8 + $0xd0] sm:$0xff]
    %v1079 = vld [vmem:[#allocation8 + $0xd8] sm:$0xff]
    %v1080 = vld [vmem:[#allocation8 + $0xe0] sm:$0xff]
    %v1081 = vld [vmem:[#allocation8 + $0xe8] sm:$0xff]
    %v1082 = vld [vmem:[#allocation8 + $0xf0] sm:$0xff]
    %v1083 = vld [vmem:[#allocation8 + $0xf8] sm:$0xff]
    %v1084 = vld [vmem:[#allocation8 + $0x100] sm:$0xff]
    %v1085 = vld [vmem:[#allocation8 + $0x108] sm:$0xff]
    %v1086 = vld [vmem:[#allocation8 + $0x110] sm:$0xff]
    %v1087 = vld [vmem:[#allocation8 + $0x118] sm:$0xff]
    %v1088 = vld [vmem:[#allocation8 + $0x120] sm:$0xff]
    %v1089 = vld [vmem:[#allocation8 + $0x128] sm:$0xff]
    %v1090 = vld [vmem:[#allocation8 + $0x130] sm:$0xff]
    %v1091 = vld [vmem:[#allocation8 + $0x138] sm:$0xff]
    %v1092 = vld [vmem:[#allocation8 + $0x140] sm:$0xff]
    %v1093 = vld [vmem:[#allocation8 + $0x148] sm:$0xff]
    %v1094 = vld [vmem:[#allocation8 + $0x150] sm:$0xff]
    %v1095 = vld [vmem:[#allocation8 + $0x158] sm:$0xff]
    %v1096 = vld [vmem:[#allocation8 + $0x160] sm:$0xff]
    %v1097 = vld [vmem:[#allocation8 + $0x168] sm:$0xff]
    %v1098 = vld [vmem:[#allocation8 + $0x170] sm:$0xff]
    %v1099 = vld [vmem:[#allocation8 + $0x178] sm:$0xff]
    %v1100 = vld [vmem:[#allocation8 + $0x180] sm:$0xff]
    %v1101 = vld [vmem:[#allocation8 + $0x188] sm:$0xff]
    %v1102 = vld [vmem:[#allocation8 + $0x190] sm:$0xff]
    %v1103 = vld [vmem:[#allocation8 + $0x198] sm:$0xff]
    %v1104 = vld [vmem:[#allocation8 + $0x1a0] sm:$0xff]
    %v1105 = vld [vmem:[#allocation8 + $0x1a8] sm:$0xff]
    %v1106 = vld [vmem:[#allocation8 + $0x1b0] sm:$0xff]
    %v1107 = vld [vmem:[#allocation8 + $0x1b8] sm:$0xff]
    %v1108 = vld [vmem:[#allocation8 + $0x1c0] sm:$0xff]
    %v1109 = vld [vmem:[#allocation8 + $0x1c8] sm:$0xff]
    %v1110 = vld [vmem:[#allocation8 + $0x1d0] sm:$0xff]
    %v1111 = vld [vmem:[#allocation8 + $0x1d8] sm:$0xff]
    %v1112 = vld [vmem:[#allocation8 + $0x1e0] sm:$0xff]
    %v1113 = vld [vmem:[#allocation8 + $0x1e8] sm:$0xff]
    %v1114 = vld [vmem:[#allocation8 + $0x1f0] sm:$0xff]
    %v1115 = vld [vmem:[#allocation8 + $0x1f8] sm:$0xff]
    %v1116 = vld [vmem:[#allocation8 + $0x200] sm:$0xff]
    %v1117 = vld [vmem:[#allocation8 + $0x208] sm:$0xff]
    %v1118 = vld [vmem:[#allocation8 + $0x210] sm:$0xff]
    %v1119 = vld [vmem:[#allocation8 + $0x218] sm:$0xff]
    %v1120 = vld [vmem:[#allocation8 + $0x220] sm:$0xff]
    %v1121 = vld [vmem:[#allocation8 + $0x228] sm:$0xff]
    %v1122 = vld [vmem:[#allocation8 + $0x230] sm:$0xff]
    %v1123 = vld [vmem:[#allocation8 + $0x238] sm:$0xff]
    %v1124 = vld [vmem:[#allocation8 + $0x240] sm:$0xff]
    %v1125 = vld [vmem:[#allocation8 + $0x248] sm:$0xff]
    %v1126 = vld [vmem:[#allocation8 + $0x250] sm:$0xff]
    %v1127 = vld [vmem:[#allocation8 + $0x258] sm:$0xff]
    %v1128 = vld [vmem:[#allocation8 + $0x260] sm:$0xff]
    %v1129 = vld [vmem:[#allocation8 + $0x268] sm:$0xff]
    %v1130 = vld [vmem:[#allocation8 + $0x270] sm:$0xff]
    %v1131 = vld [vmem:[#allocation8 + $0x278] sm:$0xff]
    %v1132 = vld [vmem:[#allocation8 + $0x280] sm:$0xff]
    %v1133 = vld [vmem:[#allocation8 + $0x288] sm:$0xff]
    %v1134 = vld [vmem:[#allocation8 + $0x290] sm:$0xff]
    %v1135 = vld [vmem:[#allocation8 + $0x298] sm:$0xff]
    %v1136 = vld [vmem:[#allocation8 + $0x2a0] sm:$0xff]
    %v1137 = vld [vmem:[#allocation8 + $0x2a8] sm:$0xff]
    %v1138 = vld [vmem:[#allocation8 + $0x2b0] sm:$0xff]
    %v1139 = vld [vmem:[#allocation8 + $0x2b8] sm:$0xff]
    %v1140 = vld [vmem:[#allocation8 + $0x2c0] sm:$0xff]
    %v1141 = vld [vmem:[#allocation8 + $0x2c8] sm:$0xff]
    %v1142 = vld [vmem:[#allocation8 + $0x2d0] sm:$0xff]
    %v1143 = vld [vmem:[#allocation8 + $0x2d8] sm:$0xff]
    %v1144 = vld [vmem:[#allocation8 + $0x2e0] sm:$0xff]
    %v1145 = vld [vmem:[#allocation8 + $0x2e8] sm:$0xff]
    %v1146 = vld [vmem:[#allocation8 + $0x2f0] sm:$0xff]
    %v1147 = vld [vmem:[#allocation8 + $0x2f8] sm:$0xff]
    %v1148 = vld [vmem:[#allocation8 + $0x300] sm:$0xff]
    %v1149 = vld [vmem:[#allocation8 + $0x308] sm:$0xff]
    %v1150 = vld [vmem:[#allocation8 + $0x310] sm:$0xff]
    %v1151 = vld [vmem:[#allocation8 + $0x318] sm:$0xff]
    %v1152 = vld [vmem:[#allocation8 + $0x320] sm:$0xff]
    %v1153 = vld [vmem:[#allocation8 + $0x328] sm:$0xff]
    %v1154 = vld [vmem:[#allocation8 + $0x330] sm:$0xff]
    %v1155 = vld [vmem:[#allocation8 + $0x338] sm:$0xff]
    %v1156 = vld [vmem:[#allocation8 + $0x340] sm:$0xff]
    %v1157 = vld [vmem:[#allocation8 + $0x348] sm:$0xff]
    %v1158 = vld [vmem:[#allocation8 + $0x350] sm:$0xff]
    %v1159 = vld [vmem:[#allocation8 + $0x358] sm:$0xff]
    %v1160 = vld [vmem:[#allocation8 + $0x360] sm:$0xff]
    %v1161 = vld [vmem:[#allocation8 + $0x368] sm:$0xff]
    %v1162 = vld [vmem:[#allocation8 + $0x370] sm:$0xff]
    %v1163 = vld [vmem:[#allocation8 + $0x378] sm:$0xff]
    %v1164 = vld [vmem:[#allocation8 + $0x380] sm:$0xff]
    %v1165 = vld [vmem:[#allocation8 + $0x388] sm:$0xff]
    %v1166 = vld [vmem:[#allocation8 + $0x390] sm:$0xff]
    %v1167 = vld [vmem:[#allocation8 + $0x398] sm:$0xff]
    %v1168 = vld [vmem:[#allocation8 + $0x3a0] sm:$0xff]
    %v1169 = vld [vmem:[#allocation8 + $0x3a8] sm:$0xff]
    %v1170 = vld [vmem:[#allocation8 + $0x3b0] sm:$0xff]
    %v1171 = vld [vmem:[#allocation8 + $0x3b8] sm:$0xff]
    %v1172 = vld [vmem:[#allocation8 + $0x3c0] sm:$0xff]
    %v1173 = vld [vmem:[#allocation8 + $0x3c8] sm:$0xff]
    %v1174 = vld [vmem:[#allocation8 + $0x3d0] sm:$0xff]
    %v1175 = vld [vmem:[#allocation8 + $0x3d8] sm:$0xff]
    %v1176 = vld [vmem:[#allocation8 + $0x3e0] sm:$0xff]
    %v1177 = vld [vmem:[#allocation8 + $0x3e8] sm:$0xff]
    %v1178 = vld [vmem:[#allocation8 + $0x3f0] sm:$0xff]
    %v1179 = vld [vmem:[#allocation8 + $0x3f8] sm:$0xff]
    %v1180 = vld [vmem:[#allocation8 + $0x400] sm:$0xff]
    %v1181 = vld [vmem:[#allocation8 + $0x408] sm:$0xff]
    %v1182 = vld [vmem:[#allocation8 + $0x410] sm:$0xff]
    %v1183 = vld [vmem:[#allocation8 + $0x418] sm:$0xff]
    %v1184 = vld [vmem:[#allocation8 + $0x420] sm:$0xff]
    %v1185 = vld [vmem:[#allocation8 + $0x428] sm:$0xff]
    %v1186 = vld [vmem:[#allocation8 + $0x430] sm:$0xff]
    %v1187 = vld [vmem:[#allocation8 + $0x438] sm:$0xff]
    %v1188 = vld [vmem:[#allocation8 + $0x440] sm:$0xff]
    %v1189 = vld [vmem:[#allocation8 + $0x448] sm:$0xff]
    %v1190 = vld [vmem:[#allocation8 + $0x450] sm:$0xff]
    %v1191 = vld [vmem:[#allocation8 + $0x458] sm:$0xff]
    %v1192 = vld [vmem:[#allocation8 + $0x460] sm:$0xff]
    %v1193 = vld [vmem:[#allocation8 + $0x468] sm:$0xff]
    %v1194 = vld [vmem:[#allocation8 + $0x470] sm:$0xff]
    %v1195 = vld [vmem:[#allocation8 + $0x478] sm:$0xff]
    %v1196 = vld [vmem:[#allocation8 + $0x480] sm:$0xff]
    %v1197 = vld [vmem:[#allocation8 + $0x488] sm:$0xff]
    %v1198 = vld [vmem:[#allocation8 + $0x490] sm:$0xff]
    %v1199 = vld [vmem:[#allocation8 + $0x498] sm:$0xff]
    %v1200 = vld [vmem:[#allocation8 + $0x4a0] sm:$0xff]
    %v1201 = vld [vmem:[#allocation8 + $0x4a8] sm:$0xff]
    %v1202 = vld [vmem:[#allocation8 + $0x4b0] sm:$0xff]
    %v1203 = vld [vmem:[#allocation8 + $0x4b8] sm:$0xff]
    %v1204 = vld [vmem:[#allocation8 + $0x4c0] sm:$0xff]
    %v1205 = vld [vmem:[#allocation8 + $0x4c8] sm:$0xff]
    %v1206 = vld [vmem:[#allocation8 + $0x4d0] sm:$0xff]
    %v1207 = vld [vmem:[#allocation8 + $0x4d8] sm:$0xff]
    %v1208 = vld [vmem:[#allocation8 + $0x4e0] sm:$0xff]
    %v1209 = vld [vmem:[#allocation8 + $0x4e8] sm:$0xff]
    %v1210 = vld [vmem:[#allocation8 + $0x4f0] sm:$0xff]
    %v1211 = vld [vmem:[#allocation8 + $0x4f8] sm:$0xff]
    %v1212 = vld [vmem:[#allocation8 + $0x500] sm:$0xff]
    %v1213 = vld [vmem:[#allocation8 + $0x508] sm:$0xff]
    %v1214 = vld [vmem:[#allocation8 + $0x510] sm:$0xff]
    %v1215 = vld [vmem:[#allocation8 + $0x518] sm:$0xff]
    %v1216 = vld [vmem:[#allocation8 + $0x520] sm:$0xff]
    %v1217 = vld [vmem:[#allocation8 + $0x528] sm:$0xff]
    %v1218 = vld [vmem:[#allocation8 + $0x530] sm:$0xff]
    %v1219 = vld [vmem:[#allocation8 + $0x538] sm:$0xff]
    %v1220 = vld [vmem:[#allocation8 + $0x540] sm:$0xff]
    %v1221 = vld [vmem:[#allocation8 + $0x548] sm:$0xff]
    %v1222 = vld [vmem:[#allocation8 + $0x550] sm:$0xff]
    %v1223 = vld [vmem:[#allocation8 + $0x558] sm:$0xff]
    %v1224 = vld [vmem:[#allocation8 + $0x560] sm:$0xff]
    %v1225 = vld [vmem:[#allocation8 + $0x568] sm:$0xff]
    %v1226 = vld [vmem:[#allocation8 + $0x570] sm:$0xff]
    %v1227 = vld [vmem:[#allocation8 + $0x578] sm:$0xff]
    %v1228 = vld [vmem:[#allocation8 + $0x580] sm:$0xff]
    %v1229 = vld [vmem:[#allocation8 + $0x588] sm:$0xff]
    %v1230 = vld [vmem:[#allocation8 + $0x590] sm:$0xff]
    %v1231 = vld [vmem:[#allocation8 + $0x598] sm:$0xff]
    %v1232 = vld [vmem:[#allocation8 + $0x5a0] sm:$0xff]
    %v1233 = vld [vmem:[#allocation8 + $0x5a8] sm:$0xff]
    %v1234 = vld [vmem:[#allocation8 + $0x5b0] sm:$0xff]
    %v1235 = vld [vmem:[#allocation8 + $0x5b8] sm:$0xff]
    %v1236 = vld [vmem:[#allocation8 + $0x5c0] sm:$0xff]
    %v1237 = vld [vmem:[#allocation8 + $0x5c8] sm:$0xff]
    %v1238 = vld [vmem:[#allocation8 + $0x5d0] sm:$0xff]
    %v1239 = vld [vmem:[#allocation8 + $0x5d8] sm:$0xff]
    %v1240 = vld [vmem:[#allocation8 + $0x5e0] sm:$0xff]
    %v1241 = vld [vmem:[#allocation8 + $0x5e8] sm:$0xff]
    %v1242 = vld [vmem:[#allocation8 + $0x5f0] sm:$0xff]
    %v1243 = vld [vmem:[#allocation8 + $0x5f8] sm:$0xff]
    %v1244 = vld [vmem:[#allocation8 + $0x600] sm:$0xff]
    %v1245 = vld [vmem:[#allocation8 + $0x608] sm:$0xff]
    %v1246 = vld [vmem:[#allocation8 + $0x610] sm:$0xff]
    %v1247 = vld [vmem:[#allocation8 + $0x618] sm:$0xff]
    %v1248 = vld [vmem:[#allocation8 + $0x620] sm:$0xff]
    %v1249 = vld [vmem:[#allocation8 + $0x628] sm:$0xff]
    %v1250 = vld [vmem:[#allocation8 + $0x630] sm:$0xff]
    %v1251 = vld [vmem:[#allocation8 + $0x638] sm:$0xff]
    %v1252 = vld [vmem:[#allocation8 + $0x640] sm:$0xff]
    %v1253 = vld [vmem:[#allocation8 + $0x648] sm:$0xff]
    %v1254 = vld [vmem:[#allocation8 + $0x650] sm:$0xff]
    %v1255 = vld [vmem:[#allocation8 + $0x658] sm:$0xff]
    %v1256 = vld [vmem:[#allocation8 + $0x660] sm:$0xff]
    %v1257 = vld [vmem:[#allocation8 + $0x668] sm:$0xff]
    %v1258 = vld [vmem:[#allocation8 + $0x670] sm:$0xff]
    %v1259 = vld [vmem:[#allocation8 + $0x678] sm:$0xff]
    %v1260 = vld [vmem:[#allocation8 + $0x680] sm:$0xff]
    %v1261 = vld [vmem:[#allocation8 + $0x688] sm:$0xff]
    %v1262 = vld [vmem:[#allocation8 + $0x690] sm:$0xff]
    %v1263 = vld [vmem:[#allocation8 + $0x698] sm:$0xff]
    %v1264 = vld [vmem:[#allocation8 + $0x6a0] sm:$0xff]
    %v1265 = vld [vmem:[#allocation8 + $0x6a8] sm:$0xff]
    %v1266 = vld [vmem:[#allocation8 + $0x6b0] sm:$0xff]
    %v1267 = vld [vmem:[#allocation8 + $0x6b8] sm:$0xff]
    %v1268 = vld [vmem:[#allocation8 + $0x6c0] sm:$0xff]
    %v1269 = vld [vmem:[#allocation8 + $0x6c8] sm:$0xff]
    %v1270 = vld [vmem:[#allocation8 + $0x6d0] sm:$0xff]
    %v1271 = vld [vmem:[#allocation8 + $0x6d8] sm:$0xff]
    %v1272 = vld [vmem:[#allocation8 + $0x6e0] sm:$0xff]
    %v1273 = vld [vmem:[#allocation8 + $0x6e8] sm:$0xff]
    %v1274 = vld [vmem:[#allocation8 + $0x6f0] sm:$0xff]
    %v1275 = vld [vmem:[#allocation8 + $0x6f8] sm:$0xff]
    %v1276 = vld [vmem:[#allocation8 + $0x700] sm:$0xff]
    %v1277 = vld [vmem:[#allocation8 + $0x708] sm:$0xff]
    %v1278 = vld [vmem:[#allocation8 + $0x710] sm:$0xff]
    %v1279 = vld [vmem:[#allocation8 + $0x718] sm:$0xff]
    %v1280 = vld [vmem:[#allocation8 + $0x720] sm:$0xff]
    %v1281 = vld [vmem:[#allocation8 + $0x728] sm:$0xff]
    %v1282 = vld [vmem:[#allocation8 + $0x730] sm:$0xff]
    %v1283 = vld [vmem:[#allocation8 + $0x738] sm:$0xff]
    %v1284 = vld [vmem:[#allocation8 + $0x740] sm:$0xff]
    %v1285 = vld [vmem:[#allocation8 + $0x748] sm:$0xff]
    %v1286 = vld [vmem:[#allocation8 + $0x750] sm:$0xff]
    %v1287 = vld [vmem:[#allocation8 + $0x758] sm:$0xff]
    %v1288 = vld [vmem:[#allocation8 + $0x760] sm:$0xff]
    %v1289 = vld [vmem:[#allocation8 + $0x768] sm:$0xff]
    %v1290 = vld [vmem:[#allocation8 + $0x770] sm:$0xff]
    %v1291 = vld [vmem:[#allocation8 + $0x778] sm:$0xff]
    %v1292 = vld [vmem:[#allocation8 + $0x780] sm:$0xff]
    %v1293 = vld [vmem:[#allocation8 + $0x788] sm:$0xff]
    %v1294 = vld [vmem:[#allocation8 + $0x790] sm:$0xff]
    %v1295 = vld [vmem:[#allocation8 + $0x798] sm:$0xff]
    %v1296 = vld [vmem:[#allocation8 + $0x7a0] sm:$0xff]
    %v1297 = vld [vmem:[#allocation8 + $0x7a8] sm:$0xff]
    %v1298 = vld [vmem:[#allocation8 + $0x7b0] sm:$0xff]
    %v1299 = vld [vmem:[#allocation8 + $0x7b8] sm:$0xff]
    %v1300 = vld [vmem:[#allocation8 + $0x7c0] sm:$0xff]
    %v1301 = vld [vmem:[#allocation8 + $0x7c8] sm:$0xff]
    %v1302 = vld [vmem:[#allocation8 + $0x7d0] sm:$0xff]
    %v1303 = vld [vmem:[#allocation8 + $0x7d8] sm:$0xff]
    %v1304 = vld [vmem:[#allocation8 + $0x7e0] sm:$0xff]
    %v1305 = vld [vmem:[#allocation8 + $0x7e8] sm:$0xff]
    %v1306 = vld [vmem:[#allocation8 + $0x7f0] sm:$0xff]
    %v1307 = vld [vmem:[#allocation8 + $0x7f8] sm:$0xff]
    %v1308 = vld [vmem:[%s2 + $0xb] sm:$0xf]
    %v1310 = vperm.slane %v1308, 0
    %v1311 = vperm.slane %v1308, 1
    %v1312 = vperm.slane %v1308, 2
    %v1313 = vperm.slane %v1308, 3
    %v1574 = vunpack.c.l.b16 %v1052
    %v1575 = vunpack.c.h.b16 %v1052
    %v1576 = vunpack.c.l.b16 %v1053
    %v1577 = vunpack.c.h.b16 %v1053
    %v1578 = vunpack.c.l.b16 %v1054
    %v1579 = vunpack.c.h.b16 %v1054
    %v1580 = vunpack.c.l.b16 %v1055
    %v1581 = vunpack.c.h.b16 %v1055
    %v1582 = vunpack.c.l.b16 %v1056
    %v1583 = vunpack.c.h.b16 %v1056
    %v1584 = vunpack.c.l.b16 %v1057
    %v1585 = vunpack.c.h.b16 %v1057
    %v1586 = vunpack.c.l.b16 %v1058
    %v1587 = vunpack.c.h.b16 %v1058
    %v1588 = vunpack.c.l.b16 %v1059
    %v1589 = vunpack.c.h.b16 %v1059
    %v1590 = vunpack.c.l.b16 %v1060
    %v1591 = vunpack.c.h.b16 %v1060
    %v1592 = vunpack.c.l.b16 %v1061
    %v1593 = vunpack.c.h.b16 %v1061
    %v1594 = vunpack.c.l.b16 %v1062
    %v1595 = vunpack.c.h.b16 %v1062
    %v1596 = vunpack.c.l.b16 %v1063
    %v1597 = vunpack.c.h.b16 %v1063
    %v1598 = vunpack.c.l.b16 %v1064
    %v1599 = vunpack.c.h.b16 %v1064
    %v1600 = vunpack.c.l.b16 %v1065
    %v1601 = vunpack.c.h.b16 %v1065
    %v1602 = vunpack.c.l.b16 %v1066
    %v1603 = vunpack.c.h.b16 %v1066
    %v1604 = vunpack.c.l.b16 %v1067
    %v1605 = vunpack.c.h.b16 %v1067
    %v1606 = vunpack.c.l.b16 %v1068
    %v1607 = vunpack.c.h.b16 %v1068
    %v1608 = vunpack.c.l.b16 %v1069
    %v1609 = vunpack.c.h.b16 %v1069
    %v1610 = vunpack.c.l.b16 %v1070
    %v1611 = vunpack.c.h.b16 %v1070
    %v1612 = vunpack.c.l.b16 %v1071
    %v1613 = vunpack.c.h.b16 %v1071
    %v1614 = vunpack.c.l.b16 %v1072
    %v1615 = vunpack.c.h.b16 %v1072
    %v1616 = vunpack.c.l.b16 %v1073
    %v1617 = vunpack.c.h.b16 %v1073
    %v1618 = vunpack.c.l.b16 %v1074
    %v1619 = vunpack.c.h.b16 %v1074
    %v1620 = vunpack.c.l.b16 %v1075
    %v1621 = vunpack.c.h.b16 %v1075
    %v1622 = vunpack.c.l.b16 %v1076
    %v1623 = vunpack.c.h.b16 %v1076
    %v1624 = vunpack.c.l.b16 %v1077
    %v1625 = vunpack.c.h.b16 %v1077
    %v1626 = vunpack.c.l.b16 %v1078
    %v1627 = vunpack.c.h.b16 %v1078
    %v1628 = vunpack.c.l.b16 %v1079
    %v1629 = vunpack.c.h.b16 %v1079
    %v1630 = vunpack.c.l.b16 %v1080
    %v1631 = vunpack.c.h.b16 %v1080
    %v1632 = vunpack.c.l.b16 %v1081
    %v1633 = vunpack.c.h.b16 %v1081
    %v1634 = vunpack.c.l.b16 %v1082
    %v1635 = vunpack.c.h.b16 %v1082
    %v1636 = vunpack.c.l.b16 %v1083
    %v1637 = vunpack.c.h.b16 %v1083
    %v1638 = vunpack.c.l.b16 %v1084
    %v1639 = vunpack.c.h.b16 %v1084
    %v1640 = vunpack.c.l.b16 %v1085
    %v1641 = vunpack.c.h.b16 %v1085
    %v1642 = vunpack.c.l.b16 %v1086
    %v1643 = vunpack.c.h.b16 %v1086
    %v1644 = vunpack.c.l.b16 %v1087
    %v1645 = vunpack.c.h.b16 %v1087
    %v1646 = vunpack.c.l.b16 %v1088
    %v1647 = vunpack.c.h.b16 %v1088
    %v1648 = vunpack.c.l.b16 %v1089
    %v1649 = vunpack.c.h.b16 %v1089
    %v1650 = vunpack.c.l.b16 %v1090
    %v1651 = vunpack.c.h.b16 %v1090
    %v1652 = vunpack.c.l.b16 %v1091
    %v1653 = vunpack.c.h.b16 %v1091
    %v1654 = vunpack.c.l.b16 %v1092
    %v1655 = vunpack.c.h.b16 %v1092
    %v1656 = vunpack.c.l.b16 %v1093
    %v1657 = vunpack.c.h.b16 %v1093
    %v1658 = vunpack.c.l.b16 %v1094
    %v1659 = vunpack.c.h.b16 %v1094
    %v1660 = vunpack.c.l.b16 %v1095
    %v1661 = vunpack.c.h.b16 %v1095
    %v1662 = vunpack.c.l.b16 %v1096
    %v1663 = vunpack.c.h.b16 %v1096
    %v1664 = vunpack.c.l.b16 %v1097
    %v1665 = vunpack.c.h.b16 %v1097
    %v1666 = vunpack.c.l.b16 %v1098
    %v1667 = vunpack.c.h.b16 %v1098
    %v1668 = vunpack.c.l.b16 %v1099
    %v1669 = vunpack.c.h.b16 %v1099
    %v1670 = vunpack.c.l.b16 %v1100
    %v1671 = vunpack.c.h.b16 %v1100
    %v1672 = vunpack.c.l.b16 %v1101
    %v1673 = vunpack.c.h.b16 %v1101
    %v1674 = vunpack.c.l.b16 %v1102
    %v1675 = vunpack.c.h.b16 %v1102
    %v1676 = vunpack.c.l.b16 %v1103
    %v1677 = vunpack.c.h.b16 %v1103
    %v1678 = vunpack.c.l.b16 %v1104
    %v1679 = vunpack.c.h.b16 %v1104
    %v1680 = vunpack.c.l.b16 %v1105
    %v1681 = vunpack.c.h.b16 %v1105
    %v1682 = vunpack.c.l.b16 %v1106
    %v1683 = vunpack.c.h.b16 %v1106
    %v1684 = vunpack.c.l.b16 %v1107
    %v1685 = vunpack.c.h.b16 %v1107
    %v1686 = vunpack.c.l.b16 %v1108
    %v1687 = vunpack.c.h.b16 %v1108
    %v1688 = vunpack.c.l.b16 %v1109
    %v1689 = vunpack.c.h.b16 %v1109
    %v1690 = vunpack.c.l.b16 %v1110
    %v1691 = vunpack.c.h.b16 %v1110
    %v1692 = vunpack.c.l.b16 %v1111
    %v1693 = vunpack.c.h.b16 %v1111
    %v1694 = vunpack.c.l.b16 %v1112
    %v1695 = vunpack.c.h.b16 %v1112
    %v1696 = vunpack.c.l.b16 %v1113
    %v1697 = vunpack.c.h.b16 %v1113
    %v1698 = vunpack.c.l.b16 %v1114
    %v1699 = vunpack.c.h.b16 %v1114
    %v1700 = vunpack.c.l.b16 %v1115
    %v1701 = vunpack.c.h.b16 %v1115
    %v1702 = vunpack.c.l.b16 %v1116
    %v1703 = vunpack.c.h.b16 %v1116
    %v1704 = vunpack.c.l.b16 %v1117
    %v1705 = vunpack.c.h.b16 %v1117
    %v1706 = vunpack.c.l.b16 %v1118
    %v1707 = vunpack.c.h.b16 %v1118
    %v1708 = vunpack.c.l.b16 %v1119
    %v1709 = vunpack.c.h.b16 %v1119
    %v1710 = vunpack.c.l.b16 %v1120
    %v1711 = vunpack.c.h.b16 %v1120
    %v1712 = vunpack.c.l.b16 %v1121
    %v1713 = vunpack.c.h.b16 %v1121
    %v1714 = vunpack.c.l.b16 %v1122
    %v1715 = vunpack.c.h.b16 %v1122
    %v1716 = vunpack.c.l.b16 %v1123
    %v1717 = vunpack.c.h.b16 %v1123
    %v1718 = vunpack.c.l.b16 %v1124
    %v1719 = vunpack.c.h.b16 %v1124
    %v1720 = vunpack.c.l.b16 %v1125
    %v1721 = vunpack.c.h.b16 %v1125
    %v1722 = vunpack.c.l.b16 %v1126
    %v1723 = vunpack.c.h.b16 %v1126
    %v1724 = vunpack.c.l.b16 %v1127
    %v1725 = vunpack.c.h.b16 %v1127
    %v1726 = vunpack.c.l.b16 %v1128
    %v1727 = vunpack.c.h.b16 %v1128
    %v1728 = vunpack.c.l.b16 %v1129
    %v1729 = vunpack.c.h.b16 %v1129
    %v1730 = vunpack.c.l.b16 %v1130
    %v1731 = vunpack.c.h.b16 %v1130
    %v1732 = vunpack.c.l.b16 %v1131
    %v1733 = vunpack.c.h.b16 %v1131
    %v1734 = vunpack.c.l.b16 %v1132
    %v1735 = vunpack.c.h.b16 %v1132
    %v1736 = vunpack.c.l.b16 %v1133
    %v1737 = vunpack.c.h.b16 %v1133
    %v1738 = vunpack.c.l.b16 %v1134
    %v1739 = vunpack.c.h.b16 %v1134
    %v1740 = vunpack.c.l.b16 %v1135
    %v1741 = vunpack.c.h.b16 %v1135
    %v1742 = vunpack.c.l.b16 %v1136
    %v1743 = vunpack.c.h.b16 %v1136
    %v1744 = vunpack.c.l.b16 %v1137
    %v1745 = vunpack.c.h.b16 %v1137
    %v1746 = vunpack.c.l.b16 %v1138
    %v1747 = vunpack.c.h.b16 %v1138
    %v1748 = vunpack.c.l.b16 %v1139
    %v1749 = vunpack.c.h.b16 %v1139
    %v1750 = vunpack.c.l.b16 %v1140
    %v1751 = vunpack.c.h.b16 %v1140
    %v1752 = vunpack.c.l.b16 %v1141
    %v1753 = vunpack.c.h.b16 %v1141
    %v1754 = vunpack.c.l.b16 %v1142
    %v1755 = vunpack.c.h.b16 %v1142
    %v1756 = vunpack.c.l.b16 %v1143
    %v1757 = vunpack.c.h.b16 %v1143
    %v1758 = vunpack.c.l.b16 %v1144
    %v1759 = vunpack.c.h.b16 %v1144
    %v1760 = vunpack.c.l.b16 %v1145
    %v1761 = vunpack.c.h.b16 %v1145
    %v1762 = vunpack.c.l.b16 %v1146
    %v1763 = vunpack.c.h.b16 %v1146
    %v1764 = vunpack.c.l.b16 %v1147
    %v1765 = vunpack.c.h.b16 %v1147
    %v1766 = vunpack.c.l.b16 %v1148
    %v1767 = vunpack.c.h.b16 %v1148
    %v1768 = vunpack.c.l.b16 %v1149
    %v1769 = vunpack.c.h.b16 %v1149
    %v1770 = vunpack.c.l.b16 %v1150
    %v1771 = vunpack.c.h.b16 %v1150
    %v1772 = vunpack.c.l.b16 %v1151
    %v1773 = vunpack.c.h.b16 %v1151
    %v1774 = vunpack.c.l.b16 %v1152
    %v1775 = vunpack.c.h.b16 %v1152
    %v1776 = vunpack.c.l.b16 %v1153
    %v1777 = vunpack.c.h.b16 %v1153
    %v1778 = vunpack.c.l.b16 %v1154
    %v1779 = vunpack.c.h.b16 %v1154
    %v1780 = vunpack.c.l.b16 %v1155
    %v1781 = vunpack.c.h.b16 %v1155
    %v1782 = vunpack.c.l.b16 %v1156
    %v1783 = vunpack.c.h.b16 %v1156
    %v1784 = vunpack.c.l.b16 %v1157
    %v1785 = vunpack.c.h.b16 %v1157
    %v1786 = vunpack.c.l.b16 %v1158
    %v1787 = vunpack.c.h.b16 %v1158
    %v1788 = vunpack.c.l.b16 %v1159
    %v1789 = vunpack.c.h.b16 %v1159
    %v1790 = vunpack.c.l.b16 %v1160
    %v1791 = vunpack.c.h.b16 %v1160
    %v1792 = vunpack.c.l.b16 %v1161
    %v1793 = vunpack.c.h.b16 %v1161
    %v1794 = vunpack.c.l.b16 %v1162
    %v1795 = vunpack.c.h.b16 %v1162
    %v1796 = vunpack.c.l.b16 %v1163
    %v1797 = vunpack.c.h.b16 %v1163
    %v1798 = vunpack.c.l.b16 %v1164
    %v1799 = vunpack.c.h.b16 %v1164
    %v1800 = vunpack.c.l.b16 %v1165
    %v1801 = vunpack.c.h.b16 %v1165
    %v1802 = vunpack.c.l.b16 %v1166
    %v1803 = vunpack.c.h.b16 %v1166
    %v1804 = vunpack.c.l.b16 %v1167
    %v1805 = vunpack.c.h.b16 %v1167
    %v1806 = vunpack.c.l.b16 %v1168
    %v1807 = vunpack.c.h.b16 %v1168
    %v1808 = vunpack.c.l.b16 %v1169
    %v1809 = vunpack.c.h.b16 %v1169
    %v1810 = vunpack.c.l.b16 %v1170
    %v1811 = vunpack.c.h.b16 %v1170
    %v1812 = vunpack.c.l.b16 %v1171
    %v1813 = vunpack.c.h.b16 %v1171
    %v1814 = vunpack.c.l.b16 %v1172
    %v1815 = vunpack.c.h.b16 %v1172
    %v1816 = vunpack.c.l.b16 %v1173
    %v1817 = vunpack.c.h.b16 %v1173
    %v1818 = vunpack.c.l.b16 %v1174
    %v1819 = vunpack.c.h.b16 %v1174
    %v1820 = vunpack.c.l.b16 %v1175
    %v1821 = vunpack.c.h.b16 %v1175
    %v1822 = vunpack.c.l.b16 %v1176
    %v1823 = vunpack.c.h.b16 %v1176
    %v1824 = vunpack.c.l.b16 %v1177
    %v1825 = vunpack.c.h.b16 %v1177
    %v1826 = vunpack.c.l.b16 %v1178
    %v1827 = vunpack.c.h.b16 %v1178
    %v1828 = vunpack.c.l.b16 %v1179
    %v1829 = vunpack.c.h.b16 %v1179
    %v1830 = vunpack.c.l.b16 %v1180
    %v1831 = vunpack.c.h.b16 %v1180
    %v1832 = vunpack.c.l.b16 %v1181
    %v1833 = vunpack.c.h.b16 %v1181
    %v1834 = vunpack.c.l.b16 %v1182
    %v1835 = vunpack.c.h.b16 %v1182
    %v1836 = vunpack.c.l.b16 %v1183
    %v1837 = vunpack.c.h.b16 %v1183
    %v1838 = vunpack.c.l.b16 %v1184
    %v1839 = vunpack.c.h.b16 %v1184
    %v1840 = vunpack.c.l.b16 %v1185
    %v1841 = vunpack.c.h.b16 %v1185
    %v1842 = vunpack.c.l.b16 %v1186
    %v1843 = vunpack.c.h.b16 %v1186
    %v1844 = vunpack.c.l.b16 %v1187
    %v1845 = vunpack.c.h.b16 %v1187
    %v1846 = vunpack.c.l.b16 %v1188
    %v1847 = vunpack.c.h.b16 %v1188
    %v1848 = vunpack.c.l.b16 %v1189
    %v1849 = vunpack.c.h.b16 %v1189
    %v1850 = vunpack.c.l.b16 %v1190
    %v1851 = vunpack.c.h.b16 %v1190
    %v1852 = vunpack.c.l.b16 %v1191
    %v1853 = vunpack.c.h.b16 %v1191
    %v1854 = vunpack.c.l.b16 %v1192
    %v1855 = vunpack.c.h.b16 %v1192
    %v1856 = vunpack.c.l.b16 %v1193
    %v1857 = vunpack.c.h.b16 %v1193
    %v1858 = vunpack.c.l.b16 %v1194
    %v1859 = vunpack.c.h.b16 %v1194
    %v1860 = vunpack.c.l.b16 %v1195
    %v1861 = vunpack.c.h.b16 %v1195
    %v1862 = vunpack.c.l.b16 %v1196
    %v1863 = vunpack.c.h.b16 %v1196
    %v1864 = vunpack.c.l.b16 %v1197
    %v1865 = vunpack.c.h.b16 %v1197
    %v1866 = vunpack.c.l.b16 %v1198
    %v1867 = vunpack.c.h.b16 %v1198
    %v1868 = vunpack.c.l.b16 %v1199
    %v1869 = vunpack.c.h.b16 %v1199
    %v1870 = vunpack.c.l.b16 %v1200
    %v1871 = vunpack.c.h.b16 %v1200
    %v1872 = vunpack.c.l.b16 %v1201
    %v1873 = vunpack.c.h.b16 %v1201
    %v1874 = vunpack.c.l.b16 %v1202
    %v1875 = vunpack.c.h.b16 %v1202
    %v1876 = vunpack.c.l.b16 %v1203
    %v1877 = vunpack.c.h.b16 %v1203
    %v1878 = vunpack.c.l.b16 %v1204
    %v1879 = vunpack.c.h.b16 %v1204
    %v1880 = vunpack.c.l.b16 %v1205
    %v1881 = vunpack.c.h.b16 %v1205
    %v1882 = vunpack.c.l.b16 %v1206
    %v1883 = vunpack.c.h.b16 %v1206
    %v1884 = vunpack.c.l.b16 %v1207
    %v1885 = vunpack.c.h.b16 %v1207
    %v1886 = vunpack.c.l.b16 %v1208
    %v1887 = vunpack.c.h.b16 %v1208
    %v1888 = vunpack.c.l.b16 %v1209
    %v1889 = vunpack.c.h.b16 %v1209
    %v1890 = vunpack.c.l.b16 %v1210
    %v1891 = vunpack.c.h.b16 %v1210
    %v1892 = vunpack.c.l.b16 %v1211
    %v1893 = vunpack.c.h.b16 %v1211
    %v1894 = vunpack.c.l.b16 %v1212
    %v1895 = vunpack.c.h.b16 %v1212
    %v1896 = vunpack.c.l.b16 %v1213
    %v1897 = vunpack.c.h.b16 %v1213
    %v1898 = vunpack.c.l.b16 %v1214
    %v1899 = vunpack.c.h.b16 %v1214
    %v1900 = vunpack.c.l.b16 %v1215
    %v1901 = vunpack.c.h.b16 %v1215
    %v1902 = vunpack.c.l.b16 %v1216
    %v1903 = vunpack.c.h.b16 %v1216
    %v1904 = vunpack.c.l.b16 %v1217
    %v1905 = vunpack.c.h.b16 %v1217
    %v1906 = vunpack.c.l.b16 %v1218
    %v1907 = vunpack.c.h.b16 %v1218
    %v1908 = vunpack.c.l.b16 %v1219
    %v1909 = vunpack.c.h.b16 %v1219
    %v1910 = vunpack.c.l.b16 %v1220
    %v1911 = vunpack.c.h.b16 %v1220
    %v1912 = vunpack.c.l.b16 %v1221
    %v1913 = vunpack.c.h.b16 %v1221
    %v1914 = vunpack.c.l.b16 %v1222
    %v1915 = vunpack.c.h.b16 %v1222
    %v1916 = vunpack.c.l.b16 %v1223
    %v1917 = vunpack.c.h.b16 %v1223
    %v1918 = vunpack.c.l.b16 %v1224
    %v1919 = vunpack.c.h.b16 %v1224
    %v1920 = vunpack.c.l.b16 %v1225
    %v1921 = vunpack.c.h.b16 %v1225
    %v1922 = vunpack.c.l.b16 %v1226
    %v1923 = vunpack.c.h.b16 %v1226
    %v1924 = vunpack.c.l.b16 %v1227
    %v1925 = vunpack.c.h.b16 %v1227
    %v1926 = vunpack.c.l.b16 %v1228
    %v1927 = vunpack.c.h.b16 %v1228
    %v1928 = vunpack.c.l.b16 %v1229
    %v1929 = vunpack.c.h.b16 %v1229
    %v1930 = vunpack.c.l.b16 %v1230
    %v1931 = vunpack.c.h.b16 %v1230
    %v1932 = vunpack.c.l.b16 %v1231
    %v1933 = vunpack.c.h.b16 %v1231
    %v1934 = vunpack.c.l.b16 %v1232
    %v1935 = vunpack.c.h.b16 %v1232
    %v1936 = vunpack.c.l.b16 %v1233
    %v1937 = vunpack.c.h.b16 %v1233
    %v1938 = vunpack.c.l.b16 %v1234
    %v1939 = vunpack.c.h.b16 %v1234
    %v1940 = vunpack.c.l.b16 %v1235
    %v1941 = vunpack.c.h.b16 %v1235
    %v1942 = vunpack.c.l.b16 %v1236
    %v1943 = vunpack.c.h.b16 %v1236
    %v1944 = vunpack.c.l.b16 %v1237
    %v1945 = vunpack.c.h.b16 %v1237
    %v1946 = vunpack.c.l.b16 %v1238
    %v1947 = vunpack.c.h.b16 %v1238
    %v1948 = vunpack.c.l.b16 %v1239
    %v1949 = vunpack.c.h.b16 %v1239
    %v1950 = vunpack.c.l.b16 %v1240
    %v1951 = vunpack.c.h.b16 %v1240
    %v1952 = vunpack.c.l.b16 %v1241
    %v1953 = vunpack.c.h.b16 %v1241
    %v1954 = vunpack.c.l.b16 %v1242
    %v1955 = vunpack.c.h.b16 %v1242
    %v1956 = vunpack.c.l.b16 %v1243
    %v1957 = vunpack.c.h.b16 %v1243
    %v1958 = vunpack.c.l.b16 %v1244
    %v1959 = vunpack.c.h.b16 %v1244
    %v1960 = vunpack.c.l.b16 %v1245
    %v1961 = vunpack.c.h.b16 %v1245
    %v1962 = vunpack.c.l.b16 %v1246
    %v1963 = vunpack.c.h.b16 %v1246
    %v1964 = vunpack.c.l.b16 %v1247
    %v1965 = vunpack.c.h.b16 %v1247
    %v1966 = vunpack.c.l.b16 %v1248
    %v1967 = vunpack.c.h.b16 %v1248
    %v1968 = vunpack.c.l.b16 %v1249
    %v1969 = vunpack.c.h.b16 %v1249
    %v1970 = vunpack.c.l.b16 %v1250
    %v1971 = vunpack.c.h.b16 %v1250
    %v1972 = vunpack.c.l.b16 %v1251
    %v1973 = vunpack.c.h.b16 %v1251
    %v1974 = vunpack.c.l.b16 %v1252
    %v1975 = vunpack.c.h.b16 %v1252
    %v1976 = vunpack.c.l.b16 %v1253
    %v1977 = vunpack.c.h.b16 %v1253
    %v1978 = vunpack.c.l.b16 %v1254
    %v1979 = vunpack.c.h.b16 %v1254
    %v1980 = vunpack.c.l.b16 %v1255
    %v1981 = vunpack.c.h.b16 %v1255
    %v1982 = vunpack.c.l.b16 %v1256
    %v1983 = vunpack.c.h.b16 %v1256
    %v1984 = vunpack.c.l.b16 %v1257
    %v1985 = vunpack.c.h.b16 %v1257
    %v1986 = vunpack.c.l.b16 %v1258
    %v1987 = vunpack.c.h.b16 %v1258
    %v1988 = vunpack.c.l.b16 %v1259
    %v1989 = vunpack.c.h.b16 %v1259
    %v1990 = vunpack.c.l.b16 %v1260
    %v1991 = vunpack.c.h.b16 %v1260
    %v1992 = vunpack.c.l.b16 %v1261
    %v1993 = vunpack.c.h.b16 %v1261
    %v1994 = vunpack.c.l.b16 %v1262
    %v1995 = vunpack.c.h.b16 %v1262
    %v1996 = vunpack.c.l.b16 %v1263
    %v1997 = vunpack.c.h.b16 %v1263
    %v1998 = vunpack.c.l.b16 %v1264
    %v1999 = vunpack.c.h.b16 %v1264
    %v2000 = vunpack.c.l.b16 %v1265
    %v2001 = vunpack.c.h.b16 %v1265
    %v2002 = vunpack.c.l.b16 %v1266
    %v2003 = vunpack.c.h.b16 %v1266
    %v2004 = vunpack.c.l.b16 %v1267
    %v2005 = vunpack.c.h.b16 %v1267
    %v2006 = vunpack.c.l.b16 %v1268
    %v2007 = vunpack.c.h.b16 %v1268
    %v2008 = vunpack.c.l.b16 %v1269
    %v2009 = vunpack.c.h.b16 %v1269
    %v2010 = vunpack.c.l.b16 %v1270
    %v2011 = vunpack.c.h.b16 %v1270
    %v2012 = vunpack.c.l.b16 %v1271
    %v2013 = vunpack.c.h.b16 %v1271
    %v2014 = vunpack.c.l.b16 %v1272
    %v2015 = vunpack.c.h.b16 %v1272
    %v2016 = vunpack.c.l.b16 %v1273
    %v2017 = vunpack.c.h.b16 %v1273
    %v2018 = vunpack.c.l.b16 %v1274
    %v2019 = vunpack.c.h.b16 %v1274
    %v2020 = vunpack.c.l.b16 %v1275
    %v2021 = vunpack.c.h.b16 %v1275
    %v2022 = vunpack.c.l.b16 %v1276
    %v2023 = vunpack.c.h.b16 %v1276
    %v2024 = vunpack.c.l.b16 %v1277
    %v2025 = vunpack.c.h.b16 %v1277
    %v2026 = vunpack.c.l.b16 %v1278
    %v2027 = vunpack.c.h.b16 %v1278
    %v2028 = vunpack.c.l.b16 %v1279
    %v2029 = vunpack.c.h.b16 %v1279
    %v2030 = vunpack.c.l.b16 %v1280
    %v2031 = vunpack.c.h.b16 %v1280
    %v2032 = vunpack.c.l.b16 %v1281
    %v2033 = vunpack.c.h.b16 %v1281
    %v2034 = vunpack.c.l.b16 %v1282
    %v2035 = vunpack.c.h.b16 %v1282
    %v2036 = vunpack.c.l.b16 %v1283
    %v2037 = vunpack.c.h.b16 %v1283
    %v2038 = vunpack.c.l.b16 %v1284
    %v2039 = vunpack.c.h.b16 %v1284
    %v2040 = vunpack.c.l.b16 %v1285
    %v2041 = vunpack.c.h.b16 %v1285
    %v2042 = vunpack.c.l.b16 %v1286
    %v2043 = vunpack.c.h.b16 %v1286
    %v2044 = vunpack.c.l.b16 %v1287
    %v2045 = vunpack.c.h.b16 %v1287
    %v2046 = vunpack.c.l.b16 %v1288
    %v2047 = vunpack.c.h.b16 %v1288
    %v2048 = vunpack.c.l.b16 %v1289
    %v2049 = vunpack.c.h.b16 %v1289
    %v2050 = vunpack.c.l.b16 %v1290
    %v2051 = vunpack.c.h.b16 %v1290
    %v2052 = vunpack.c.l.b16 %v1291
    %v2053 = vunpack.c.h.b16 %v1291
    %v2054 = vunpack.c.l.b16 %v1292
    %v2055 = vunpack.c.h.b16 %v1292
    %v2056 = vunpack.c.l.b16 %v1293
    %v2057 = vunpack.c.h.b16 %v1293
    %v2058 = vunpack.c.l.b16 %v1294
    %v2059 = vunpack.c.h.b16 %v1294
    %v2060 = vunpack.c.l.b16 %v1295
    %v2061 = vunpack.c.h.b16 %v1295
    %v2062 = vunpack.c.l.b16 %v1296
    %v2063 = vunpack.c.h.b16 %v1296
    %v2064 = vunpack.c.l.b16 %v1297
    %v2065 = vunpack.c.h.b16 %v1297
    %v2066 = vunpack.c.l.b16 %v1298
    %v2067 = vunpack.c.h.b16 %v1298
    %v2068 = vunpack.c.l.b16 %v1299
    %v2069 = vunpack.c.h.b16 %v1299
    %v2070 = vunpack.c.l.b16 %v1300
    %v2071 = vunpack.c.h.b16 %v1300
    %v2072 = vunpack.c.l.b16 %v1301
    %v2073 = vunpack.c.h.b16 %v1301
    %v2074 = vunpack.c.l.b16 %v1302
    %v2075 = vunpack.c.h.b16 %v1302
    %v2076 = vunpack.c.l.b16 %v1303
    %v2077 = vunpack.c.h.b16 %v1303
    %v2078 = vunpack.c.l.b16 %v1304
    %v2079 = vunpack.c.h.b16 %v1304
    %v2080 = vunpack.c.l.b16 %v1305
    %v2081 = vunpack.c.h.b16 %v1305
    %v2082 = vunpack.c.l.b16 %v1306
    %v2083 = vunpack.c.h.b16 %v1306
    %v2084 = vunpack.c.l.b16 %v1307
    %v2085 = vunpack.c.h.b16 %v1307
    %v2086 = vpack.c.b16 %v1578, %v1574
    %v2087 = vpack.c.b16 %v1579, %v1575
    %v2088 = vpack.c.b16 %v1580, %v1576
    %v2089 = vpack.c.b16 %v1581, %v1577
    %v2090 = vpack.c.b16 %v1586, %v1582
    %v2091 = vpack.c.b16 %v1587, %v1583
    %v2092 = vpack.c.b16 %v1588, %v1584
    %v2093 = vpack.c.b16 %v1589, %v1585
    %v2094 = vpack.c.b16 %v1594, %v1590
    %v2095 = vpack.c.b16 %v1595, %v1591
    %v2096 = vpack.c.b16 %v1596, %v1592
    %v2097 = vpack.c.b16 %v1597, %v1593
    %v2098 = vpack.c.b16 %v1602, %v1598
    %v2099 = vpack.c.b16 %v1603, %v1599
    %v2100 = vpack.c.b16 %v1604, %v1600
    %v2101 = vpack.c.b16 %v1605, %v1601
    %v2102 = vpack.c.b16 %v1610, %v1606
    %v2103 = vpack.c.b16 %v1611, %v1607
    %v2104 = vpack.c.b16 %v1612, %v1608
    %v2105 = vpack.c.b16 %v1613, %v1609
    %v2106 = vpack.c.b16 %v1618, %v1614
    %v2107 = vpack.c.b16 %v1619, %v1615
    %v2108 = vpack.c.b16 %v1620, %v1616
    %v2109 = vpack.c.b16 %v1621, %v1617
    %v2110 = vpack.c.b16 %v1626, %v1622
    %v2111 = vpack.c.b16 %v1627, %v1623
    %v2112 = vpack.c.b16 %v1628, %v1624
    %v2113 = vpack.c.b16 %v1629, %v1625
    %v2114 = vpack.c.b16 %v1634, %v1630
    %v2115 = vpack.c.b16 %v1635, %v1631
    %v2116 = vpack.c.b16 %v1636, %v1632
    %v2117 = vpack.c.b16 %v1637, %v1633
    %v2118 = vpack.c.b16 %v1642, %v1638
    %v2119 = vpack.c.b16 %v1643, %v1639
    %v2120 = vpack.c.b16 %v1644, %v1640
    %v2121 = vpack.c.b16 %v1645, %v1641
    %v2122 = vpack.c.b16 %v1650, %v1646
    %v2123 = vpack.c.b16 %v1651, %v1647
    %v2124 = vpack.c.b16 %v1652, %v1648
    %v2125 = vpack.c.b16 %v1653, %v1649
    %v2126 = vpack.c.b16 %v1658, %v1654
    %v2127 = vpack.c.b16 %v1659, %v1655
    %v2128 = vpack.c.b16 %v1660, %v1656
    %v2129 = vpack.c.b16 %v1661, %v1657
    %v2130 = vpack.c.b16 %v1666, %v1662
    %v2131 = vpack.c.b16 %v1667, %v1663
    %v2132 = vpack.c.b16 %v1668, %v1664
    %v2133 = vpack.c.b16 %v1669, %v1665
    %v2134 = vpack.c.b16 %v1674, %v1670
    %v2135 = vpack.c.b16 %v1675, %v1671
    %v2136 = vpack.c.b16 %v1676, %v1672
    %v2137 = vpack.c.b16 %v1677, %v1673
    %v2138 = vpack.c.b16 %v1682, %v1678
    %v2139 = vpack.c.b16 %v1683, %v1679
    %v2140 = vpack.c.b16 %v1684, %v1680
    %v2141 = vpack.c.b16 %v1685, %v1681
    %v2142 = vpack.c.b16 %v1690, %v1686
    %v2143 = vpack.c.b16 %v1691, %v1687
    %v2144 = vpack.c.b16 %v1692, %v1688
    %v2145 = vpack.c.b16 %v1693, %v1689
    %v2146 = vpack.c.b16 %v1698, %v1694
    %v2147 = vpack.c.b16 %v1699, %v1695
    %v2148 = vpack.c.b16 %v1700, %v1696
    %v2149 = vpack.c.b16 %v1701, %v1697
    %v2150 = vpack.c.b16 %v1706, %v1702
    %v2151 = vpack.c.b16 %v1707, %v1703
    %v2152 = vpack.c.b16 %v1708, %v1704
    %v2153 = vpack.c.b16 %v1709, %v1705
    %v2154 = vpack.c.b16 %v1714, %v1710
    %v2155 = vpack.c.b16 %v1715, %v1711
    %v2156 = vpack.c.b16 %v1716, %v1712
    %v2157 = vpack.c.b16 %v1717, %v1713
    %v2158 = vpack.c.b16 %v1722, %v1718
    %v2159 = vpack.c.b16 %v1723, %v1719
    %v2160 = vpack.c.b16 %v1724, %v1720
    %v2161 = vpack.c.b16 %v1725, %v1721
    %v2162 = vpack.c.b16 %v1730, %v1726
    %v2163 = vpack.c.b16 %v1731, %v1727
    %v2164 = vpack.c.b16 %v1732, %v1728
    %v2165 = vpack.c.b16 %v1733, %v1729
    %v2166 = vpack.c.b16 %v1738, %v1734
    %v2167 = vpack.c.b16 %v1739, %v1735
    %v2168 = vpack.c.b16 %v1740, %v1736
    %v2169 = vpack.c.b16 %v1741, %v1737
    %v2170 = vpack.c.b16 %v1746, %v1742
    %v2171 = vpack.c.b16 %v1747, %v1743
    %v2172 = vpack.c.b16 %v1748, %v1744
    %v2173 = vpack.c.b16 %v1749, %v1745
    %v2174 = vpack.c.b16 %v1754, %v1750
    %v2175 = vpack.c.b16 %v1755, %v1751
    %v2176 = vpack.c.b16 %v1756, %v1752
    %v2177 = vpack.c.b16 %v1757, %v1753
    %v2178 = vpack.c.b16 %v1762, %v1758
    %v2179 = vpack.c.b16 %v1763, %v1759
    %v2180 = vpack.c.b16 %v1764, %v1760
    %v2181 = vpack.c.b16 %v1765, %v1761
    %v2182 = vpack.c.b16 %v1770, %v1766
    %v2183 = vpack.c.b16 %v1771, %v1767
    %v2184 = vpack.c.b16 %v1772, %v1768
    %v2185 = vpack.c.b16 %v1773, %v1769
    %v2186 = vpack.c.b16 %v1778, %v1774
    %v2187 = vpack.c.b16 %v1779, %v1775
    %v2188 = vpack.c.b16 %v1780, %v1776
    %v2189 = vpack.c.b16 %v1781, %v1777
    %v2190 = vpack.c.b16 %v1786, %v1782
    %v2191 = vpack.c.b16 %v1787, %v1783
    %v2192 = vpack.c.b16 %v1788, %v1784
    %v2193 = vpack.c.b16 %v1789, %v1785
    %v2194 = vpack.c.b16 %v1794, %v1790
    %v2195 = vpack.c.b16 %v1795, %v1791
    %v2196 = vpack.c.b16 %v1796, %v1792
    %v2197 = vpack.c.b16 %v1797, %v1793
    %v2198 = vpack.c.b16 %v1802, %v1798
    %v2199 = vpack.c.b16 %v1803, %v1799
    %v2200 = vpack.c.b16 %v1804, %v1800
    %v2201 = vpack.c.b16 %v1805, %v1801
    %v2202 = vpack.c.b16 %v1810, %v1806
    %v2203 = vpack.c.b16 %v1811, %v1807
    %v2204 = vpack.c.b16 %v1812, %v1808
    %v2205 = vpack.c.b16 %v1813, %v1809
    %v2206 = vpack.c.b16 %v1818, %v1814
    %v2207 = vpack.c.b16 %v1819, %v1815
    %v2208 = vpack.c.b16 %v1820, %v1816
    %v2209 = vpack.c.b16 %v1821, %v1817
    %v2210 = vpack.c.b16 %v1826, %v1822
    %v2211 = vpack.c.b16 %v1827, %v1823
    %v2212 = vpack.c.b16 %v1828, %v1824
    %v2213 = vpack.c.b16 %v1829, %v1825
    %v2214 = vpack.c.b16 %v1834, %v1830
    %v2215 = vpack.c.b16 %v1835, %v1831
    %v2216 = vpack.c.b16 %v1836, %v1832
    %v2217 = vpack.c.b16 %v1837, %v1833
    %v2218 = vpack.c.b16 %v1842, %v1838
    %v2219 = vpack.c.b16 %v1843, %v1839
    %v2220 = vpack.c.b16 %v1844, %v1840
    %v2221 = vpack.c.b16 %v1845, %v1841
    %v2222 = vpack.c.b16 %v1850, %v1846
    %v2223 = vpack.c.b16 %v1851, %v1847
    %v2224 = vpack.c.b16 %v1852, %v1848
    %v2225 = vpack.c.b16 %v1853, %v1849
    %v2226 = vpack.c.b16 %v1858, %v1854
    %v2227 = vpack.c.b16 %v1859, %v1855
    %v2228 = vpack.c.b16 %v1860, %v1856
    %v2229 = vpack.c.b16 %v1861, %v1857
    %v2230 = vpack.c.b16 %v1866, %v1862
    %v2231 = vpack.c.b16 %v1867, %v1863
    %v2232 = vpack.c.b16 %v1868, %v1864
    %v2233 = vpack.c.b16 %v1869, %v1865
    %v2234 = vpack.c.b16 %v1874, %v1870
    %v2235 = vpack.c.b16 %v1875, %v1871
    %v2236 = vpack.c.b16 %v1876, %v1872
    %v2237 = vpack.c.b16 %v1877, %v1873
    %v2238 = vpack.c.b16 %v1882, %v1878
    %v2239 = vpack.c.b16 %v1883, %v1879
    %v2240 = vpack.c.b16 %v1884, %v1880
    %v2241 = vpack.c.b16 %v1885, %v1881
    %v2242 = vpack.c.b16 %v1890, %v1886
    %v2243 = vpack.c.b16 %v1891, %v1887
    %v2244 = vpack.c.b16 %v1892, %v1888
    %v2245 = vpack.c.b16 %v1893, %v1889
    %v2246 = vpack.c.b16 %v1898, %v1894
    %v2247 = vpack.c.b16 %v1899, %v1895
    %v2248 = vpack.c.b16 %v1900, %v1896
    %v2249 = vpack.c.b16 %v1901, %v1897
    %v2250 = vpack.c.b16 %v1906, %v1902
    %v2251 = vpack.c.b16 %v1907, %v1903
    %v2252 = vpack.c.b16 %v1908, %v1904
    %v2253 = vpack.c.b16 %v1909, %v1905
    %v2254 = vpack.c.b16 %v1914, %v1910
    %v2255 = vpack.c.b16 %v1915, %v1911
    %v2256 = vpack.c.b16 %v1916, %v1912
    %v2257 = vpack.c.b16 %v1917, %v1913
    %v2258 = vpack.c.b16 %v1922, %v1918
    %v2259 = vpack.c.b16 %v1923, %v1919
    %v2260 = vpack.c.b16 %v1924, %v1920
    %v2261 = vpack.c.b16 %v1925, %v1921
    %v2262 = vpack.c.b16 %v1930, %v1926
    %v2263 = vpack.c.b16 %v1931, %v1927
    %v2264 = vpack.c.b16 %v1932, %v1928
    %v2265 = vpack.c.b16 %v1933, %v1929
    %v2266 = vpack.c.b16 %v1938, %v1934
    %v2267 = vpack.c.b16 %v1939, %v1935
    %v2268 = vpack.c.b16 %v1940, %v1936
    %v2269 = vpack.c.b16 %v1941, %v1937
    %v2270 = vpack.c.b16 %v1946, %v1942
    %v2271 = vpack.c.b16 %v1947, %v1943
    %v2272 = vpack.c.b16 %v1948, %v1944
    %v2273 = vpack.c.b16 %v1949, %v1945
    %v2274 = vpack.c.b16 %v1954, %v1950
    %v2275 = vpack.c.b16 %v1955, %v1951
    %v2276 = vpack.c.b16 %v1956, %v1952
    %v2277 = vpack.c.b16 %v1957, %v1953
    %v2278 = vpack.c.b16 %v1962, %v1958
    %v2279 = vpack.c.b16 %v1963, %v1959
    %v2280 = vpack.c.b16 %v1964, %v1960
    %v2281 = vpack.c.b16 %v1965, %v1961
    %v2282 = vpack.c.b16 %v1970, %v1966
    %v2283 = vpack.c.b16 %v1971, %v1967
    %v2284 = vpack.c.b16 %v1972, %v1968
    %v2285 = vpack.c.b16 %v1973, %v1969
    %v2286 = vpack.c.b16 %v1978, %v1974
    %v2287 = vpack.c.b16 %v1979, %v1975
    %v2288 = vpack.c.b16 %v1980, %v1976
    %v2289 = vpack.c.b16 %v1981, %v1977
    %v2290 = vpack.c.b16 %v1986, %v1982
    %v2291 = vpack.c.b16 %v1987, %v1983
    %v2292 = vpack.c.b16 %v1988, %v1984
    %v2293 = vpack.c.b16 %v1989, %v1985
    %v2294 = vpack.c.b16 %v1994, %v1990
    %v2295 = vpack.c.b16 %v1995, %v1991
    %v2296 = vpack.c.b16 %v1996, %v1992
    %v2297 = vpack.c.b16 %v1997, %v1993
    %v2298 = vpack.c.b16 %v2002, %v1998
    %v2299 = vpack.c.b16 %v2003, %v1999
    %v2300 = vpack.c.b16 %v2004, %v2000
    %v2301 = vpack.c.b16 %v2005, %v2001
    %v2302 = vpack.c.b16 %v2010, %v2006
    %v2303 = vpack.c.b16 %v2011, %v2007
    %v2304 = vpack.c.b16 %v2012, %v2008
    %v2305 = vpack.c.b16 %v2013, %v2009
    %v2306 = vpack.c.b16 %v2018, %v2014
    %v2307 = vpack.c.b16 %v2019, %v2015
    %v2308 = vpack.c.b16 %v2020, %v2016
    %v2309 = vpack.c.b16 %v2021, %v2017
    %v2310 = vpack.c.b16 %v2026, %v2022
    %v2311 = vpack.c.b16 %v2027, %v2023
    %v2312 = vpack.c.b16 %v2028, %v2024
    %v2313 = vpack.c.b16 %v2029, %v2025
    %v2314 = vpack.c.b16 %v2034, %v2030
    %v2315 = vpack.c.b16 %v2035, %v2031
    %v2316 = vpack.c.b16 %v2036, %v2032
    %v2317 = vpack.c.b16 %v2037, %v2033
    %v2318 = vpack.c.b16 %v2042, %v2038
    %v2319 = vpack.c.b16 %v2043, %v2039
    %v2320 = vpack.c.b16 %v2044, %v2040
    %v2321 = vpack.c.b16 %v2045, %v2041
    %v2322 = vpack.c.b16 %v2050, %v2046
    %v2323 = vpack.c.b16 %v2051, %v2047
    %v2324 = vpack.c.b16 %v2052, %v2048
    %v2325 = vpack.c.b16 %v2053, %v2049
    %v2326 = vpack.c.b16 %v2058, %v2054
    %v2327 = vpack.c.b16 %v2059, %v2055
    %v2328 = vpack.c.b16 %v2060, %v2056
    %v2329 = vpack.c.b16 %v2061, %v2057
    %v2330 = vpack.c.b16 %v2066, %v2062
    %v2331 = vpack.c.b16 %v2067, %v2063
    %v2332 = vpack.c.b16 %v2068, %v2064
    %v2333 = vpack.c.b16 %v2069, %v2065
    %v2334 = vpack.c.b16 %v2074, %v2070
    %v2335 = vpack.c.b16 %v2075, %v2071
    %v2336 = vpack.c.b16 %v2076, %v2072
    %v2337 = vpack.c.b16 %v2077, %v2073
    %v2338 = vpack.c.b16 %v2082, %v2078
    %v2339 = vpack.c.b16 %v2083, %v2079
    %v2340 = vpack.c.b16 %v2084, %v2080
    %v2341 = vpack.c.b16 %v2085, %v2081
    %2598 = vmatpush.bf16.msra.mxu0 %v2114
    %2599 = vmatpush.bf16.msra.mxu0 %v2110
    %2600 = vmatpush.bf16.msra.mxu0 %v2106
    %2601 = vmatpush.bf16.msra.mxu0 %v2102
    %2602 = vmatpush.bf16.msra.mxu0 %v2098
    %2603 = vmatpush.bf16.msra.mxu0 %v2094
    %2604 = vmatpush.bf16.msra.mxu0 %v2090
    %2605 = vmatpush.bf16.msra.mxu0 %v2086
    %2606 = vmatmul.bf16.gmra.mxu0 %v1044
    %v2607 = vpop.f32.mrf.mxu0
    %v2608 = vadd.f32 %v1310, %v2607
    %v2609 = vpop.f32.mrf.mxu0
    %2610 = vdwg.mxu0
    %2611 = vmatpush.bf16.msra.mxu0 %v2146
    %2612 = vmatpush.bf16.msra.mxu0 %v2142
    %2613 = vmatpush.bf16.msra.mxu0 %v2138
    %2614 = vmatpush.bf16.msra.mxu0 %v2134
    %2615 = vmatpush.bf16.msra.mxu0 %v2130
    %2616 = vmatpush.bf16.msra.mxu0 %v2126
    %2617 = vmatpush.bf16.msra.mxu0 %v2122
    %2618 = vmatpush.bf16.msra.mxu0 %v2118
    %2619 = vmatmul.bf16.gmra.mxu0 %v1045
    %v2620 = vpop.f32.mrf.mxu0
    %v2621 = vadd.f32 %v2608, %v2620
    %v2622 = vpop.f32.mrf.mxu0
    %2623 = vdwg.mxu0
    %2624 = vmatpush.bf16.msra.mxu0 %v2178
    %2625 = vmatpush.bf16.msra.mxu0 %v2174
    %2626 = vmatpush.bf16.msra.mxu0 %v2170
    %2627 = vmatpush.bf16.msra.mxu0 %v2166
    %2628 = vmatpush.bf16.msra.mxu0 %v2162
    %2629 = vmatpush.bf16.msra.mxu0 %v2158
    %2630 = vmatpush.bf16.msra.mxu0 %v2154
    %2631 = vmatpush.bf16.msra.mxu0 %v2150
    %2632 = vmatmul.bf16.gmra.mxu0 %v1046
    %v2633 = vpop.f32.mrf.mxu0
    %v2634 = vadd.f32 %v2621, %v2633
    %v2635 = vpop.f32.mrf.mxu0
    %2636 = vdwg.mxu0
    %2637 = vmatpush.bf16.msra.mxu0 %v2210
    %2638 = vmatpush.bf16.msra.mxu0 %v2206
    %2639 = vmatpush.bf16.msra.mxu0 %v2202
    %2640 = vmatpush.bf16.msra.mxu0 %v2198
    %2641 = vmatpush.bf16.msra.mxu0 %v2194
    %2642 = vmatpush.bf16.msra.mxu0 %v2190
    %2643 = vmatpush.bf16.msra.mxu0 %v2186
    %2644 = vmatpush.bf16.msra.mxu0 %v2182
    %2645 = vmatmul.bf16.gmra.mxu0 %v1047
    %v2646 = vpop.f32.mrf.mxu0
    %v2647 = vadd.f32 %v2634, %v2646
    %v2648 = vpop.f32.mrf.mxu0
    %2649 = vdwg.mxu0
    %2650 = vmatpush.bf16.msra.mxu0 %v2242
    %2651 = vmatpush.bf16.msra.mxu0 %v2238
    %2652 = vmatpush.bf16.msra.mxu0 %v2234
    %2653 = vmatpush.bf16.msra.mxu0 %v2230
    %2654 = vmatpush.bf16.msra.mxu0 %v2226
    %2655 = vmatpush.bf16.msra.mxu0 %v2222
    %2656 = vmatpush.bf16.msra.mxu0 %v2218
    %2657 = vmatpush.bf16.msra.mxu0 %v2214
    %2658 = vmatmul.bf16.gmra.mxu0 %v1048
    %v2659 = vpop.f32.mrf.mxu0
    %v2660 = vadd.f32 %v2647, %v2659
    %v2661 = vpop.f32.mrf.mxu0
    %2662 = vdwg.mxu0
    %2663 = vmatpush.bf16.msra.mxu0 %v2274
    %2664 = vmatpush.bf16.msra.mxu0 %v2270
    %2665 = vmatpush.bf16.msra.mxu0 %v2266
    %2666 = vmatpush.bf16.msra.mxu0 %v2262
    %2667 = vmatpush.bf16.msra.mxu0 %v2258
    %2668 = vmatpush.bf16.msra.mxu0 %v2254
    %2669 = vmatpush.bf16.msra.mxu0 %v2250
    %2670 = vmatpush.bf16.msra.mxu0 %v2246
    %2671 = vmatmul.bf16.gmra.mxu0 %v1049
    %v2672 = vpop.f32.mrf.mxu0
    %v2673 = vadd.f32 %v2660, %v2672
    %v2674 = vpop.f32.mrf.mxu0
    %2675 = vdwg.mxu0
    %2676 = vmatpush.bf16.msra.mxu0 %v2306
    %2677 = vmatpush.bf16.msra.mxu0 %v2302
    %2678 = vmatpush.bf16.msra.mxu0 %v2298
    %2679 = vmatpush.bf16.msra.mxu0 %v2294
    %2680 = vmatpush.bf16.msra.mxu0 %v2290
    %2681 = vmatpush.bf16.msra.mxu0 %v2286
    %2682 = vmatpush.bf16.msra.mxu0 %v2282
    %2683 = vmatpush.bf16.msra.mxu0 %v2278
    %2684 = vmatmul.bf16.gmra.mxu0 %v1050
    %v2685 = vpop.f32.mrf.mxu0
    %v2686 = vadd.f32 %v2673, %v2685
    %v2687 = vpop.f32.mrf.mxu0
    %2688 = vdwg.mxu0
    %2689 = vmatpush.bf16.msra.mxu0 %v2338
    %2690 = vmatpush.bf16.msra.mxu0 %v2334
    %2691 = vmatpush.bf16.msra.mxu0 %v2330
    %2692 = vmatpush.bf16.msra.mxu0 %v2326
    %2693 = vmatpush.bf16.msra.mxu0 %v2322
    %2694 = vmatpush.bf16.msra.mxu0 %v2318
    %2695 = vmatpush.bf16.msra.mxu0 %v2314
    %2696 = vmatpush.bf16.msra.mxu0 %v2310
    %2697 = vmatmul.bf16.gmra.mxu0 %v1051
    %v2698 = vpop.f32.mrf.mxu0
    %v2699 = vadd.f32 %v2686, %v2698
    %v2700 = vpop.f32.mrf.mxu0
    %2701 = vdwg.mxu0
    %2702 = vmatpush.bf16.msra.mxu0 %v2115
    %2703 = vmatpush.bf16.msra.mxu0 %v2111
    %2704 = vmatpush.bf16.msra.mxu0 %v2107
    %2705 = vmatpush.bf16.msra.mxu0 %v2103
    %2706 = vmatpush.bf16.msra.mxu0 %v2099
    %2707 = vmatpush.bf16.msra.mxu0 %v2095
    %2708 = vmatpush.bf16.msra.mxu0 %v2091
    %2709 = vmatpush.bf16.msra.mxu0 %v2087
    %2710 = vmatmul.bf16.gmra.mxu0 %v1044
    %v2711 = vpop.f32.mrf.mxu0
    %v2712 = vadd.f32 %v1311, %v2711
    %v2713 = vpop.f32.mrf.mxu0
    %2714 = vdwg.mxu0
    %2715 = vmatpush.bf16.msra.mxu0 %v2147
    %2716 = vmatpush.bf16.msra.mxu0 %v2143
    %2717 = vmatpush.bf16.msra.mxu0 %v2139
    %2718 = vmatpush.bf16.msra.mxu0 %v2135
    %2719 = vmatpush.bf16.msra.mxu0 %v2131
    %2720 = vmatpush.bf16.msra.mxu0 %v2127
    %2721 = vmatpush.bf16.msra.mxu0 %v2123
    %2722 = vmatpush.bf16.msra.mxu0 %v2119
    %2723 = vmatmul.bf16.gmra.mxu0 %v1045
    %v2724 = vpop.f32.mrf.mxu0
    %v2725 = vadd.f32 %v2712, %v2724
    %v2726 = vpop.f32.mrf.mxu0
    %2727 = vdwg.mxu0
    %2728 = vmatpush.bf16.msra.mxu0 %v2179
    %2729 = vmatpush.bf16.msra.mxu0 %v2175
    %2730 = vmatpush.bf16.msra.mxu0 %v2171
    %2731 = vmatpush.bf16.msra.mxu0 %v2167
    %2732 = vmatpush.bf16.msra.mxu0 %v2163
    %2733 = vmatpush.bf16.msra.mxu0 %v2159
    %2734 = vmatpush.bf16.msra.mxu0 %v2155
    %2735 = vmatpush.bf16.msra.mxu0 %v2151
    %2736 = vmatmul.bf16.gmra.mxu0 %v1046
    %v2737 = vpop.f32.mrf.mxu0
    %v2738 = vadd.f32 %v2725, %v2737
    %v2739 = vpop.f32.mrf.mxu0
    %2740 = vdwg.mxu0
    %2741 = vmatpush.bf16.msra.mxu0 %v2211
    %2742 = vmatpush.bf16.msra.mxu0 %v2207
    %2743 = vmatpush.bf16.msra.mxu0 %v2203
    %2744 = vmatpush.bf16.msra.mxu0 %v2199
    %2745 = vmatpush.bf16.msra.mxu0 %v2195
    %2746 = vmatpush.bf16.msra.mxu0 %v2191
    %2747 = vmatpush.bf16.msra.mxu0 %v2187
    %2748 = vmatpush.bf16.msra.mxu0 %v2183
    %2749 = vmatmul.bf16.gmra.mxu0 %v1047
    %v2750 = vpop.f32.mrf.mxu0
    %v2751 = vadd.f32 %v2738, %v2750
    %v2752 = vpop.f32.mrf.mxu0
    %2753 = vdwg.mxu0
    %2754 = vmatpush.bf16.msra.mxu0 %v2243
    %2755 = vmatpush.bf16.msra.mxu0 %v2239
    %2756 = vmatpush.bf16.msra.mxu0 %v2235
    %2757 = vmatpush.bf16.msra.mxu0 %v2231
    %2758 = vmatpush.bf16.msra.mxu0 %v2227
    %2759 = vmatpush.bf16.msra.mxu0 %v2223
    %2760 = vmatpush.bf16.msra.mxu0 %v2219
    %2761 = vmatpush.bf16.msra.mxu0 %v2215
    %2762 = vmatmul.bf16.gmra.mxu0 %v1048
    %v2763 = vpop.f32.mrf.mxu0
    %v2764 = vadd.f32 %v2751, %v2763
    %v2765 = vpop.f32.mrf.mxu0
    %2766 = vdwg.mxu0
    %2767 = vmatpush.bf16.msra.mxu0 %v2275
    %2768 = vmatpush.bf16.msra.mxu0 %v2271
    %2769 = vmatpush.bf16.msra.mxu0 %v2267
    %2770 = vmatpush.bf16.msra.mxu0 %v2263
    %2771 = vmatpush.bf16.msra.mxu0 %v2259
    %2772 = vmatpush.bf16.msra.mxu0 %v2255
    %2773 = vmatpush.bf16.msra.mxu0 %v2251
    %2774 = vmatpush.bf16.msra.mxu0 %v2247
    %2775 = vmatmul.bf16.gmra.mxu0 %v1049
    %v2776 = vpop.f32.mrf.mxu0
    %v2777 = vadd.f32 %v2764, %v2776
    %v2778 = vpop.f32.mrf.mxu0
    %2779 = vdwg.mxu0
    %2780 = vmatpush.bf16.msra.mxu0 %v2307
    %2781 = vmatpush.bf16.msra.mxu0 %v2303
    %2782 = vmatpush.bf16.msra.mxu0 %v2299
    %2783 = vmatpush.bf16.msra.mxu0 %v2295
    %2784 = vmatpush.bf16.msra.mxu0 %v2291
    %2785 = vmatpush.bf16.msra.mxu0 %v2287
    %2786 = vmatpush.bf16.msra.mxu0 %v2283
    %2787 = vmatpush.bf16.msra.mxu0 %v2279
    %2788 = vmatmul.bf16.gmra.mxu0 %v1050
    %v2789 = vpop.f32.mrf.mxu0
    %v2790 = vadd.f32 %v2777, %v2789
    %v2791 = vpop.f32.mrf.mxu0
    %2792 = vdwg.mxu0
    %2793 = vmatpush.bf16.msra.mxu0 %v2339
    %2794 = vmatpush.bf16.msra.mxu0 %v2335
    %2795 = vmatpush.bf16.msra.mxu0 %v2331
    %2796 = vmatpush.bf16.msra.mxu0 %v2327
    %2797 = vmatpush.bf16.msra.mxu0 %v2323
    %2798 = vmatpush.bf16.msra.mxu0 %v2319
    %2799 = vmatpush.bf16.msra.mxu0 %v2315
    %2800 = vmatpush.bf16.msra.mxu0 %v2311
    %2801 = vmatmul.bf16.gmra.mxu0 %v1051
    %v2802 = vpop.f32.mrf.mxu0
    %v2803 = vadd.f32 %v2790, %v2802
    %v2804 = vpop.f32.mrf.mxu0
    %2805 = vdwg.mxu0
    %2806 = vmatpush.bf16.msra.mxu0 %v2116
    %2807 = vmatpush.bf16.msra.mxu0 %v2112
    %2808 = vmatpush.bf16.msra.mxu0 %v2108
    %2809 = vmatpush.bf16.msra.mxu0 %v2104
    %2810 = vmatpush.bf16.msra.mxu0 %v2100
    %2811 = vmatpush.bf16.msra.mxu0 %v2096
    %2812 = vmatpush.bf16.msra.mxu0 %v2092
    %2813 = vmatpush.bf16.msra.mxu0 %v2088
    %2814 = vmatmul.bf16.gmra.mxu0 %v1044
    %v2815 = vpop.f32.mrf.mxu0
    %v2816 = vadd.f32 %v1312, %v2815
    %v2817 = vpop.f32.mrf.mxu0
    %2818 = vdwg.mxu0
    %2819 = vmatpush.bf16.msra.mxu0 %v2148
    %2820 = vmatpush.bf16.msra.mxu0 %v2144
    %2821 = vmatpush.bf16.msra.mxu0 %v2140
    %2822 = vmatpush.bf16.msra.mxu0 %v2136
    %2823 = vmatpush.bf16.msra.mxu0 %v2132
    %2824 = vmatpush.bf16.msra.mxu0 %v2128
    %2825 = vmatpush.bf16.msra.mxu0 %v2124
    %2826 = vmatpush.bf16.msra.mxu0 %v2120
    %2827 = vmatmul.bf16.gmra.mxu0 %v1045
    %v2828 = vpop.f32.mrf.mxu0
    %v2829 = vadd.f32 %v2816, %v2828
    %v2830 = vpop.f32.mrf.mxu0
    %2831 = vdwg.mxu0
    %2832 = vmatpush.bf16.msra.mxu0 %v2180
    %2833 = vmatpush.bf16.msra.mxu0 %v2176
    %2834 = vmatpush.bf16.msra.mxu0 %v2172
    %2835 = vmatpush.bf16.msra.mxu0 %v2168
    %2836 = vmatpush.bf16.msra.mxu0 %v2164
    %2837 = vmatpush.bf16.msra.mxu0 %v2160
    %2838 = vmatpush.bf16.msra.mxu0 %v2156
    %2839 = vmatpush.bf16.msra.mxu0 %v2152
    %2840 = vmatmul.bf16.gmra.mxu0 %v1046
    %v2841 = vpop.f32.mrf.mxu0
    %v2842 = vadd.f32 %v2829, %v2841
    %v2843 = vpop.f32.mrf.mxu0
    %2844 = vdwg.mxu0
    %2845 = vmatpush.bf16.msra.mxu0 %v2212
    %2846 = vmatpush.bf16.msra.mxu0 %v2208
    %2847 = vmatpush.bf16.msra.mxu0 %v2204
    %2848 = vmatpush.bf16.msra.mxu0 %v2200
    %2849 = vmatpush.bf16.msra.mxu0 %v2196
    %2850 = vmatpush.bf16.msra.mxu0 %v2192
    %2851 = vmatpush.bf16.msra.mxu0 %v2188
    %2852 = vmatpush.bf16.msra.mxu0 %v2184
    %2853 = vmatmul.bf16.gmra.mxu0 %v1047
    %v2854 = vpop.f32.mrf.mxu0
    %v2855 = vadd.f32 %v2842, %v2854
    %v2856 = vpop.f32.mrf.mxu0
    %2857 = vdwg.mxu0
    %2858 = vmatpush.bf16.msra.mxu0 %v2244
    %2859 = vmatpush.bf16.msra.mxu0 %v2240
    %2860 = vmatpush.bf16.msra.mxu0 %v2236
    %2861 = vmatpush.bf16.msra.mxu0 %v2232
    %2862 = vmatpush.bf16.msra.mxu0 %v2228
    %2863 = vmatpush.bf16.msra.mxu0 %v2224
    %2864 = vmatpush.bf16.msra.mxu0 %v2220
    %2865 = vmatpush.bf16.msra.mxu0 %v2216
    %2866 = vmatmul.bf16.gmra.mxu0 %v1048
    %v2867 = vpop.f32.mrf.mxu0
    %v2868 = vadd.f32 %v2855, %v2867
    %v2869 = vpop.f32.mrf.mxu0
    %2870 = vdwg.mxu0
    %2871 = vmatpush.bf16.msra.mxu0 %v2276
    %2872 = vmatpush.bf16.msra.mxu0 %v2272
    %2873 = vmatpush.bf16.msra.mxu0 %v2268
    %2874 = vmatpush.bf16.msra.mxu0 %v2264
    %2875 = vmatpush.bf16.msra.mxu0 %v2260
    %2876 = vmatpush.bf16.msra.mxu0 %v2256
    %2877 = vmatpush.bf16.msra.mxu0 %v2252
    %2878 = vmatpush.bf16.msra.mxu0 %v2248
    %2879 = vmatmul.bf16.gmra.mxu0 %v1049
    %v2880 = vpop.f32.mrf.mxu0
    %v2881 = vadd.f32 %v2868, %v2880
    %v2882 = vpop.f32.mrf.mxu0
    %2883 = vdwg.mxu0
    %2884 = vmatpush.bf16.msra.mxu0 %v2308
    %2885 = vmatpush.bf16.msra.mxu0 %v2304
    %2886 = vmatpush.bf16.msra.mxu0 %v2300
    %2887 = vmatpush.bf16.msra.mxu0 %v2296
    %2888 = vmatpush.bf16.msra.mxu0 %v2292
    %2889 = vmatpush.bf16.msra.mxu0 %v2288
    %2890 = vmatpush.bf16.msra.mxu0 %v2284
    %2891 = vmatpush.bf16.msra.mxu0 %v2280
    %2892 = vmatmul.bf16.gmra.mxu0 %v1050
    %v2893 = vpop.f32.mrf.mxu0
    %v2894 = vadd.f32 %v2881, %v2893
    %v2895 = vpop.f32.mrf.mxu0
    %2896 = vdwg.mxu0
    %2897 = vmatpush.bf16.msra.mxu0 %v2340
    %2898 = vmatpush.bf16.msra.mxu0 %v2336
    %2899 = vmatpush.bf16.msra.mxu0 %v2332
    %2900 = vmatpush.bf16.msra.mxu0 %v2328
    %2901 = vmatpush.bf16.msra.mxu0 %v2324
    %2902 = vmatpush.bf16.msra.mxu0 %v2320
    %2903 = vmatpush.bf16.msra.mxu0 %v2316
    %2904 = vmatpush.bf16.msra.mxu0 %v2312
    %2905 = vmatmul.bf16.gmra.mxu0 %v1051
    %v2906 = vpop.f32.mrf.mxu0
    %v2907 = vadd.f32 %v2894, %v2906
    %v2908 = vpop.f32.mrf.mxu0
    %2909 = vdwg.mxu0
    %2910 = vmatpush.bf16.msra.mxu0 %v2117
    %2911 = vmatpush.bf16.msra.mxu0 %v2113
    %2912 = vmatpush.bf16.msra.mxu0 %v2109
    %2913 = vmatpush.bf16.msra.mxu0 %v2105
    %2914 = vmatpush.bf16.msra.mxu0 %v2101
    %2915 = vmatpush.bf16.msra.mxu0 %v2097
    %2916 = vmatpush.bf16.msra.mxu0 %v2093
    %2917 = vmatpush.bf16.msra.mxu0 %v2089
    %2918 = vmatmul.bf16.gmra.mxu0 %v1044
    %v2919 = vpop.f32.mrf.mxu0
    %v2920 = vadd.f32 %v1313, %v2919
    %v2921 = vpop.f32.mrf.mxu0
    %2922 = vdwg.mxu0
    %2923 = vmatpush.bf16.msra.mxu0 %v2149
    %2924 = vmatpush.bf16.msra.mxu0 %v2145
    %2925 = vmatpush.bf16.msra.mxu0 %v2141
    %2926 = vmatpush.bf16.msra.mxu0 %v2137
    %2927 = vmatpush.bf16.msra.mxu0 %v2133
    %2928 = vmatpush.bf16.msra.mxu0 %v2129
    %2929 = vmatpush.bf16.msra.mxu0 %v2125
    %2930 = vmatpush.bf16.msra.mxu0 %v2121
    %2931 = vmatmul.bf16.gmra.mxu0 %v1045
    %v2932 = vpop.f32.mrf.mxu0
    %v2933 = vadd.f32 %v2920, %v2932
    %v2934 = vpop.f32.mrf.mxu0
    %2935 = vdwg.mxu0
    %2936 = vmatpush.bf16.msra.mxu0 %v2181
    %2937 = vmatpush.bf16.msra.mxu0 %v2177
    %2938 = vmatpush.bf16.msra.mxu0 %v2173
    %2939 = vmatpush.bf16.msra.mxu0 %v2169
    %2940 = vmatpush.bf16.msra.mxu0 %v2165
    %2941 = vmatpush.bf16.msra.mxu0 %v2161
    %2942 = vmatpush.bf16.msra.mxu0 %v2157
    %2943 = vmatpush.bf16.msra.mxu0 %v2153
    %2944 = vmatmul.bf16.gmra.mxu0 %v1046
    %v2945 = vpop.f32.mrf.mxu0
    %v2946 = vadd.f32 %v2933, %v2945
    %v2947 = vpop.f32.mrf.mxu0
    %2948 = vdwg.mxu0
    %2949 = vmatpush.bf16.msra.mxu0 %v2213
    %2950 = vmatpush.bf16.msra.mxu0 %v2209
    %2951 = vmatpush.bf16.msra.mxu0 %v2205
    %2952 = vmatpush.bf16.msra.mxu0 %v2201
    %2953 = vmatpush.bf16.msra.mxu0 %v2197
    %2954 = vmatpush.bf16.msra.mxu0 %v2193
    %2955 = vmatpush.bf16.msra.mxu0 %v2189
    %2956 = vmatpush.bf16.msra.mxu0 %v2185
    %2957 = vmatmul.bf16.gmra.mxu0 %v1047
    %v2958 = vpop.f32.mrf.mxu0
    %v2959 = vadd.f32 %v2946, %v2958
    %v2960 = vpop.f32.mrf.mxu0
    %2961 = vdwg.mxu0
    %2962 = vmatpush.bf16.msra.mxu0 %v2245
    %2963 = vmatpush.bf16.msra.mxu0 %v2241
    %2964 = vmatpush.bf16.msra.mxu0 %v2237
    %2965 = vmatpush.bf16.msra.mxu0 %v2233
    %2966 = vmatpush.bf16.msra.mxu0 %v2229
    %2967 = vmatpush.bf16.msra.mxu0 %v2225
    %2968 = vmatpush.bf16.msra.mxu0 %v2221
    %2969 = vmatpush.bf16.msra.mxu0 %v2217
    %2970 = vmatmul.bf16.gmra.mxu0 %v1048
    %v2971 = vpop.f32.mrf.mxu0
    %v2972 = vadd.f32 %v2959, %v2971
    %v2973 = vpop.f32.mrf.mxu0
    %2974 = vdwg.mxu0
    %2975 = vmatpush.bf16.msra.mxu0 %v2277
    %2976 = vmatpush.bf16.msra.mxu0 %v2273
    %2977 = vmatpush.bf16.msra.mxu0 %v2269
    %2978 = vmatpush.bf16.msra.mxu0 %v2265
    %2979 = vmatpush.bf16.msra.mxu0 %v2261
    %2980 = vmatpush.bf16.msra.mxu0 %v2257
    %2981 = vmatpush.bf16.msra.mxu0 %v2253
    %2982 = vmatpush.bf16.msra.mxu0 %v2249
    %2983 = vmatmul.bf16.gmra.mxu0 %v1049
    %v2984 = vpop.f32.mrf.mxu0
    %v2985 = vadd.f32 %v2972, %v2984
    %v2986 = vpop.f32.mrf.mxu0
    %2987 = vdwg.mxu0
    %2988 = vmatpush.bf16.msra.mxu0 %v2309
    %2989 = vmatpush.bf16.msra.mxu0 %v2305
    %2990 = vmatpush.bf16.msra.mxu0 %v2301
    %2991 = vmatpush.bf16.msra.mxu0 %v2297
    %2992 = vmatpush.bf16.msra.mxu0 %v2293
    %2993 = vmatpush.bf16.msra.mxu0 %v2289
    %2994 = vmatpush.bf16.msra.mxu0 %v2285
    %2995 = vmatpush.bf16.msra.mxu0 %v2281
    %2996 = vmatmul.bf16.gmra.mxu0 %v1050
    %v2997 = vpop.f32.mrf.mxu0
    %v2998 = vadd.f32 %v2985, %v2997
    %v2999 = vpop.f32.mrf.mxu0
    %3000 = vdwg.mxu0
    %3001 = vmatpush.bf16.msra.mxu0 %v2341
    %3002 = vmatpush.bf16.msra.mxu0 %v2337
    %3003 = vmatpush.bf16.msra.mxu0 %v2333
    %3004 = vmatpush.bf16.msra.mxu0 %v2329
    %3005 = vmatpush.bf16.msra.mxu0 %v2325
    %3006 = vmatpush.bf16.msra.mxu0 %v2321
    %3007 = vmatpush.bf16.msra.mxu0 %v2317
    %3008 = vmatpush.bf16.msra.mxu0 %v2313
    %3009 = vmatmul.bf16.gmra.mxu0 %v1051
    %v3010 = vpop.f32.mrf.mxu0
    %v3011 = vadd.f32 %v2998, %v3010
    %v3012 = vpop.f32.mrf.mxu0
    %3013 = vdwg.mxu0
    %v3014 = vmax.f32 %v2699, 0.0
    %v3015 = vmax.f32 %v2803, 0.0
    %v3016 = vmax.f32 %v2907, 0.0
    %v3017 = vmax.f32 %v3011, 0.0
    %v3018 = vpack.c.bf16 %v3014, %v3014
    %v3019 = vpack.c.bf16 %v3015, %v3015
    %v3020 = vpack.c.bf16 %v3016, %v3016
    %v3021 = vpack.c.bf16 %v3017, %v3017
    %v3022 = vld [vmem:[#allocation10] sm:$0xff]
    %v3023 = vld [vmem:[#allocation10 + $0x8] sm:$0xff]
    %v3024 = vld [vmem:[#allocation10 + $0x10] sm:$0xff]
    %v3025 = vld [vmem:[#allocation10 + $0x18] sm:$0xff]
    %v3026 = vld [vmem:[#allocation10 + $0x20] sm:$0xff]
    %v3027 = vld [vmem:[#allocation10 + $0x28] sm:$0xff]
    %v3028 = vld [vmem:[#allocation10 + $0x30] sm:$0xff]
    %v3029 = vld [vmem:[#allocation10 + $0x38] sm:$0xff]
    %v3030 = vld [vmem:[#allocation10 + $0x40] sm:$0xff]
    %v3031 = vld [vmem:[#allocation10 + $0x48] sm:$0xff]
    %v3032 = vld [vmem:[#allocation10 + $0x50] sm:$0xff]
    %v3033 = vld [vmem:[#allocation10 + $0x58] sm:$0xff]
    %v3034 = vld [vmem:[#allocation10 + $0x60] sm:$0xff]
    %v3035 = vld [vmem:[#allocation10 + $0x68] sm:$0xff]
    %v3036 = vld [vmem:[#allocation10 + $0x70] sm:$0xff]
    %v3037 = vld [vmem:[#allocation10 + $0x78] sm:$0xff]
    %v3038 = vld [vmem:[#allocation10 + $0x80] sm:$0xff]
    %v3039 = vld [vmem:[#allocation10 + $0x88] sm:$0xff]
    %v3040 = vld [vmem:[#allocation10 + $0x90] sm:$0xff]
    %v3041 = vld [vmem:[#allocation10 + $0x98] sm:$0xff]
    %v3042 = vld [vmem:[#allocation10 + $0xa0] sm:$0xff]
    %v3043 = vld [vmem:[#allocation10 + $0xa8] sm:$0xff]
    %v3044 = vld [vmem:[#allocation10 + $0xb0] sm:$0xff]
    %v3045 = vld [vmem:[#allocation10 + $0xb8] sm:$0xff]
    %v3046 = vld [vmem:[#allocation10 + $0xc0] sm:$0xff]
    %v3047 = vld [vmem:[#allocation10 + $0xc8] sm:$0xff]
    %v3048 = vld [vmem:[#allocation10 + $0xd0] sm:$0xff]
    %v3049 = vld [vmem:[#allocation10 + $0xd8] sm:$0xff]
    %v3050 = vld [vmem:[#allocation10 + $0xe0] sm:$0xff]
    %v3051 = vld [vmem:[#allocation10 + $0xe8] sm:$0xff]
    %v3052 = vld [vmem:[#allocation10 + $0xf0] sm:$0xff]
    %v3053 = vld [vmem:[#allocation10 + $0xf8] sm:$0xff]
    %v3054 = vld [vmem:[#allocation10 + $0x100] sm:$0xff]
    %v3055 = vld [vmem:[#allocation10 + $0x108] sm:$0xff]
    %v3056 = vld [vmem:[#allocation10 + $0x110] sm:$0xff]
    %v3057 = vld [vmem:[#allocation10 + $0x118] sm:$0xff]
    %v3058 = vld [vmem:[#allocation10 + $0x120] sm:$0xff]
    %v3059 = vld [vmem:[#allocation10 + $0x128] sm:$0xff]
    %v3060 = vld [vmem:[#allocation10 + $0x130] sm:$0xff]
    %v3061 = vld [vmem:[#allocation10 + $0x138] sm:$0xff]
    %v3062 = vld [vmem:[#allocation10 + $0x140] sm:$0xff]
    %v3063 = vld [vmem:[#allocation10 + $0x148] sm:$0xff]
    %v3064 = vld [vmem:[#allocation10 + $0x150] sm:$0xff]
    %v3065 = vld [vmem:[#allocation10 + $0x158] sm:$0xff]
    %v3066 = vld [vmem:[#allocation10 + $0x160] sm:$0xff]
    %v3067 = vld [vmem:[#allocation10 + $0x168] sm:$0xff]
    %v3068 = vld [vmem:[#allocation10 + $0x170] sm:$0xff]
    %v3069 = vld [vmem:[#allocation10 + $0x178] sm:$0xff]
    %v3070 = vld [vmem:[#allocation10 + $0x180] sm:$0xff]
    %v3071 = vld [vmem:[#allocation10 + $0x188] sm:$0xff]
    %v3072 = vld [vmem:[#allocation10 + $0x190] sm:$0xff]
    %v3073 = vld [vmem:[#allocation10 + $0x198] sm:$0xff]
    %v3074 = vld [vmem:[#allocation10 + $0x1a0] sm:$0xff]
    %v3075 = vld [vmem:[#allocation10 + $0x1a8] sm:$0xff]
    %v3076 = vld [vmem:[#allocation10 + $0x1b0] sm:$0xff]
    %v3077 = vld [vmem:[#allocation10 + $0x1b8] sm:$0xff]
    %v3078 = vld [vmem:[#allocation10 + $0x1c0] sm:$0xff]
    %v3079 = vld [vmem:[#allocation10 + $0x1c8] sm:$0xff]
    %v3080 = vld [vmem:[#allocation10 + $0x1d0] sm:$0xff]
    %v3081 = vld [vmem:[#allocation10 + $0x1d8] sm:$0xff]
    %v3082 = vld [vmem:[#allocation10 + $0x1e0] sm:$0xff]
    %v3083 = vld [vmem:[#allocation10 + $0x1e8] sm:$0xff]
    %v3084 = vld [vmem:[#allocation10 + $0x1f0] sm:$0xff]
    %v3085 = vld [vmem:[#allocation10 + $0x1f8] sm:$0xff]
    %v3086 = vld [vmem:[#allocation10 + $0x200] sm:$0xff]
    %v3087 = vld [vmem:[#allocation10 + $0x208] sm:$0xff]
    %v3088 = vld [vmem:[#allocation10 + $0x210] sm:$0xff]
    %v3089 = vld [vmem:[#allocation10 + $0x218] sm:$0xff]
    %v3090 = vld [vmem:[#allocation10 + $0x220] sm:$0xff]
    %v3091 = vld [vmem:[#allocation10 + $0x228] sm:$0xff]
    %v3092 = vld [vmem:[#allocation10 + $0x230] sm:$0xff]
    %v3093 = vld [vmem:[#allocation10 + $0x238] sm:$0xff]
    %v3094 = vld [vmem:[#allocation10 + $0x240] sm:$0xff]
    %v3095 = vld [vmem:[#allocation10 + $0x248] sm:$0xff]
    %v3096 = vld [vmem:[#allocation10 + $0x250] sm:$0xff]
    %v3097 = vld [vmem:[#allocation10 + $0x258] sm:$0xff]
    %v3098 = vld [vmem:[#allocation10 + $0x260] sm:$0xff]
    %v3099 = vld [vmem:[#allocation10 + $0x268] sm:$0xff]
    %v3100 = vld [vmem:[#allocation10 + $0x270] sm:$0xff]
    %v3101 = vld [vmem:[#allocation10 + $0x278] sm:$0xff]
    %v3102 = vld [vmem:[#allocation10 + $0x280] sm:$0xff]
    %v3103 = vld [vmem:[#allocation10 + $0x288] sm:$0xff]
    %v3104 = vld [vmem:[#allocation10 + $0x290] sm:$0xff]
    %v3105 = vld [vmem:[#allocation10 + $0x298] sm:$0xff]
    %v3106 = vld [vmem:[#allocation10 + $0x2a0] sm:$0xff]
    %v3107 = vld [vmem:[#allocation10 + $0x2a8] sm:$0xff]
    %v3108 = vld [vmem:[#allocation10 + $0x2b0] sm:$0xff]
    %v3109 = vld [vmem:[#allocation10 + $0x2b8] sm:$0xff]
    %v3110 = vld [vmem:[#allocation10 + $0x2c0] sm:$0xff]
    %v3111 = vld [vmem:[#allocation10 + $0x2c8] sm:$0xff]
    %v3112 = vld [vmem:[#allocation10 + $0x2d0] sm:$0xff]
    %v3113 = vld [vmem:[#allocation10 + $0x2d8] sm:$0xff]
    %v3114 = vld [vmem:[#allocation10 + $0x2e0] sm:$0xff]
    %v3115 = vld [vmem:[#allocation10 + $0x2e8] sm:$0xff]
    %v3116 = vld [vmem:[#allocation10 + $0x2f0] sm:$0xff]
    %v3117 = vld [vmem:[#allocation10 + $0x2f8] sm:$0xff]
    %v3118 = vld [vmem:[#allocation10 + $0x300] sm:$0xff]
    %v3119 = vld [vmem:[#allocation10 + $0x308] sm:$0xff]
    %v3120 = vld [vmem:[#allocation10 + $0x310] sm:$0xff]
    %v3121 = vld [vmem:[#allocation10 + $0x318] sm:$0xff]
    %v3122 = vld [vmem:[#allocation10 + $0x320] sm:$0xff]
    %v3123 = vld [vmem:[#allocation10 + $0x328] sm:$0xff]
    %v3124 = vld [vmem:[#allocation10 + $0x330] sm:$0xff]
    %v3125 = vld [vmem:[#allocation10 + $0x338] sm:$0xff]
    %v3126 = vld [vmem:[#allocation10 + $0x340] sm:$0xff]
    %v3127 = vld [vmem:[#allocation10 + $0x348] sm:$0xff]
    %v3128 = vld [vmem:[#allocation10 + $0x350] sm:$0xff]
    %v3129 = vld [vmem:[#allocation10 + $0x358] sm:$0xff]
    %v3130 = vld [vmem:[#allocation10 + $0x360] sm:$0xff]
    %v3131 = vld [vmem:[#allocation10 + $0x368] sm:$0xff]
    %v3132 = vld [vmem:[#allocation10 + $0x370] sm:$0xff]
    %v3133 = vld [vmem:[#allocation10 + $0x378] sm:$0xff]
    %v3134 = vld [vmem:[#allocation10 + $0x380] sm:$0xff]
    %v3135 = vld [vmem:[#allocation10 + $0x388] sm:$0xff]
    %v3136 = vld [vmem:[#allocation10 + $0x390] sm:$0xff]
    %v3137 = vld [vmem:[#allocation10 + $0x398] sm:$0xff]
    %v3138 = vld [vmem:[#allocation10 + $0x3a0] sm:$0xff]
    %v3139 = vld [vmem:[#allocation10 + $0x3a8] sm:$0xff]
    %v3140 = vld [vmem:[#allocation10 + $0x3b0] sm:$0xff]
    %v3141 = vld [vmem:[#allocation10 + $0x3b8] sm:$0xff]
    %v3142 = vld [vmem:[#allocation10 + $0x3c0] sm:$0xff]
    %v3143 = vld [vmem:[#allocation10 + $0x3c8] sm:$0xff]
    %v3144 = vld [vmem:[#allocation10 + $0x3d0] sm:$0xff]
    %v3145 = vld [vmem:[#allocation10 + $0x3d8] sm:$0xff]
    %v3146 = vld [vmem:[#allocation10 + $0x3e0] sm:$0xff]
    %v3147 = vld [vmem:[#allocation10 + $0x3e8] sm:$0xff]
    %v3148 = vld [vmem:[#allocation10 + $0x3f0] sm:$0xff]
    %v3149 = vld [vmem:[#allocation10 + $0x3f8] sm:$0xff]
    %v3150 = vld [vmem:[%s2 + $0xf] sm:$0xf]
    %v3152 = vperm.slane %v3150, 0
    %v3153 = vperm.slane %v3150, 1
    %v3154 = vperm.slane %v3150, 2
    %v3155 = vperm.slane %v3150, 3
    %v3288 = vunpack.c.l.b16 %v3022
    %v3289 = vunpack.c.h.b16 %v3022
    %v3290 = vunpack.c.l.b16 %v3023
    %v3291 = vunpack.c.h.b16 %v3023
    %v3292 = vunpack.c.l.b16 %v3024
    %v3293 = vunpack.c.h.b16 %v3024
    %v3294 = vunpack.c.l.b16 %v3025
    %v3295 = vunpack.c.h.b16 %v3025
    %v3296 = vunpack.c.l.b16 %v3026
    %v3297 = vunpack.c.h.b16 %v3026
    %v3298 = vunpack.c.l.b16 %v3027
    %v3299 = vunpack.c.h.b16 %v3027
    %v3300 = vunpack.c.l.b16 %v3028
    %v3301 = vunpack.c.h.b16 %v3028
    %v3302 = vunpack.c.l.b16 %v3029
    %v3303 = vunpack.c.h.b16 %v3029
    %v3304 = vunpack.c.l.b16 %v3030
    %v3305 = vunpack.c.h.b16 %v3030
    %v3306 = vunpack.c.l.b16 %v3031
    %v3307 = vunpack.c.h.b16 %v3031
    %v3308 = vunpack.c.l.b16 %v3032
    %v3309 = vunpack.c.h.b16 %v3032
    %v3310 = vunpack.c.l.b16 %v3033
    %v3311 = vunpack.c.h.b16 %v3033
    %v3312 = vunpack.c.l.b16 %v3034
    %v3313 = vunpack.c.h.b16 %v3034
    %v3314 = vunpack.c.l.b16 %v3035
    %v3315 = vunpack.c.h.b16 %v3035
    %v3316 = vunpack.c.l.b16 %v3036
    %v3317 = vunpack.c.h.b16 %v3036
    %v3318 = vunpack.c.l.b16 %v3037
    %v3319 = vunpack.c.h.b16 %v3037
    %v3320 = vunpack.c.l.b16 %v3038
    %v3321 = vunpack.c.h.b16 %v3038
    %v3322 = vunpack.c.l.b16 %v3039
    %v3323 = vunpack.c.h.b16 %v3039
    %v3324 = vunpack.c.l.b16 %v3040
    %v3325 = vunpack.c.h.b16 %v3040
    %v3326 = vunpack.c.l.b16 %v3041
    %v3327 = vunpack.c.h.b16 %v3041
    %v3328 = vunpack.c.l.b16 %v3042
    %v3329 = vunpack.c.h.b16 %v3042
    %v3330 = vunpack.c.l.b16 %v3043
    %v3331 = vunpack.c.h.b16 %v3043
    %v3332 = vunpack.c.l.b16 %v3044
    %v3333 = vunpack.c.h.b16 %v3044
    %v3334 = vunpack.c.l.b16 %v3045
    %v3335 = vunpack.c.h.b16 %v3045
    %v3336 = vunpack.c.l.b16 %v3046
    %v3337 = vunpack.c.h.b16 %v3046
    %v3338 = vunpack.c.l.b16 %v3047
    %v3339 = vunpack.c.h.b16 %v3047
    %v3340 = vunpack.c.l.b16 %v3048
    %v3341 = vunpack.c.h.b16 %v3048
    %v3342 = vunpack.c.l.b16 %v3049
    %v3343 = vunpack.c.h.b16 %v3049
    %v3344 = vunpack.c.l.b16 %v3050
    %v3345 = vunpack.c.h.b16 %v3050
    %v3346 = vunpack.c.l.b16 %v3051
    %v3347 = vunpack.c.h.b16 %v3051
    %v3348 = vunpack.c.l.b16 %v3052
    %v3349 = vunpack.c.h.b16 %v3052
    %v3350 = vunpack.c.l.b16 %v3053
    %v3351 = vunpack.c.h.b16 %v3053
    %v3352 = vunpack.c.l.b16 %v3054
    %v3353 = vunpack.c.h.b16 %v3054
    %v3354 = vunpack.c.l.b16 %v3055
    %v3355 = vunpack.c.h.b16 %v3055
    %v3356 = vunpack.c.l.b16 %v3056
    %v3357 = vunpack.c.h.b16 %v3056
    %v3358 = vunpack.c.l.b16 %v3057
    %v3359 = vunpack.c.h.b16 %v3057
    %v3360 = vunpack.c.l.b16 %v3058
    %v3361 = vunpack.c.h.b16 %v3058
    %v3362 = vunpack.c.l.b16 %v3059
    %v3363 = vunpack.c.h.b16 %v3059
    %v3364 = vunpack.c.l.b16 %v3060
    %v3365 = vunpack.c.h.b16 %v3060
    %v3366 = vunpack.c.l.b16 %v3061
    %v3367 = vunpack.c.h.b16 %v3061
    %v3368 = vunpack.c.l.b16 %v3062
    %v3369 = vunpack.c.h.b16 %v3062
    %v3370 = vunpack.c.l.b16 %v3063
    %v3371 = vunpack.c.h.b16 %v3063
    %v3372 = vunpack.c.l.b16 %v3064
    %v3373 = vunpack.c.h.b16 %v3064
    %v3374 = vunpack.c.l.b16 %v3065
    %v3375 = vunpack.c.h.b16 %v3065
    %v3376 = vunpack.c.l.b16 %v3066
    %v3377 = vunpack.c.h.b16 %v3066
    %v3378 = vunpack.c.l.b16 %v3067
    %v3379 = vunpack.c.h.b16 %v3067
    %v3380 = vunpack.c.l.b16 %v3068
    %v3381 = vunpack.c.h.b16 %v3068
    %v3382 = vunpack.c.l.b16 %v3069
    %v3383 = vunpack.c.h.b16 %v3069
    %v3384 = vunpack.c.l.b16 %v3070
    %v3385 = vunpack.c.h.b16 %v3070
    %v3386 = vunpack.c.l.b16 %v3071
    %v3387 = vunpack.c.h.b16 %v3071
    %v3388 = vunpack.c.l.b16 %v3072
    %v3389 = vunpack.c.h.b16 %v3072
    %v3390 = vunpack.c.l.b16 %v3073
    %v3391 = vunpack.c.h.b16 %v3073
    %v3392 = vunpack.c.l.b16 %v3074
    %v3393 = vunpack.c.h.b16 %v3074
    %v3394 = vunpack.c.l.b16 %v3075
    %v3395 = vunpack.c.h.b16 %v3075
    %v3396 = vunpack.c.l.b16 %v3076
    %v3397 = vunpack.c.h.b16 %v3076
    %v3398 = vunpack.c.l.b16 %v3077
    %v3399 = vunpack.c.h.b16 %v3077
    %v3400 = vunpack.c.l.b16 %v3078
    %v3401 = vunpack.c.h.b16 %v3078
    %v3402 = vunpack.c.l.b16 %v3079
    %v3403 = vunpack.c.h.b16 %v3079
    %v3404 = vunpack.c.l.b16 %v3080
    %v3405 = vunpack.c.h.b16 %v3080
    %v3406 = vunpack.c.l.b16 %v3081
    %v3407 = vunpack.c.h.b16 %v3081
    %v3408 = vunpack.c.l.b16 %v3082
    %v3409 = vunpack.c.h.b16 %v3082
    %v3410 = vunpack.c.l.b16 %v3083
    %v3411 = vunpack.c.h.b16 %v3083
    %v3412 = vunpack.c.l.b16 %v3084
    %v3413 = vunpack.c.h.b16 %v3084
    %v3414 = vunpack.c.l.b16 %v3085
    %v3415 = vunpack.c.h.b16 %v3085
    %v3416 = vunpack.c.l.b16 %v3086
    %v3417 = vunpack.c.h.b16 %v3086
    %v3418 = vunpack.c.l.b16 %v3087
    %v3419 = vunpack.c.h.b16 %v3087
    %v3420 = vunpack.c.l.b16 %v3088
    %v3421 = vunpack.c.h.b16 %v3088
    %v3422 = vunpack.c.l.b16 %v3089
    %v3423 = vunpack.c.h.b16 %v3089
    %v3424 = vunpack.c.l.b16 %v3090
    %v3425 = vunpack.c.h.b16 %v3090
    %v3426 = vunpack.c.l.b16 %v3091
    %v3427 = vunpack.c.h.b16 %v3091
    %v3428 = vunpack.c.l.b16 %v3092
    %v3429 = vunpack.c.h.b16 %v3092
    %v3430 = vunpack.c.l.b16 %v3093
    %v3431 = vunpack.c.h.b16 %v3093
    %v3432 = vunpack.c.l.b16 %v3094
    %v3433 = vunpack.c.h.b16 %v3094
    %v3434 = vunpack.c.l.b16 %v3095
    %v3435 = vunpack.c.h.b16 %v3095
    %v3436 = vunpack.c.l.b16 %v3096
    %v3437 = vunpack.c.h.b16 %v3096
    %v3438 = vunpack.c.l.b16 %v3097
    %v3439 = vunpack.c.h.b16 %v3097
    %v3440 = vunpack.c.l.b16 %v3098
    %v3441 = vunpack.c.h.b16 %v3098
    %v3442 = vunpack.c.l.b16 %v3099
    %v3443 = vunpack.c.h.b16 %v3099
    %v3444 = vunpack.c.l.b16 %v3100
    %v3445 = vunpack.c.h.b16 %v3100
    %v3446 = vunpack.c.l.b16 %v3101
    %v3447 = vunpack.c.h.b16 %v3101
    %v3448 = vunpack.c.l.b16 %v3102
    %v3449 = vunpack.c.h.b16 %v3102
    %v3450 = vunpack.c.l.b16 %v3103
    %v3451 = vunpack.c.h.b16 %v3103
    %v3452 = vunpack.c.l.b16 %v3104
    %v3453 = vunpack.c.h.b16 %v3104
    %v3454 = vunpack.c.l.b16 %v3105
    %v3455 = vunpack.c.h.b16 %v3105
    %v3456 = vunpack.c.l.b16 %v3106
    %v3457 = vunpack.c.h.b16 %v3106
    %v3458 = vunpack.c.l.b16 %v3107
    %v3459 = vunpack.c.h.b16 %v3107
    %v3460 = vunpack.c.l.b16 %v3108
    %v3461 = vunpack.c.h.b16 %v3108
    %v3462 = vunpack.c.l.b16 %v3109
    %v3463 = vunpack.c.h.b16 %v3109
    %v3464 = vunpack.c.l.b16 %v3110
    %v3465 = vunpack.c.h.b16 %v3110
    %v3466 = vunpack.c.l.b16 %v3111
    %v3467 = vunpack.c.h.b16 %v3111
    %v3468 = vunpack.c.l.b16 %v3112
    %v3469 = vunpack.c.h.b16 %v3112
    %v3470 = vunpack.c.l.b16 %v3113
    %v3471 = vunpack.c.h.b16 %v3113
    %v3472 = vunpack.c.l.b16 %v3114
    %v3473 = vunpack.c.h.b16 %v3114
    %v3474 = vunpack.c.l.b16 %v3115
    %v3475 = vunpack.c.h.b16 %v3115
    %v3476 = vunpack.c.l.b16 %v3116
    %v3477 = vunpack.c.h.b16 %v3116
    %v3478 = vunpack.c.l.b16 %v3117
    %v3479 = vunpack.c.h.b16 %v3117
    %v3480 = vunpack.c.l.b16 %v3118
    %v3481 = vunpack.c.h.b16 %v3118
    %v3482 = vunpack.c.l.b16 %v3119
    %v3483 = vunpack.c.h.b16 %v3119
    %v3484 = vunpack.c.l.b16 %v3120
    %v3485 = vunpack.c.h.b16 %v3120
    %v3486 = vunpack.c.l.b16 %v3121
    %v3487 = vunpack.c.h.b16 %v3121
    %v3488 = vunpack.c.l.b16 %v3122
    %v3489 = vunpack.c.h.b16 %v3122
    %v3490 = vunpack.c.l.b16 %v3123
    %v3491 = vunpack.c.h.b16 %v3123
    %v3492 = vunpack.c.l.b16 %v3124
    %v3493 = vunpack.c.h.b16 %v3124
    %v3494 = vunpack.c.l.b16 %v3125
    %v3495 = vunpack.c.h.b16 %v3125
    %v3496 = vunpack.c.l.b16 %v3126
    %v3497 = vunpack.c.h.b16 %v3126
    %v3498 = vunpack.c.l.b16 %v3127
    %v3499 = vunpack.c.h.b16 %v3127
    %v3500 = vunpack.c.l.b16 %v3128
    %v3501 = vunpack.c.h.b16 %v3128
    %v3502 = vunpack.c.l.b16 %v3129
    %v3503 = vunpack.c.h.b16 %v3129
    %v3504 = vunpack.c.l.b16 %v3130
    %v3505 = vunpack.c.h.b16 %v3130
    %v3506 = vunpack.c.l.b16 %v3131
    %v3507 = vunpack.c.h.b16 %v3131
    %v3508 = vunpack.c.l.b16 %v3132
    %v3509 = vunpack.c.h.b16 %v3132
    %v3510 = vunpack.c.l.b16 %v3133
    %v3511 = vunpack.c.h.b16 %v3133
    %v3512 = vunpack.c.l.b16 %v3134
    %v3513 = vunpack.c.h.b16 %v3134
    %v3514 = vunpack.c.l.b16 %v3135
    %v3515 = vunpack.c.h.b16 %v3135
    %v3516 = vunpack.c.l.b16 %v3136
    %v3517 = vunpack.c.h.b16 %v3136
    %v3518 = vunpack.c.l.b16 %v3137
    %v3519 = vunpack.c.h.b16 %v3137
    %v3520 = vunpack.c.l.b16 %v3138
    %v3521 = vunpack.c.h.b16 %v3138
    %v3522 = vunpack.c.l.b16 %v3139
    %v3523 = vunpack.c.h.b16 %v3139
    %v3524 = vunpack.c.l.b16 %v3140
    %v3525 = vunpack.c.h.b16 %v3140
    %v3526 = vunpack.c.l.b16 %v3141
    %v3527 = vunpack.c.h.b16 %v3141
    %v3528 = vunpack.c.l.b16 %v3142
    %v3529 = vunpack.c.h.b16 %v3142
    %v3530 = vunpack.c.l.b16 %v3143
    %v3531 = vunpack.c.h.b16 %v3143
    %v3532 = vunpack.c.l.b16 %v3144
    %v3533 = vunpack.c.h.b16 %v3144
    %v3534 = vunpack.c.l.b16 %v3145
    %v3535 = vunpack.c.h.b16 %v3145
    %v3536 = vunpack.c.l.b16 %v3146
    %v3537 = vunpack.c.h.b16 %v3146
    %v3538 = vunpack.c.l.b16 %v3147
    %v3539 = vunpack.c.h.b16 %v3147
    %v3540 = vunpack.c.l.b16 %v3148
    %v3541 = vunpack.c.h.b16 %v3148
    %v3542 = vunpack.c.l.b16 %v3149
    %v3543 = vunpack.c.h.b16 %v3149
    %v3544 = vpack.c.b16 %v3292, %v3288
    %v3545 = vpack.c.b16 %v3293, %v3289
    %v3546 = vpack.c.b16 %v3294, %v3290
    %v3547 = vpack.c.b16 %v3295, %v3291
    %v3548 = vpack.c.b16 %v3300, %v3296
    %v3549 = vpack.c.b16 %v3301, %v3297
    %v3550 = vpack.c.b16 %v3302, %v3298
    %v3551 = vpack.c.b16 %v3303, %v3299
    %v3552 = vpack.c.b16 %v3308, %v3304
    %v3553 = vpack.c.b16 %v3309, %v3305
    %v3554 = vpack.c.b16 %v3310, %v3306
    %v3555 = vpack.c.b16 %v3311, %v3307
    %v3556 = vpack.c.b16 %v3316, %v3312
    %v3557 = vpack.c.b16 %v3317, %v3313
    %v3558 = vpack.c.b16 %v3318, %v3314
    %v3559 = vpack.c.b16 %v3319, %v3315
    %v3560 = vpack.c.b16 %v3324, %v3320
    %v3561 = vpack.c.b16 %v3325, %v3321
    %v3562 = vpack.c.b16 %v3326, %v3322
    %v3563 = vpack.c.b16 %v3327, %v3323
    %v3564 = vpack.c.b16 %v3332, %v3328
    %v3565 = vpack.c.b16 %v3333, %v3329
    %v3566 = vpack.c.b16 %v3334, %v3330
    %v3567 = vpack.c.b16 %v3335, %v3331
    %v3568 = vpack.c.b16 %v3340, %v3336
    %v3569 = vpack.c.b16 %v3341, %v3337
    %v3570 = vpack.c.b16 %v3342, %v3338
    %v3571 = vpack.c.b16 %v3343, %v3339
    %v3572 = vpack.c.b16 %v3348, %v3344
    %v3573 = vpack.c.b16 %v3349, %v3345
    %v3574 = vpack.c.b16 %v3350, %v3346
    %v3575 = vpack.c.b16 %v3351, %v3347
    %v3576 = vpack.c.b16 %v3356, %v3352
    %v3577 = vpack.c.b16 %v3357, %v3353
    %v3578 = vpack.c.b16 %v3358, %v3354
    %v3579 = vpack.c.b16 %v3359, %v3355
    %v3580 = vpack.c.b16 %v3364, %v3360
    %v3581 = vpack.c.b16 %v3365, %v3361
    %v3582 = vpack.c.b16 %v3366, %v3362
    %v3583 = vpack.c.b16 %v3367, %v3363
    %v3584 = vpack.c.b16 %v3372, %v3368
    %v3585 = vpack.c.b16 %v3373, %v3369
    %v3586 = vpack.c.b16 %v3374, %v3370
    %v3587 = vpack.c.b16 %v3375, %v3371
    %v3588 = vpack.c.b16 %v3380, %v3376
    %v3589 = vpack.c.b16 %v3381, %v3377
    %v3590 = vpack.c.b16 %v3382, %v3378
    %v3591 = vpack.c.b16 %v3383, %v3379
    %v3592 = vpack.c.b16 %v3388, %v3384
    %v3593 = vpack.c.b16 %v3389, %v3385
    %v3594 = vpack.c.b16 %v3390, %v3386
    %v3595 = vpack.c.b16 %v3391, %v3387
    %v3596 = vpack.c.b16 %v3396, %v3392
    %v3597 = vpack.c.b16 %v3397, %v3393
    %v3598 = vpack.c.b16 %v3398, %v3394
    %v3599 = vpack.c.b16 %v3399, %v3395
    %v3600 = vpack.c.b16 %v3404, %v3400
    %v3601 = vpack.c.b16 %v3405, %v3401
    %v3602 = vpack.c.b16 %v3406, %v3402
    %v3603 = vpack.c.b16 %v3407, %v3403
    %v3604 = vpack.c.b16 %v3412, %v3408
    %v3605 = vpack.c.b16 %v3413, %v3409
    %v3606 = vpack.c.b16 %v3414, %v3410
    %v3607 = vpack.c.b16 %v3415, %v3411
    %v3608 = vpack.c.b16 %v3420, %v3416
    %v3609 = vpack.c.b16 %v3421, %v3417
    %v3610 = vpack.c.b16 %v3422, %v3418
    %v3611 = vpack.c.b16 %v3423, %v3419
    %v3612 = vpack.c.b16 %v3428, %v3424
    %v3613 = vpack.c.b16 %v3429, %v3425
    %v3614 = vpack.c.b16 %v3430, %v3426
    %v3615 = vpack.c.b16 %v3431, %v3427
    %v3616 = vpack.c.b16 %v3436, %v3432
    %v3617 = vpack.c.b16 %v3437, %v3433
    %v3618 = vpack.c.b16 %v3438, %v3434
    %v3619 = vpack.c.b16 %v3439, %v3435
    %v3620 = vpack.c.b16 %v3444, %v3440
    %v3621 = vpack.c.b16 %v3445, %v3441
    %v3622 = vpack.c.b16 %v3446, %v3442
    %v3623 = vpack.c.b16 %v3447, %v3443
    %v3624 = vpack.c.b16 %v3452, %v3448
    %v3625 = vpack.c.b16 %v3453, %v3449
    %v3626 = vpack.c.b16 %v3454, %v3450
    %v3627 = vpack.c.b16 %v3455, %v3451
    %v3628 = vpack.c.b16 %v3460, %v3456
    %v3629 = vpack.c.b16 %v3461, %v3457
    %v3630 = vpack.c.b16 %v3462, %v3458
    %v3631 = vpack.c.b16 %v3463, %v3459
    %v3632 = vpack.c.b16 %v3468, %v3464
    %v3633 = vpack.c.b16 %v3469, %v3465
    %v3634 = vpack.c.b16 %v3470, %v3466
    %v3635 = vpack.c.b16 %v3471, %v3467
    %v3636 = vpack.c.b16 %v3476, %v3472
    %v3637 = vpack.c.b16 %v3477, %v3473
    %v3638 = vpack.c.b16 %v3478, %v3474
    %v3639 = vpack.c.b16 %v3479, %v3475
    %v3640 = vpack.c.b16 %v3484, %v3480
    %v3641 = vpack.c.b16 %v3485, %v3481
    %v3642 = vpack.c.b16 %v3486, %v3482
    %v3643 = vpack.c.b16 %v3487, %v3483
    %v3644 = vpack.c.b16 %v3492, %v3488
    %v3645 = vpack.c.b16 %v3493, %v3489
    %v3646 = vpack.c.b16 %v3494, %v3490
    %v3647 = vpack.c.b16 %v3495, %v3491
    %v3648 = vpack.c.b16 %v3500, %v3496
    %v3649 = vpack.c.b16 %v3501, %v3497
    %v3650 = vpack.c.b16 %v3502, %v3498
    %v3651 = vpack.c.b16 %v3503, %v3499
    %v3652 = vpack.c.b16 %v3508, %v3504
    %v3653 = vpack.c.b16 %v3509, %v3505
    %v3654 = vpack.c.b16 %v3510, %v3506
    %v3655 = vpack.c.b16 %v3511, %v3507
    %v3656 = vpack.c.b16 %v3516, %v3512
    %v3657 = vpack.c.b16 %v3517, %v3513
    %v3658 = vpack.c.b16 %v3518, %v3514
    %v3659 = vpack.c.b16 %v3519, %v3515
    %v3660 = vpack.c.b16 %v3524, %v3520
    %v3661 = vpack.c.b16 %v3525, %v3521
    %v3662 = vpack.c.b16 %v3526, %v3522
    %v3663 = vpack.c.b16 %v3527, %v3523
    %v3664 = vpack.c.b16 %v3532, %v3528
    %v3665 = vpack.c.b16 %v3533, %v3529
    %v3666 = vpack.c.b16 %v3534, %v3530
    %v3667 = vpack.c.b16 %v3535, %v3531
    %v3668 = vpack.c.b16 %v3540, %v3536
    %v3669 = vpack.c.b16 %v3541, %v3537
    %v3670 = vpack.c.b16 %v3542, %v3538
    %v3671 = vpack.c.b16 %v3543, %v3539
    %3800 = vmatpush.bf16.msra.mxu0 %v3572
    %3801 = vmatpush.bf16.msra.mxu0 %v3568
    %3802 = vmatpush.bf16.msra.mxu0 %v3564
    %3803 = vmatpush.bf16.msra.mxu0 %v3560
    %3804 = vmatpush.bf16.msra.mxu0 %v3556
    %3805 = vmatpush.bf16.msra.mxu0 %v3552
    %3806 = vmatpush.bf16.msra.mxu0 %v3548
    %3807 = vmatpush.bf16.msra.mxu0 %v3544
    %3808 = vmatmul.bf16.gmra.mxu0 %v3018
    %v3809 = vpop.f32.mrf.mxu0
    %v3810 = vadd.f32 %v3152, %v3809
    %v3811 = vpop.f32.mrf.mxu0
    %3812 = vdwg.mxu0
    %3813 = vmatpush.bf16.msra.mxu0 %v3604
    %3814 = vmatpush.bf16.msra.mxu0 %v3600
    %3815 = vmatpush.bf16.msra.mxu0 %v3596
    %3816 = vmatpush.bf16.msra.mxu0 %v3592
    %3817 = vmatpush.bf16.msra.mxu0 %v3588
    %3818 = vmatpush.bf16.msra.mxu0 %v3584
    %3819 = vmatpush.bf16.msra.mxu0 %v3580
    %3820 = vmatpush.bf16.msra.mxu0 %v3576
    %3821 = vmatmul.bf16.gmra.mxu0 %v3019
    %v3822 = vpop.f32.mrf.mxu0
    %v3823 = vadd.f32 %v3810, %v3822
    %v3824 = vpop.f32.mrf.mxu0
    %3825 = vdwg.mxu0
    %3826 = vmatpush.bf16.msra.mxu0 %v3636
    %3827 = vmatpush.bf16.msra.mxu0 %v3632
    %3828 = vmatpush.bf16.msra.mxu0 %v3628
    %3829 = vmatpush.bf16.msra.mxu0 %v3624
    %3830 = vmatpush.bf16.msra.mxu0 %v3620
    %3831 = vmatpush.bf16.msra.mxu0 %v3616
    %3832 = vmatpush.bf16.msra.mxu0 %v3612
    %3833 = vmatpush.bf16.msra.mxu0 %v3608
    %3834 = vmatmul.bf16.gmra.mxu0 %v3020
    %v3835 = vpop.f32.mrf.mxu0
    %v3836 = vadd.f32 %v3823, %v3835
    %v3837 = vpop.f32.mrf.mxu0
    %3838 = vdwg.mxu0
    %3839 = vmatpush.bf16.msra.mxu0 %v3668
    %3840 = vmatpush.bf16.msra.mxu0 %v3664
    %3841 = vmatpush.bf16.msra.mxu0 %v3660
    %3842 = vmatpush.bf16.msra.mxu0 %v3656
    %3843 = vmatpush.bf16.msra.mxu0 %v3652
    %3844 = vmatpush.bf16.msra.mxu0 %v3648
    %3845 = vmatpush.bf16.msra.mxu0 %v3644
    %3846 = vmatpush.bf16.msra.mxu0 %v3640
    %3847 = vmatmul.bf16.gmra.mxu0 %v3021
    %v3848 = vpop.f32.mrf.mxu0
    %v3849 = vadd.f32 %v3836, %v3848
    %v3850 = vpop.f32.mrf.mxu0
    %3851 = vdwg.mxu0
    %3852 = vmatpush.bf16.msra.mxu0 %v3573
    %3853 = vmatpush.bf16.msra.mxu0 %v3569
    %3854 = vmatpush.bf16.msra.mxu0 %v3565
    %3855 = vmatpush.bf16.msra.mxu0 %v3561
    %3856 = vmatpush.bf16.msra.mxu0 %v3557
    %3857 = vmatpush.bf16.msra.mxu0 %v3553
    %3858 = vmatpush.bf16.msra.mxu0 %v3549
    %3859 = vmatpush.bf16.msra.mxu0 %v3545
    %3860 = vmatmul.bf16.gmra.mxu0 %v3018
    %v3861 = vpop.f32.mrf.mxu0
    %v3862 = vadd.f32 %v3153, %v3861
    %v3863 = vpop.f32.mrf.mxu0
    %3864 = vdwg.mxu0
    %3865 = vmatpush.bf16.msra.mxu0 %v3605
    %3866 = vmatpush.bf16.msra.mxu0 %v3601
    %3867 = vmatpush.bf16.msra.mxu0 %v3597
    %3868 = vmatpush.bf16.msra.mxu0 %v3593
    %3869 = vmatpush.bf16.msra.mxu0 %v3589
    %3870 = vmatpush.bf16.msra.mxu0 %v3585
    %3871 = vmatpush.bf16.msra.mxu0 %v3581
    %3872 = vmatpush.bf16.msra.mxu0 %v3577
    %3873 = vmatmul.bf16.gmra.mxu0 %v3019
    %v3874 = vpop.f32.mrf.mxu0
    %v3875 = vadd.f32 %v3862, %v3874
    %v3876 = vpop.f32.mrf.mxu0
    %3877 = vdwg.mxu0
    %3878 = vmatpush.bf16.msra.mxu0 %v3637
    %3879 = vmatpush.bf16.msra.mxu0 %v3633
    %3880 = vmatpush.bf16.msra.mxu0 %v3629
    %3881 = vmatpush.bf16.msra.mxu0 %v3625
    %3882 = vmatpush.bf16.msra.mxu0 %v3621
    %3883 = vmatpush.bf16.msra.mxu0 %v3617
    %3884 = vmatpush.bf16.msra.mxu0 %v3613
    %3885 = vmatpush.bf16.msra.mxu0 %v3609
    %3886 = vmatmul.bf16.gmra.mxu0 %v3020
    %v3887 = vpop.f32.mrf.mxu0
    %v3888 = vadd.f32 %v3875, %v3887
    %v3889 = vpop.f32.mrf.mxu0
    %3890 = vdwg.mxu0
    %3891 = vmatpush.bf16.msra.mxu0 %v3669
    %3892 = vmatpush.bf16.msra.mxu0 %v3665
    %3893 = vmatpush.bf16.msra.mxu0 %v3661
    %3894 = vmatpush.bf16.msra.mxu0 %v3657
    %3895 = vmatpush.bf16.msra.mxu0 %v3653
    %3896 = vmatpush.bf16.msra.mxu0 %v3649
    %3897 = vmatpush.bf16.msra.mxu0 %v3645
    %3898 = vmatpush.bf16.msra.mxu0 %v3641
    %3899 = vmatmul.bf16.gmra.mxu0 %v3021
    %v3900 = vpop.f32.mrf.mxu0
    %v3901 = vadd.f32 %v3888, %v3900
    %v3902 = vpop.f32.mrf.mxu0
    %3903 = vdwg.mxu0
    %3904 = vmatpush.bf16.msra.mxu0 %v3574
    %3905 = vmatpush.bf16.msra.mxu0 %v3570
    %3906 = vmatpush.bf16.msra.mxu0 %v3566
    %3907 = vmatpush.bf16.msra.mxu0 %v3562
    %3908 = vmatpush.bf16.msra.mxu0 %v3558
    %3909 = vmatpush.bf16.msra.mxu0 %v3554
    %3910 = vmatpush.bf16.msra.mxu0 %v3550
    %3911 = vmatpush.bf16.msra.mxu0 %v3546
    %3912 = vmatmul.bf16.gmra.mxu0 %v3018
    %v3913 = vpop.f32.mrf.mxu0
    %v3914 = vadd.f32 %v3154, %v3913
    %v3915 = vpop.f32.mrf.mxu0
    %3916 = vdwg.mxu0
    %3917 = vmatpush.bf16.msra.mxu0 %v3606
    %3918 = vmatpush.bf16.msra.mxu0 %v3602
    %3919 = vmatpush.bf16.msra.mxu0 %v3598
    %3920 = vmatpush.bf16.msra.mxu0 %v3594
    %3921 = vmatpush.bf16.msra.mxu0 %v3590
    %3922 = vmatpush.bf16.msra.mxu0 %v3586
    %3923 = vmatpush.bf16.msra.mxu0 %v3582
    %3924 = vmatpush.bf16.msra.mxu0 %v3578
    %3925 = vmatmul.bf16.gmra.mxu0 %v3019
    %v3926 = vpop.f32.mrf.mxu0
    %v3927 = vadd.f32 %v3914, %v3926
    %v3928 = vpop.f32.mrf.mxu0
    %3929 = vdwg.mxu0
    %3930 = vmatpush.bf16.msra.mxu0 %v3638
    %3931 = vmatpush.bf16.msra.mxu0 %v3634
    %3932 = vmatpush.bf16.msra.mxu0 %v3630
    %3933 = vmatpush.bf16.msra.mxu0 %v3626
    %3934 = vmatpush.bf16.msra.mxu0 %v3622
    %3935 = vmatpush.bf16.msra.mxu0 %v3618
    %3936 = vmatpush.bf16.msra.mxu0 %v3614
    %3937 = vmatpush.bf16.msra.mxu0 %v3610
    %3938 = vmatmul.bf16.gmra.mxu0 %v3020
    %v3939 = vpop.f32.mrf.mxu0
    %v3940 = vadd.f32 %v3927, %v3939
    %v3941 = vpop.f32.mrf.mxu0
    %3942 = vdwg.mxu0
    %3943 = vmatpush.bf16.msra.mxu0 %v3670
    %3944 = vmatpush.bf16.msra.mxu0 %v3666
    %3945 = vmatpush.bf16.msra.mxu0 %v3662
    %3946 = vmatpush.bf16.msra.mxu0 %v3658
    %3947 = vmatpush.bf16.msra.mxu0 %v3654
    %3948 = vmatpush.bf16.msra.mxu0 %v3650
    %3949 = vmatpush.bf16.msra.mxu0 %v3646
    %3950 = vmatpush.bf16.msra.mxu0 %v3642
    %3951 = vmatmul.bf16.gmra.mxu0 %v3021
    %v3952 = vpop.f32.mrf.mxu0
    %v3953 = vadd.f32 %v3940, %v3952
    %v3954 = vpop.f32.mrf.mxu0
    %3955 = vdwg.mxu0
    %3956 = vmatpush.bf16.msra.mxu0 %v3575
    %3957 = vmatpush.bf16.msra.mxu0 %v3571
    %3958 = vmatpush.bf16.msra.mxu0 %v3567
    %3959 = vmatpush.bf16.msra.mxu0 %v3563
    %3960 = vmatpush.bf16.msra.mxu0 %v3559
    %3961 = vmatpush.bf16.msra.mxu0 %v3555
    %3962 = vmatpush.bf16.msra.mxu0 %v3551
    %3963 = vmatpush.bf16.msra.mxu0 %v3547
    %3964 = vmatmul.bf16.gmra.mxu0 %v3018
    %v3965 = vpop.f32.mrf.mxu0
    %v3966 = vadd.f32 %v3155, %v3965
    %v3967 = vpop.f32.mrf.mxu0
    %3968 = vdwg.mxu0
    %3969 = vmatpush.bf16.msra.mxu0 %v3607
    %3970 = vmatpush.bf16.msra.mxu0 %v3603
    %3971 = vmatpush.bf16.msra.mxu0 %v3599
    %3972 = vmatpush.bf16.msra.mxu0 %v3595
    %3973 = vmatpush.bf16.msra.mxu0 %v3591
    %3974 = vmatpush.bf16.msra.mxu0 %v3587
    %3975 = vmatpush.bf16.msra.mxu0 %v3583
    %3976 = vmatpush.bf16.msra.mxu0 %v3579
    %3977 = vmatmul.bf16.gmra.mxu0 %v3019
    %v3978 = vpop.f32.mrf.mxu0
    %v3979 = vadd.f32 %v3966, %v3978
    %v3980 = vpop.f32.mrf.mxu0
    %3981 = vdwg.mxu0
    %3982 = vmatpush.bf16.msra.mxu0 %v3639
    %3983 = vmatpush.bf16.msra.mxu0 %v3635
    %3984 = vmatpush.bf16.msra.mxu0 %v3631
    %3985 = vmatpush.bf16.msra.mxu0 %v3627
    %3986 = vmatpush.bf16.msra.mxu0 %v3623
    %3987 = vmatpush.bf16.msra.mxu0 %v3619
    %3988 = vmatpush.bf16.msra.mxu0 %v3615
    %3989 = vmatpush.bf16.msra.mxu0 %v3611
    %3990 = vmatmul.bf16.gmra.mxu0 %v3020
    %v3991 = vpop.f32.mrf.mxu0
    %v3992 = vadd.f32 %v3979, %v3991
    %v3993 = vpop.f32.mrf.mxu0
    %3994 = vdwg.mxu0
    %3995 = vmatpush.bf16.msra.mxu0 %v3671
    %3996 = vmatpush.bf16.msra.mxu0 %v3667
    %3997 = vmatpush.bf16.msra.mxu0 %v3663
    %3998 = vmatpush.bf16.msra.mxu0 %v3659
    %3999 = vmatpush.bf16.msra.mxu0 %v3655
    %4000 = vmatpush.bf16.msra.mxu0 %v3651
    %4001 = vmatpush.bf16.msra.mxu0 %v3647
    %4002 = vmatpush.bf16.msra.mxu0 %v3643
    %4003 = vmatmul.bf16.gmra.mxu0 %v3021
    %v4004 = vpop.f32.mrf.mxu0
    %v4005 = vadd.f32 %v3992, %v4004
    %v4006 = vpop.f32.mrf.mxu0
    %4007 = vdwg.mxu0
    %v4008 = vmax.f32 %v3849, 0.0
    %v4009 = vmax.f32 %v3901, 0.0
    %v4010 = vmax.f32 %v3953, 0.0
    %v4011 = vmax.f32 %v4005, 0.0
    %v4012 = vpack.c.bf16 %v4008, %v4008
    %v4013 = vpack.c.bf16 %v4009, %v4009
    %v4014 = vpack.c.bf16 %v4010, %v4010
    %v4015 = vpack.c.bf16 %v4011, %v4011
    %v4016 = vld [vmem:[#allocation11] sm:$0xff]
    %v4017 = vld [vmem:[#allocation11 + $0x8] sm:$0xff]
    %v4018 = vld [vmem:[#allocation11 + $0x10] sm:$0xff]
    %v4019 = vld [vmem:[#allocation11 + $0x18] sm:$0xff]
    %v4020 = vld [vmem:[#allocation11 + $0x20] sm:$0xff]
    %v4021 = vld [vmem:[#allocation11 + $0x28] sm:$0xff]
    %v4022 = vld [vmem:[#allocation11 + $0x30] sm:$0xff]
    %v4023 = vld [vmem:[#allocation11 + $0x38] sm:$0xff]
    %v4024 = vld [vmem:[#allocation11 + $0x40] sm:$0xff]
    %v4025 = vld [vmem:[#allocation11 + $0x48] sm:$0xff]
    %v4026 = vld [vmem:[#allocation11 + $0x50] sm:$0xff]
    %v4027 = vld [vmem:[#allocation11 + $0x58] sm:$0xff]
    %v4028 = vld [vmem:[#allocation11 + $0x60] sm:$0xff]
    %v4029 = vld [vmem:[#allocation11 + $0x68] sm:$0xff]
    %v4030 = vld [vmem:[#allocation11 + $0x70] sm:$0xff]
    %v4031 = vld [vmem:[#allocation11 + $0x78] sm:$0xff]
    %v4032 = vld [vmem:[#allocation11 + $0x80] sm:$0xff]
    %v4033 = vld [vmem:[#allocation11 + $0x88] sm:$0xff]
    %v4034 = vld [vmem:[#allocation11 + $0x90] sm:$0xff]
    %v4035 = vld [vmem:[#allocation11 + $0x98] sm:$0xff]
    %v4036 = vld [vmem:[#allocation11 + $0xa0] sm:$0xff]
    %v4037 = vld [vmem:[#allocation11 + $0xa8] sm:$0xff]
    %v4038 = vld [vmem:[#allocation11 + $0xb0] sm:$0xff]
    %v4039 = vld [vmem:[#allocation11 + $0xb8] sm:$0xff]
    %v4040 = vld [vmem:[#allocation11 + $0xc0] sm:$0xff]
    %v4041 = vld [vmem:[#allocation11 + $0xc8] sm:$0xff]
    %v4042 = vld [vmem:[#allocation11 + $0xd0] sm:$0xff]
    %v4043 = vld [vmem:[#allocation11 + $0xd8] sm:$0xff]
    %v4044 = vld [vmem:[#allocation11 + $0xe0] sm:$0xff]
    %v4045 = vld [vmem:[#allocation11 + $0xe8] sm:$0xff]
    %v4046 = vld [vmem:[#allocation11 + $0xf0] sm:$0xff]
    %v4047 = vld [vmem:[#allocation11 + $0xf8] sm:$0xff]
    %v4048 = vld [vmem:[#allocation11 + $0x100] sm:$0xff]
    %v4049 = vld [vmem:[#allocation11 + $0x108] sm:$0xff]
    %v4050 = vld [vmem:[#allocation11 + $0x110] sm:$0xff]
    %v4051 = vld [vmem:[#allocation11 + $0x118] sm:$0xff]
    %v4052 = vld [vmem:[#allocation11 + $0x120] sm:$0xff]
    %v4053 = vld [vmem:[#allocation11 + $0x128] sm:$0xff]
    %v4054 = vld [vmem:[#allocation11 + $0x130] sm:$0xff]
    %v4055 = vld [vmem:[#allocation11 + $0x138] sm:$0xff]
    %v4056 = vld [vmem:[#allocation11 + $0x140] sm:$0xff]
    %v4057 = vld [vmem:[#allocation11 + $0x148] sm:$0xff]
    %v4058 = vld [vmem:[#allocation11 + $0x150] sm:$0xff]
    %v4059 = vld [vmem:[#allocation11 + $0x158] sm:$0xff]
    %v4060 = vld [vmem:[#allocation11 + $0x160] sm:$0xff]
    %v4061 = vld [vmem:[#allocation11 + $0x168] sm:$0xff]
    %v4062 = vld [vmem:[#allocation11 + $0x170] sm:$0xff]
    %v4063 = vld [vmem:[#allocation11 + $0x178] sm:$0xff]
    %v4064 = vld [vmem:[#allocation11 + $0x180] sm:$0xff]
    %v4065 = vld [vmem:[#allocation11 + $0x188] sm:$0xff]
    %v4066 = vld [vmem:[#allocation11 + $0x190] sm:$0xff]
    %v4067 = vld [vmem:[#allocation11 + $0x198] sm:$0xff]
    %v4068 = vld [vmem:[#allocation11 + $0x1a0] sm:$0xff]
    %v4069 = vld [vmem:[#allocation11 + $0x1a8] sm:$0xff]
    %v4070 = vld [vmem:[#allocation11 + $0x1b0] sm:$0xff]
    %v4071 = vld [vmem:[#allocation11 + $0x1b8] sm:$0xff]
    %v4072 = vld [vmem:[#allocation11 + $0x1c0] sm:$0xff]
    %v4073 = vld [vmem:[#allocation11 + $0x1c8] sm:$0xff]
    %v4074 = vld [vmem:[#allocation11 + $0x1d0] sm:$0xff]
    %v4075 = vld [vmem:[#allocation11 + $0x1d8] sm:$0xff]
    %v4076 = vld [vmem:[#allocation11 + $0x1e0] sm:$0xff]
    %v4077 = vld [vmem:[#allocation11 + $0x1e8] sm:$0xff]
    %v4078 = vld [vmem:[#allocation11 + $0x1f0] sm:$0xff]
    %v4079 = vld [vmem:[#allocation11 + $0x1f8] sm:$0xff]
    %v4080 = vld [vmem:[%s2 + $0x13] sm:$0x3]
    %v4082 = vperm.slane %v4080, 0
    %v4083 = vperm.slane %v4080, 1
    %v4150 = vunpack.c.l.b16 %v4016
    %v4151 = vunpack.c.h.b16 %v4016
    %v4152 = vunpack.c.l.b16 %v4017
    %v4153 = vunpack.c.h.b16 %v4017
    %v4154 = vunpack.c.l.b16 %v4018
    %v4155 = vunpack.c.h.b16 %v4018
    %v4156 = vunpack.c.l.b16 %v4019
    %v4157 = vunpack.c.h.b16 %v4019
    %v4158 = vunpack.c.l.b16 %v4020
    %v4159 = vunpack.c.h.b16 %v4020
    %v4160 = vunpack.c.l.b16 %v4021
    %v4161 = vunpack.c.h.b16 %v4021
    %v4162 = vunpack.c.l.b16 %v4022
    %v4163 = vunpack.c.h.b16 %v4022
    %v4164 = vunpack.c.l.b16 %v4023
    %v4165 = vunpack.c.h.b16 %v4023
    %v4166 = vunpack.c.l.b16 %v4024
    %v4167 = vunpack.c.h.b16 %v4024
    %v4168 = vunpack.c.l.b16 %v4025
    %v4169 = vunpack.c.h.b16 %v4025
    %v4170 = vunpack.c.l.b16 %v4026
    %v4171 = vunpack.c.h.b16 %v4026
    %v4172 = vunpack.c.l.b16 %v4027
    %v4173 = vunpack.c.h.b16 %v4027
    %v4174 = vunpack.c.l.b16 %v4028
    %v4175 = vunpack.c.h.b16 %v4028
    %v4176 = vunpack.c.l.b16 %v4029
    %v4177 = vunpack.c.h.b16 %v4029
    %v4178 = vunpack.c.l.b16 %v4030
    %v4179 = vunpack.c.h.b16 %v4030
    %v4180 = vunpack.c.l.b16 %v4031
    %v4181 = vunpack.c.h.b16 %v4031
    %v4182 = vunpack.c.l.b16 %v4032
    %v4183 = vunpack.c.h.b16 %v4032
    %v4184 = vunpack.c.l.b16 %v4033
    %v4185 = vunpack.c.h.b16 %v4033
    %v4186 = vunpack.c.l.b16 %v4034
    %v4187 = vunpack.c.h.b16 %v4034
    %v4188 = vunpack.c.l.b16 %v4035
    %v4189 = vunpack.c.h.b16 %v4035
    %v4190 = vunpack.c.l.b16 %v4036
    %v4191 = vunpack.c.h.b16 %v4036
    %v4192 = vunpack.c.l.b16 %v4037
    %v4193 = vunpack.c.h.b16 %v4037
    %v4194 = vunpack.c.l.b16 %v4038
    %v4195 = vunpack.c.h.b16 %v4038
    %v4196 = vunpack.c.l.b16 %v4039
    %v4197 = vunpack.c.h.b16 %v4039
    %v4198 = vunpack.c.l.b16 %v4040
    %v4199 = vunpack.c.h.b16 %v4040
    %v4200 = vunpack.c.l.b16 %v4041
    %v4201 = vunpack.c.h.b16 %v4041
    %v4202 = vunpack.c.l.b16 %v4042
    %v4203 = vunpack.c.h.b16 %v4042
    %v4204 = vunpack.c.l.b16 %v4043
    %v4205 = vunpack.c.h.b16 %v4043
    %v4206 = vunpack.c.l.b16 %v4044
    %v4207 = vunpack.c.h.b16 %v4044
    %v4208 = vunpack.c.l.b16 %v4045
    %v4209 = vunpack.c.h.b16 %v4045
    %v4210 = vunpack.c.l.b16 %v4046
    %v4211 = vunpack.c.h.b16 %v4046
    %v4212 = vunpack.c.l.b16 %v4047
    %v4213 = vunpack.c.h.b16 %v4047
    %v4214 = vunpack.c.l.b16 %v4048
    %v4215 = vunpack.c.h.b16 %v4048
    %v4216 = vunpack.c.l.b16 %v4049
    %v4217 = vunpack.c.h.b16 %v4049
    %v4218 = vunpack.c.l.b16 %v4050
    %v4219 = vunpack.c.h.b16 %v4050
    %v4220 = vunpack.c.l.b16 %v4051
    %v4221 = vunpack.c.h.b16 %v4051
    %v4222 = vunpack.c.l.b16 %v4052
    %v4223 = vunpack.c.h.b16 %v4052
    %v4224 = vunpack.c.l.b16 %v4053
    %v4225 = vunpack.c.h.b16 %v4053
    %v4226 = vunpack.c.l.b16 %v4054
    %v4227 = vunpack.c.h.b16 %v4054
    %v4228 = vunpack.c.l.b16 %v4055
    %v4229 = vunpack.c.h.b16 %v4055
    %v4230 = vunpack.c.l.b16 %v4056
    %v4231 = vunpack.c.h.b16 %v4056
    %v4232 = vunpack.c.l.b16 %v4057
    %v4233 = vunpack.c.h.b16 %v4057
    %v4234 = vunpack.c.l.b16 %v4058
    %v4235 = vunpack.c.h.b16 %v4058
    %v4236 = vunpack.c.l.b16 %v4059
    %v4237 = vunpack.c.h.b16 %v4059
    %v4238 = vunpack.c.l.b16 %v4060
    %v4239 = vunpack.c.h.b16 %v4060
    %v4240 = vunpack.c.l.b16 %v4061
    %v4241 = vunpack.c.h.b16 %v4061
    %v4242 = vunpack.c.l.b16 %v4062
    %v4243 = vunpack.c.h.b16 %v4062
    %v4244 = vunpack.c.l.b16 %v4063
    %v4245 = vunpack.c.h.b16 %v4063
    %v4246 = vunpack.c.l.b16 %v4064
    %v4247 = vunpack.c.h.b16 %v4064
    %v4248 = vunpack.c.l.b16 %v4065
    %v4249 = vunpack.c.h.b16 %v4065
    %v4250 = vunpack.c.l.b16 %v4066
    %v4251 = vunpack.c.h.b16 %v4066
    %v4252 = vunpack.c.l.b16 %v4067
    %v4253 = vunpack.c.h.b16 %v4067
    %v4254 = vunpack.c.l.b16 %v4068
    %v4255 = vunpack.c.h.b16 %v4068
    %v4256 = vunpack.c.l.b16 %v4069
    %v4257 = vunpack.c.h.b16 %v4069
    %v4258 = vunpack.c.l.b16 %v4070
    %v4259 = vunpack.c.h.b16 %v4070
    %v4260 = vunpack.c.l.b16 %v4071
    %v4261 = vunpack.c.h.b16 %v4071
    %v4262 = vunpack.c.l.b16 %v4072
    %v4263 = vunpack.c.h.b16 %v4072
    %v4264 = vunpack.c.l.b16 %v4073
    %v4265 = vunpack.c.h.b16 %v4073
    %v4266 = vunpack.c.l.b16 %v4074
    %v4267 = vunpack.c.h.b16 %v4074
    %v4268 = vunpack.c.l.b16 %v4075
    %v4269 = vunpack.c.h.b16 %v4075
    %v4270 = vunpack.c.l.b16 %v4076
    %v4271 = vunpack.c.h.b16 %v4076
    %v4272 = vunpack.c.l.b16 %v4077
    %v4273 = vunpack.c.h.b16 %v4077
    %v4274 = vunpack.c.l.b16 %v4078
    %v4275 = vunpack.c.h.b16 %v4078
    %v4276 = vunpack.c.l.b16 %v4079
    %v4277 = vunpack.c.h.b16 %v4079
    %v4278 = vpack.c.b16 %v4152, %v4150
    %v4279 = vpack.c.b16 %v4153, %v4151
    %v4280 = vpack.c.b16 %v4156, %v4154
    %v4281 = vpack.c.b16 %v4157, %v4155
    %v4282 = vpack.c.b16 %v4160, %v4158
    %v4283 = vpack.c.b16 %v4161, %v4159
    %v4284 = vpack.c.b16 %v4164, %v4162
    %v4285 = vpack.c.b16 %v4165, %v4163
    %v4286 = vpack.c.b16 %v4168, %v4166
    %v4287 = vpack.c.b16 %v4169, %v4167
    %v4288 = vpack.c.b16 %v4172, %v4170
    %v4289 = vpack.c.b16 %v4173, %v4171
    %v4290 = vpack.c.b16 %v4176, %v4174
    %v4291 = vpack.c.b16 %v4177, %v4175
    %v4292 = vpack.c.b16 %v4180, %v4178
    %v4293 = vpack.c.b16 %v4181, %v4179
    %v4294 = vpack.c.b16 %v4184, %v4182
    %v4295 = vpack.c.b16 %v4185, %v4183
    %v4296 = vpack.c.b16 %v4188, %v4186
    %v4297 = vpack.c.b16 %v4189, %v4187
    %v4298 = vpack.c.b16 %v4192, %v4190
    %v4299 = vpack.c.b16 %v4193, %v4191
    %v4300 = vpack.c.b16 %v4196, %v4194
    %v4301 = vpack.c.b16 %v4197, %v4195
    %v4302 = vpack.c.b16 %v4200, %v4198
    %v4303 = vpack.c.b16 %v4201, %v4199
    %v4304 = vpack.c.b16 %v4204, %v4202
    %v4305 = vpack.c.b16 %v4205, %v4203
    %v4306 = vpack.c.b16 %v4208, %v4206
    %v4307 = vpack.c.b16 %v4209, %v4207
    %v4308 = vpack.c.b16 %v4212, %v4210
    %v4309 = vpack.c.b16 %v4213, %v4211
    %v4310 = vpack.c.b16 %v4216, %v4214
    %v4311 = vpack.c.b16 %v4217, %v4215
    %v4312 = vpack.c.b16 %v4220, %v4218
    %v4313 = vpack.c.b16 %v4221, %v4219
    %v4314 = vpack.c.b16 %v4224, %v4222
    %v4315 = vpack.c.b16 %v4225, %v4223
    %v4316 = vpack.c.b16 %v4228, %v4226
    %v4317 = vpack.c.b16 %v4229, %v4227
    %v4318 = vpack.c.b16 %v4232, %v4230
    %v4319 = vpack.c.b16 %v4233, %v4231
    %v4320 = vpack.c.b16 %v4236, %v4234
    %v4321 = vpack.c.b16 %v4237, %v4235
    %v4322 = vpack.c.b16 %v4240, %v4238
    %v4323 = vpack.c.b16 %v4241, %v4239
    %v4324 = vpack.c.b16 %v4244, %v4242
    %v4325 = vpack.c.b16 %v4245, %v4243
    %v4326 = vpack.c.b16 %v4248, %v4246
    %v4327 = vpack.c.b16 %v4249, %v4247
    %v4328 = vpack.c.b16 %v4252, %v4250
    %v4329 = vpack.c.b16 %v4253, %v4251
    %v4330 = vpack.c.b16 %v4256, %v4254
    %v4331 = vpack.c.b16 %v4257, %v4255
    %v4332 = vpack.c.b16 %v4260, %v4258
    %v4333 = vpack.c.b16 %v4261, %v4259
    %v4334 = vpack.c.b16 %v4264, %v4262
    %v4335 = vpack.c.b16 %v4265, %v4263
    %v4336 = vpack.c.b16 %v4268, %v4266
    %v4337 = vpack.c.b16 %v4269, %v4267
    %v4338 = vpack.c.b16 %v4272, %v4270
    %v4339 = vpack.c.b16 %v4273, %v4271
    %v4340 = vpack.c.b16 %v4276, %v4274
    %v4341 = vpack.c.b16 %v4277, %v4275
    %4406 = vmatpush.bf16.msra.mxu0 %v4292
    %4407 = vmatpush.bf16.msra.mxu0 %v4290
    %4408 = vmatpush.bf16.msra.mxu0 %v4288
    %4409 = vmatpush.bf16.msra.mxu0 %v4286
    %4410 = vmatpush.bf16.msra.mxu0 %v4284
    %4411 = vmatpush.bf16.msra.mxu0 %v4282
    %4412 = vmatpush.bf16.msra.mxu0 %v4280
    %4413 = vmatpush.bf16.msra.mxu0 %v4278
    %4414 = vmatmul.bf16.gmra.mxu0 %v4012
    %v4415 = vpop.f32.mrf.mxu0
    %v4416 = vadd.f32 %v4082, %v4415
    %v4417 = vpop.f32.mrf.mxu0
    %4418 = vdwg.mxu0
    %4419 = vmatpush.bf16.msra.mxu0 %v4308
    %4420 = vmatpush.bf16.msra.mxu0 %v4306
    %4421 = vmatpush.bf16.msra.mxu0 %v4304
    %4422 = vmatpush.bf16.msra.mxu0 %v4302
    %4423 = vmatpush.bf16.msra.mxu0 %v4300
    %4424 = vmatpush.bf16.msra.mxu0 %v4298
    %4425 = vmatpush.bf16.msra.mxu0 %v4296
    %4426 = vmatpush.bf16.msra.mxu0 %v4294
    %4427 = vmatmul.bf16.gmra.mxu0 %v4013
    %v4428 = vpop.f32.mrf.mxu0
    %v4429 = vadd.f32 %v4416, %v4428
    %v4430 = vpop.f32.mrf.mxu0
    %4431 = vdwg.mxu0
    %4432 = vmatpush.bf16.msra.mxu0 %v4324
    %4433 = vmatpush.bf16.msra.mxu0 %v4322
    %4434 = vmatpush.bf16.msra.mxu0 %v4320
    %4435 = vmatpush.bf16.msra.mxu0 %v4318
    %4436 = vmatpush.bf16.msra.mxu0 %v4316
    %4437 = vmatpush.bf16.msra.mxu0 %v4314
    %4438 = vmatpush.bf16.msra.mxu0 %v4312
    %4439 = vmatpush.bf16.msra.mxu0 %v4310
    %4440 = vmatmul.bf16.gmra.mxu0 %v4014
    %v4441 = vpop.f32.mrf.mxu0
    %v4442 = vadd.f32 %v4429, %v4441
    %v4443 = vpop.f32.mrf.mxu0
    %4444 = vdwg.mxu0
    %4445 = vmatpush.bf16.msra.mxu0 %v4340
    %4446 = vmatpush.bf16.msra.mxu0 %v4338
    %4447 = vmatpush.bf16.msra.mxu0 %v4336
    %4448 = vmatpush.bf16.msra.mxu0 %v4334
    %4449 = vmatpush.bf16.msra.mxu0 %v4332
    %4450 = vmatpush.bf16.msra.mxu0 %v4330
    %4451 = vmatpush.bf16.msra.mxu0 %v4328
    %4452 = vmatpush.bf16.msra.mxu0 %v4326
    %4453 = vmatmul.bf16.gmra.mxu0 %v4015
    %v4454 = vpop.f32.mrf.mxu0
    %v4455 = vadd.f32 %v4442, %v4454
    %v4456 = vpop.f32.mrf.mxu0
    %4457 = vdwg.mxu0
    %4458 = vmatpush.bf16.msra.mxu0 %v4293
    %4459 = vmatpush.bf16.msra.mxu0 %v4291
    %4460 = vmatpush.bf16.msra.mxu0 %v4289
    %4461 = vmatpush.bf16.msra.mxu0 %v4287
    %4462 = vmatpush.bf16.msra.mxu0 %v4285
    %4463 = vmatpush.bf16.msra.mxu0 %v4283
    %4464 = vmatpush.bf16.msra.mxu0 %v4281
    %4465 = vmatpush.bf16.msra.mxu0 %v4279
    %4466 = vmatmul.bf16.gmra.mxu0 %v4012
    %v4467 = vpop.f32.mrf.mxu0
    %v4468 = vadd.f32 %v4083, %v4467
    %v4469 = vpop.f32.mrf.mxu0
    %4470 = vdwg.mxu0
    %4471 = vmatpush.bf16.msra.mxu0 %v4309
    %4472 = vmatpush.bf16.msra.mxu0 %v4307
    %4473 = vmatpush.bf16.msra.mxu0 %v4305
    %4474 = vmatpush.bf16.msra.mxu0 %v4303
    %4475 = vmatpush.bf16.msra.mxu0 %v4301
    %4476 = vmatpush.bf16.msra.mxu0 %v4299
    %4477 = vmatpush.bf16.msra.mxu0 %v4297
    %4478 = vmatpush.bf16.msra.mxu0 %v4295
    %4479 = vmatmul.bf16.gmra.mxu0 %v4013
    %v4480 = vpop.f32.mrf.mxu0
    %v4481 = vadd.f32 %v4468, %v4480
    %v4482 = vpop.f32.mrf.mxu0
    %4483 = vdwg.mxu0
    %4484 = vmatpush.bf16.msra.mxu0 %v4325
    %4485 = vmatpush.bf16.msra.mxu0 %v4323
    %4486 = vmatpush.bf16.msra.mxu0 %v4321
    %4487 = vmatpush.bf16.msra.mxu0 %v4319
    %4488 = vmatpush.bf16.msra.mxu0 %v4317
    %4489 = vmatpush.bf16.msra.mxu0 %v4315
    %4490 = vmatpush.bf16.msra.mxu0 %v4313
    %4491 = vmatpush.bf16.msra.mxu0 %v4311
    %4492 = vmatmul.bf16.gmra.mxu0 %v4014
    %v4493 = vpop.f32.mrf.mxu0
    %v4494 = vadd.f32 %v4481, %v4493
    %v4495 = vpop.f32.mrf.mxu0
    %4496 = vdwg.mxu0
    %4497 = vmatpush.bf16.msra.mxu0 %v4341
    %4498 = vmatpush.bf16.msra.mxu0 %v4339
    %4499 = vmatpush.bf16.msra.mxu0 %v4337
    %4500 = vmatpush.bf16.msra.mxu0 %v4335
    %4501 = vmatpush.bf16.msra.mxu0 %v4333
    %4502 = vmatpush.bf16.msra.mxu0 %v4331
    %4503 = vmatpush.bf16.msra.mxu0 %v4329
    %4504 = vmatpush.bf16.msra.mxu0 %v4327
    %4505 = vmatmul.bf16.gmra.mxu0 %v4015
    %v4506 = vpop.f32.mrf.mxu0
    %v4507 = vadd.f32 %v4494, %v4506
    %v4508 = vpop.f32.mrf.mxu0
    %4509 = vdwg.mxu0
    %v4510 = vmax.f32 %v4455, 0.0
    %v4511 = vmax.f32 %v4507, 0.0
    %v4512 = vpack.c.bf16 %v4510, %v4510
    %v4513 = vpack.c.bf16 %v4511, %v4511
    %v4514 = vld [vmem:[#allocation13] sm:$0xf]
    %v4515 = vld [vmem:[#allocation13 + $0x4] sm:$0xf]
    %v4516 = vld [vmem:[#allocation13 + $0x8] sm:$0xf]
    %v4517 = vld [vmem:[#allocation13 + $0xc] sm:$0xf]
    %v4518 = vld [vmem:[#allocation13 + $0x10] sm:$0xf]
    %v4519 = vld [vmem:[#allocation13 + $0x14] sm:$0xf]
    %v4520 = vld [vmem:[#allocation13 + $0x18] sm:$0xf]
    %v4521 = vld [vmem:[#allocation13 + $0x1c] sm:$0xf]
    %v4522 = vld [vmem:[#allocation13 + $0x20] sm:$0xf]
    %v4523 = vld [vmem:[#allocation13 + $0x24] sm:$0xf]
    %v4524 = vld [vmem:[#allocation13 + $0x28] sm:$0xf]
    %v4525 = vld [vmem:[#allocation13 + $0x2c] sm:$0xf]
    %v4526 = vld [vmem:[#allocation13 + $0x30] sm:$0xf]
    %v4527 = vld [vmem:[#allocation13 + $0x34] sm:$0xf]
    %v4528 = vld [vmem:[#allocation13 + $0x38] sm:$0xf]
    %v4529 = vld [vmem:[#allocation13 + $0x3c] sm:$0xf]
    %v4530 = vld [vmem:[#allocation13 + $0x40] sm:$0xf]
    %v4531 = vld [vmem:[#allocation13 + $0x44] sm:$0xf]
    %v4532 = vld [vmem:[#allocation13 + $0x48] sm:$0xf]
    %v4533 = vld [vmem:[#allocation13 + $0x4c] sm:$0xf]
    %v4534 = vld [vmem:[#allocation13 + $0x50] sm:$0xf]
    %v4535 = vld [vmem:[#allocation13 + $0x54] sm:$0xf]
    %v4536 = vld [vmem:[#allocation13 + $0x58] sm:$0xf]
    %v4537 = vld [vmem:[#allocation13 + $0x5c] sm:$0xf]
    %v4538 = vld [vmem:[#allocation13 + $0x60] sm:$0xf]
    %v4539 = vld [vmem:[#allocation13 + $0x64] sm:$0xf]
    %v4540 = vld [vmem:[#allocation13 + $0x68] sm:$0xf]
    %v4541 = vld [vmem:[#allocation13 + $0x6c] sm:$0xf]
    %v4542 = vld [vmem:[#allocation13 + $0x70] sm:$0xf]
    %v4543 = vld [vmem:[#allocation13 + $0x74] sm:$0xf]
    %v4544 = vld [vmem:[#allocation13 + $0x78] sm:$0xf]
    %v4545 = vld [vmem:[#allocation13 + $0x7c] sm:$0xf]
    %v4546 = vld [vmem:[%s2 + $0x15] sm:$0x1]
    %v4548 = vperm.slane %v4546, 0
    %v4582 = vunpack.c.l.b16 %v4514
    %v4583 = vunpack.c.l.b16 %v4515
    %v4584 = vunpack.c.l.b16 %v4516
    %v4585 = vunpack.c.l.b16 %v4517
    %v4586 = vunpack.c.l.b16 %v4518
    %v4587 = vunpack.c.l.b16 %v4519
    %v4588 = vunpack.c.l.b16 %v4520
    %v4589 = vunpack.c.l.b16 %v4521
    %v4590 = vunpack.c.l.b16 %v4522
    %v4591 = vunpack.c.l.b16 %v4523
    %v4592 = vunpack.c.l.b16 %v4524
    %v4593 = vunpack.c.l.b16 %v4525
    %v4594 = vunpack.c.l.b16 %v4526
    %v4595 = vunpack.c.l.b16 %v4527
    %v4596 = vunpack.c.l.b16 %v4528
    %v4597 = vunpack.c.l.b16 %v4529
    %v4598 = vunpack.c.l.b16 %v4530
    %v4599 = vunpack.c.l.b16 %v4531
    %v4600 = vunpack.c.l.b16 %v4532
    %v4601 = vunpack.c.l.b16 %v4533
    %v4602 = vunpack.c.l.b16 %v4534
    %v4603 = vunpack.c.l.b16 %v4535
    %v4604 = vunpack.c.l.b16 %v4536
    %v4605 = vunpack.c.l.b16 %v4537
    %v4606 = vunpack.c.l.b16 %v4538
    %v4607 = vunpack.c.l.b16 %v4539
    %v4608 = vunpack.c.l.b16 %v4540
    %v4609 = vunpack.c.l.b16 %v4541
    %v4610 = vunpack.c.l.b16 %v4542
    %v4611 = vunpack.c.l.b16 %v4543
    %v4612 = vunpack.c.l.b16 %v4544
    %v4613 = vunpack.c.l.b16 %v4545
    %v4614 = vpack.c.b16 %v4583, %v4582
    %v4615 = vpack.c.b16 %v4585, %v4584
    %v4616 = vpack.c.b16 %v4587, %v4586
    %v4617 = vpack.c.b16 %v4589, %v4588
    %v4618 = vpack.c.b16 %v4591, %v4590
    %v4619 = vpack.c.b16 %v4593, %v4592
    %v4620 = vpack.c.b16 %v4595, %v4594
    %v4621 = vpack.c.b16 %v4597, %v4596
    %v4622 = vpack.c.b16 %v4599, %v4598
    %v4623 = vpack.c.b16 %v4601, %v4600
    %v4624 = vpack.c.b16 %v4603, %v4602
    %v4625 = vpack.c.b16 %v4605, %v4604
    %v4626 = vpack.c.b16 %v4607, %v4606
    %v4627 = vpack.c.b16 %v4609, %v4608
    %v4628 = vpack.c.b16 %v4611, %v4610
    %v4629 = vpack.c.b16 %v4613, %v4612
    %4646 = vmatpush.bf16.msra.mxu0 %v4621
    %4647 = vmatpush.bf16.msra.mxu0 %v4620
    %4648 = vmatpush.bf16.msra.mxu0 %v4619
    %4649 = vmatpush.bf16.msra.mxu0 %v4618
    %4650 = vmatpush.bf16.msra.mxu0 %v4617
    %4651 = vmatpush.bf16.msra.mxu0 %v4616
    %4652 = vmatpush.bf16.msra.mxu0 %v4615
    %4653 = vmatpush.bf16.msra.mxu0 %v4614
    %4654 = vmatmul.bf16.gmra.mxu0 %v4512
    %v4655 = vpop.f32.mrf.mxu0
    %v4656 = vadd.f32 %v4548, %v4655
    %v4657 = vpop.f32.mrf.mxu0
    %4658 = vdwg.mxu0
    %4659 = vmatpush.bf16.msra.mxu0 %v4629
    %4660 = vmatpush.bf16.msra.mxu0 %v4628
    %4661 = vmatpush.bf16.msra.mxu0 %v4627
    %4662 = vmatpush.bf16.msra.mxu0 %v4626
    %4663 = vmatpush.bf16.msra.mxu0 %v4625
    %4664 = vmatpush.bf16.msra.mxu0 %v4624
    %4665 = vmatpush.bf16.msra.mxu0 %v4623
    %4666 = vmatpush.bf16.msra.mxu0 %v4622
    %4667 = vmatmul.bf16.gmra.mxu0 %v4513
    %v4668 = vpop.f32.mrf.mxu0
    %v4669 = vadd.f32 %v4656, %v4668
    %v4670 = vpop.f32.mrf.mxu0
    %4671 = vdwg.mxu0
    %4672 = vst [vmem:[#allocation14] sm:$0xff] %v4669
    // Predicated region
    $region78: #{tpu_custom_call.1} parent=1 // pred_check
      _
    $region79: #{tpu_custom_call.1} parent=1 // pred_check_branch
      %4674 = sbr.rel (0) target = $region81
    $region80: #{tpu_custom_call.1} parent=1 // pred_region
      %4676 = vsyncadd [#allocation4], 0
      %s4678 = sshll.u32 [#allocation14], 4
      %s4679 = int_to_ptr.vmem [resolvable:$true] %s4678
      %s4680 = sshll.u32 %s12, 4
      %s4681 = int_to_ptr.hbm [resolvable:$true] %s4680
      %4683 = dma.vmem_to_hbm [thread:$0]  %s4679, 128, %s4681, [#allocation4]
    $region81: #{tpu_custom_call.1} parent=1 // pred_fallthru
      _
    // Predicated region
    $region82: #{tpu_custom_call.1} parent=1 // pred_check
      _
    $region83: #{tpu_custom_call.1} parent=1 // pred_check_branch
      %4685 = sbr.rel (0) target = $region85
    $region84: #{tpu_custom_call.1} parent=1 // pred_region
      %4687 = dma.done [#allocation4], 128
    $region85: #{tpu_custom_call.1} parent=1 // pred_fallthru
      _
    %4688 = vsyncpa [#allocation3], 1
    %4689 = vsyncpa [#allocation6], 1
    %4690 = vsyncpa [#allocation9], 1
    %4691 = vsyncpa [#allocation12], 1
    %4692 = vsyncpa [#allocation4], 1

</llo_original>
